<compile_context>
chip_gen: v7x
topology: tpu7x:2x2x1
jax: 0.10.0
libtpu: 0.0.40
codegen_flags: <defaults>
</compile_context>

<pallas_src>
import functools

import jax
import jax.numpy as jnp
from jax import lax
from jax.experimental import pallas as pl
from jax.experimental.pallas import tpu as pltpu


def _round_up(x, m):
    return (x + m - 1) // m * m


def _cdiv(a, b):
    return (a + b - 1) // b


# ----------------------------------------------------------------------------
# Pallas kernel: fused feature glue + shared DNN + fused towers + block-diag head
# ----------------------------------------------------------------------------
def _fused_multitask_kernel(
    x_ref,      # (bm, F_pad)   raw feature tile (dense values + float ids), f32
    wx_ref,     # (F_pad, H1)   layer-1 weights for dense columns (zero rows at id cols)
    temb_ref,   # (VT_pad, H1)  embedding tables folded through layer-1 weights
    w2_ref,     # (H1, H2)      shared layer 2 (BN folded)
    wt_ref,     # (H2, 2*Ht)    task-1 | task-2 towers fused (BN folded)
    wh_ref,     # (2*Ht, 8)     block-diag head: col0 = task1, cols1..4 = task2
    bias_ref,   # (4, maxw)     rows: b1 | b2 | bt(fused) | head bias (pbias in col0)
    out_ref,    # (bm, 8)       col0: clamped sigmoid, cols1..4: softmax, 5..7: pad
    *, h1, h2, ht2, sparse_cols, varlen_specs,
):
    f32 = jnp.float32
    x_raw = x_ref[...].astype(f32)          # ids stored exactly as small floats
    bm = x_raw.shape[0]
    vt = temb_ref.shape[0]

    b1 = bias_ref[0:1, :h1]
    b2 = bias_ref[1:2, :h2]
    bt = bias_ref[2:3, :ht2]
    bh = bias_ref[3:4, :8]

    # ---- layer 1, dense contribution: x @ Wx (id columns hit zero rows) ----
    h = jnp.dot(x_raw.astype(wx_ref.dtype), wx_ref[...], preferred_element_type=f32)

    # ---- layer 1, embedding contribution: one-hot "gather as matmul" ----
    vcol = lax.broadcasted_iota(jnp.int32, (bm, vt), 1)
    g = jnp.zeros((bm, vt), f32)
    for col, off in sparse_cols:                       # single-valued sparse ids
        ids = x_raw[:, col:col + 1].astype(jnp.int32) + off
        g = g + (vcol == ids).astype(f32)
    for col0, maxlen, off in varlen_specs:             # varlen: masked mean pooling
        hits = jnp.zeros((bm, vt), f32)
        cnt = jnp.zeros((bm, 1), f32)
        for l in range(maxlen):
            ids = x_raw[:, col0 + l:col0 + l + 1].astype(jnp.int32)
            valid = ids > 0                            # id 0 is padding
            hits = hits + ((vcol == ids + off) & valid).astype(f32)
            cnt = cnt + valid.astype(f32)
        g = g + hits / jnp.maximum(cnt, 1.0)
    h = h + jnp.dot(g.astype(temb_ref.dtype), temb_ref[...],
                    preferred_element_type=f32) + b1
    h = jnp.maximum(h, 0.0).astype(w2_ref.dtype)

    # ---- shared layer 2 ----
    h = jnp.dot(h, w2_ref[...], preferred_element_type=f32) + b2
    h = jnp.maximum(h, 0.0).astype(wt_ref.dtype)

    # ---- both task towers in one matmul ----
    t = jnp.dot(h, wt_ref[...], preferred_element_type=f32) + bt
    t = jnp.maximum(t, 0.0).astype(wh_ref.dtype)

    # ---- block-diagonal head -> 8 logit lanes ----
    logits = jnp.dot(t, wh_ref[...], preferred_element_type=f32) + bh   # (bm, 8)

    col = lax.broadcasted_iota(jnp.int32, logits.shape, 1)

    # task 1 (col 0): PredictionLayer('binary') -> sigmoid, clamped
    sig = 1.0 / (1.0 + jnp.exp(-logits))
    sig = jnp.clip(sig, 1e-8, 1.0 - 1e-8)

    # task 2 (cols 1..4): softmax over those 4 lanes (others masked to -inf)
    masked = jnp.where((col >= 1) & (col <= 4), logits, -jnp.inf)
    m = jnp.max(masked, axis=-1, keepdims=True)
    e = jnp.exp(masked - m)
    sm = e / jnp.sum(e, axis=-1, keepdims=True)

    out_ref[...] = jnp.where(col == 0, sig, sm)


def multitask_forward_pallas(X, kp, *, sparse_cols, varlen_specs,
                             bm=None, bm_max=2048):
    """X: (B, F) raw feature matrix (dense values + float-encoded ids), f32.

    kp: output of prepare_kernel_params (arrays only).
    sparse_cols / varlen_specs: static column/offset config (bind via partial).
    Returns (y1, y2) with shapes (B, 1) and (B, 4).
    """
    B, F = X.shape
    wx, temb, w2, wt, wh, bias = (kp["wx"], kp["temb"], kp["w2"],
                                  kp["wt"], kp["wh"], kp["bias"])
    F_pad, H1 = wx.shape
    VT = temb.shape[0]
    H2 = w2.shape[1]
    HT2 = wt.shape[1]

    # Batch tile: at least two balanced tiles (keeps both v7x TensorCores busy
    # via the "parallel" grid axis; harmless on 1-TC v5e/v6e), capped at bm_max
    # for large batches.  Sweep bm_max 1024..4096 for real workloads; VMEM is
    # not the limit even on v7x (64 MiB) or v5e's 16 MiB scoped default.
    if bm is None:
        n_tiles = _round_up(max(2, _cdiv(B, bm_max)), 2)
        bm = _round_up(_cdiv(B, n_tiles), 8)
    bm = max(8, _round_up(min(bm, _round_up(B, 8)), 8))
    B_pad = _round_up(B, bm)

    xp = jnp.pad(X.astype(jnp.float32), ((0, B_pad - B), (0, F_pad - F)))

    def rep(a):
        nd = a.ndim
        # weights/bias: full array, same block every grid step (resident, no re-DMA)
        return pl.BlockSpec(a.shape, lambda i: (0,) * nd)

    kernel = functools.partial(
        _fused_multitask_kernel, h1=H1, h2=H2, ht2=HT2,
        sparse_cols=sparse_cols, varlen_specs=varlen_specs)

    grid_spec = pltpu.PrefetchScalarGridSpec(
        num_scalar_prefetch=0,
        grid=(B_pad // bm,),
        in_specs=[
            pl.BlockSpec((bm, F_pad), lambda i: (i, 0)),
            rep(wx), rep(temb), rep(w2), rep(wt), rep(wh), rep(bias),
        ],
        out_specs=pl.BlockSpec((bm, 8), lambda i: (i, 0)),
    )

    weights = (wx, temb, w2, wt, wh, bias)
    flops = 2 * B_pad * (F_pad * H1 + VT * H1 + H1 * H2 + H2 * HT2 + HT2 * 8)
    bytes_accessed = (xp.size * xp.dtype.itemsize + B_pad * 8 * 4
                      + sum(int(w.size) * w.dtype.itemsize for w in weights))
    cost = pl.CostEstimate(flops=int(flops), transcendentals=int(9 * B_pad),
                           bytes_accessed=int(bytes_accessed))

    out = pl.pallas_call(
        kernel,
        out_shape=jax.ShapeDtypeStruct((B_pad, 8), jnp.float32),
        grid_spec=grid_spec,
        compiler_params=pltpu.CompilerParams(dimension_semantics=("parallel",)),
        cost_estimate=cost,
    )(xp, wx, temb, w2, wt, wh, bias)

    return out[:B, 0:1], out[:B, 1:5]


# ----------------------------------------------------------------------------
# Parameter construction (deterministic), eval-mode BN folded into Linear
# ----------------------------------------------------------------------------
def _fold_bn(w, b, gamma, beta, mean, var, eps=1e-5):
    scale = gamma / jnp.sqrt(var + eps)
    return w * scale[None, :], (b - mean) * scale + beta


def make_params(key, d_in, h_shared=(64, 32), h_task=(32,), init_std=0.05):
    ks = iter(jax.random.split(key, 32))

    def lin(di, do):
        w = init_std * jax.random.normal(next(ks), (di, do), jnp.float32)
        b = jnp.zeros((do,), jnp.float32)
        return w, b

    def bn(do):
        g = 1.0 + 0.01 * jax.random.normal(next(ks), (do,), jnp.float32)
        be = 0.01 * jax.random.normal(next(ks), (do,), jnp.float32)
        mu = 0.01 * jax.random.normal(next(ks), (do,), jnp.float32)
        va = 1.0 + 0.01 * jnp.abs(jax.random.normal(next(ks), (do,), jnp.float32))
        return g, be, mu, va

    raw = {}
    raw["l1"] = (*lin(d_in, h_shared[0]), *bn(h_shared[0]))
    raw["l2"] = (*lin(h_shared[0], h_shared[1]), *bn(h_shared[1]))
    raw["t1"] = (*lin(h_shared[1], h_task[0]), *bn(h_task[0]))
    raw["t2"] = (*lin(h_shared[1], h_task[0]), *bn(h_task[0]))
    wl1, _ = lin(h_task[0], 1)
    wl2, _ = lin(h_task[0], 4)

    def folded(name):
        w, b, g, be, mu, va = raw[name]
        wf, bf = _fold_bn(w, b, g, be, mu, va)
        return wf, bf.reshape(1, -1)

    w1, b1 = folded("l1")
    w2, b2 = folded("l2")
    wt1, bt1 = folded("t1")
    wt2, bt2 = folded("t2")

    params = dict(
        w1=w1, b1=b1, w2=w2, b2=b2,
        wt1=wt1, bt1=bt1, wt2=wt2, bt2=bt2,
        wl1=wl1, wl2=wl2,
        pbias=jnp.zeros((1, 1), jnp.float32),  # PredictionLayer learnable bias (init 0)
    )
    return params, raw, (wl1, wl2)


def prepare_kernel_params(params, emb_tables, feature_index, dense_feats,
                          sparse_feats, varlen_feats, n_feature_cols,
                          compute_dtype=jnp.bfloat16):
    """Fold/fuse parameters into the layout the fused kernel wants.

    Returns (kparams: dict of arrays, cfg: dict of static python config).
    """
    W1, b1 = params["w1"], params["b1"]
    W2, b2 = params["w2"], params["b2"]
    wt1, bt1 = params["wt1"], params["bt1"]
    wt2, bt2 = params["wt2"], params["bt2"]
    wl1, wl2 = params["wl1"], params["wl2"]
    pbias = params["pbias"]
    H1, H2, Ht = W1.shape[1], W2.shape[1], wt1.shape[1]

    # split layer-1 rows per feature block; fold embedding tables through them
    row, off = 0, 0
    tabs, sparse_cols, varlen_specs = [], [], []
    for f in sparse_feats:
        e = emb_tables[f].shape[1]
        tabs.append(emb_tables[f] @ W1[row:row + e])
        sparse_cols.append((int(feature_index[f][0]), off))
        off += int(emb_tables[f].shape[0]); row += e
    for f in varlen_feats:
        e = emb_tables[f].shape[1]
        tabs.append(emb_tables[f] @ W1[row:row + e])
        lo, hi = feature_index[f]
        varlen_specs.append((int(lo), int(hi - lo), off))
        off += int(emb_tables[f].shape[0]); row += e
    vt_pad = _round_up(max(off, 8), 8)
    temb = jnp.zeros((vt_pad, H1), jnp.float32).at[:off].set(
        jnp.concatenate(tabs, axis=0))

    f_pad = _round_up(max(n_feature_cols, 8), 8)
    wx = jnp.zeros((f_pad, H1), jnp.float32)
    for f in dense_feats:
        wx = wx.at[int(feature_index[f][0])].set(W1[row]); row += 1
    assert row == W1.shape[0]

    # fuse the two task towers into one matmul
    wt = jnp.concatenate([wt1, wt2], axis=1)            # (H2, 2*Ht)
    btf = jnp.concatenate([bt1, bt2], axis=1)           # (1, 2*Ht)

    # block-diagonal head: col 0 <- wl1 (task 1), cols 1..4 <- wl2 (task 2)
    wh = jnp.zeros((2 * Ht, 8), jnp.float32)
    wh = wh.at[:Ht, 0:1].set(wl1)
    wh = wh.at[Ht:, 1:5].set(wl2)

    # one padded bias slab (rows: b1 | b2 | bt | head bias)
    maxw = max(H1, H2, 2 * Ht, 8)
    bias = jnp.zeros((4, maxw), jnp.float32)
    bias = bias.at[0, :H1].set(b1[0])
    bias = bias.at[1, :H2].set(b2[0])
    bias = bias.at[2, :2 * Ht].set(btf[0])
    bias = bias.at[3, 0].set(pbias[0, 0])

    cd = compute_dtype
    kparams = dict(wx=wx.astype(cd), temb=temb.astype(cd), w2=W2.astype(cd),
                   wt=wt.astype(cd), wh=wh.astype(cd), bias=bias)
    cfg = dict(sparse_cols=tuple(sparse_cols), varlen_specs=tuple(varlen_specs))
    return kparams, cfg


# ----------------------------------------------------------------------------
# Pure-JAX feature glue + reference forward (unfolded BN) for correctness check
# ----------------------------------------------------------------------------
def build_dnn_input(X, emb_tables, feature_index, dense_feats, sparse_feats,
                    varlen_feats):
    dense_list = [X[:, feature_index[f][0]:feature_index[f][0] + 1] for f in dense_feats]

    sparse_list = []
    for f in sparse_feats:
        ids = X[:, feature_index[f][0]].astype(jnp.int32)
        sparse_list.append(jnp.take(emb_tables[f], ids, axis=0))

    for f in varlen_feats:                       # masked mean pooling (id 0 = pad)
        lo, hi = feature_index[f]
        ids = X[:, lo:hi].astype(jnp.int32)
        emb = jnp.take(emb_tables[f], ids, axis=0)
        mask = (ids > 0).astype(jnp.float32)[..., None]
        summed = jnp.sum(emb * mask, axis=1)
        cnt = jnp.maximum(jnp.sum(mask, axis=1), 1.0)
        sparse_list.append(summed / cnt)

    sparse_dnn_input = jnp.concatenate(sparse_list, axis=-1)
    dense_dnn_input = jnp.concatenate(dense_list, axis=-1)
    return jnp.concatenate([sparse_dnn_input, dense_dnn_input], axis=-1)


def reference_forward(x, raw, heads, eps=1e-5):
    def layer(x, name):
        w, b, g, be, mu, va = raw[name]
        z = x @ w + b
        z = (z - mu) / jnp.sqrt(va + eps) * g + be
        return jnp.maximum(z, 0.0)

    h = layer(layer(x, "l1"), "l2")
    wl1, wl2 = heads
    l1 = layer(h, "t1") @ wl1
    y1 = jnp.clip(jax.nn.sigmoid(l1), 1e-8, 1.0 - 1e-8)
    l2 = layer(h, "t2") @ wl2
    y2 = jax.nn.softmax(l2, axis=1)
    return y1, y2


# ----------------------------------------------------------------------------
if __name__ == "__main__":
    key = jax.random.PRNGKey(0)
    k_x, k_p, k_e = jax.random.split(key, 3)

    # feature config (small, synthetic); B is NOT a multiple of 8 to exercise
    # the batch-padding path and the balanced two-tile split.
    B = 300
    EMB = 8
    VOCAB = 10
    MAXLEN = 4
    dense_feats = ["d0", "d1", "d2"]
    sparse_feats = ["s0", "s1"]
    varlen_feats = ["v0"]
    feature_index = {"d0": (0, 1), "d1": (1, 2), "d2": (2, 3),
                     "s0": (3, 4), "s1": (4, 5), "v0": (5, 5 + MAXLEN)}

    kd, ks, kv = jax.random.split(k_x, 3)
    dense_vals = jax.random.normal(kd, (B, 3), jnp.float32)
    sparse_ids = jax.random.randint(ks, (B, 2), 1, VOCAB).astype(jnp.float32)
    varlen_ids = jax.random.randint(kv, (B, MAXLEN), 0, VOCAB).astype(jnp.float32)
    X = jnp.concatenate([dense_vals, sparse_ids, varlen_ids], axis=-1)   # (B, 9)

    ek = iter(jax.random.split(k_e, 8))
    emb_tables = {f: 0.05 * jax.random.normal(next(ek), (VOCAB, EMB), jnp.float32)
                  for f in sparse_feats + varlen_feats}

    # reference path: explicit dnn_input = concat(embeddings, pooled, dense) -> (B, 27)
    dnn_input = build_dnn_input(X, emb_tables, feature_index,
                                dense_feats, sparse_feats, varlen_feats)
    D_in = dnn_input.shape[-1]   # 2*8 + 8 + 3 = 27

    params, raw, heads = make_params(k_p, D_in, h_shared=(64, 32), h_task=(32,))
    y1_ref, y2_ref = reference_forward(dnn_input, raw, heads)

    # ---- f32 weights: exact check (reassociation-level differences only) ----
    kp32, cfg = prepare_kernel_params(params, emb_tables, feature_index,
                                      dense_feats, sparse_feats, varlen_feats,
                                      n_feature_cols=X.shape[1],
                                      compute_dtype=jnp.float32)
    fwd = jax.jit(functools.partial(multitask_forward_pallas,
                                    sparse_cols=cfg["sparse_cols"],
                                    varlen_specs=cfg["varlen_specs"]))
    y1, y2 = fwd(X, kp32)
    jax.block_until_ready((y1, y2))

    assert y1.shape == (B, 1) and y2.shape == (B, 4)
    assert jnp.allclose(y1, y1_ref, atol=1e-5, rtol=1e-5)
    assert jnp.allclose(y2, y2_ref, atol=1e-5, rtol=1e-5)
    assert jnp.allclose(jnp.sum(y2, axis=1), 1.0, atol=1e-5)

    # ---- default bf16 weights (MXU-native on v5e/v6e/v7x; f32 accumulate) ----
    kpbf, _ = prepare_kernel_params(params, emb_tables, feature_index,
                                    dense_feats, sparse_feats, varlen_feats,
                                    n_feature_cols=X.shape[1])  # bf16 default
    y1b, y2b = fwd(X, kpbf)
    jax.block_until_ready((y1b, y2b))
    assert jnp.allclose(y1b, y1_ref, atol=3e-2, rtol=3e-2)
    assert jnp.allclose(y2b, y2_ref, atol=3e-2, rtol=3e-2)
    assert jnp.allclose(jnp.sum(y2b, axis=1), 1.0, atol=1e-2)

    print("KERNEL_OK")
</pallas_src>

<mosaic_0001>
module attributes {stable_mosaic.version = 11 : i64} {
  func.func @_fused_multitask_kernel(%arg0: i32, %arg1: memref<152x16xf32, #tpu.memory_space<vmem>>, %arg2: memref<16x64xf32, #tpu.memory_space<vmem>>, %arg3: memref<32x64xf32, #tpu.memory_space<vmem>>, %arg4: memref<64x32xf32, #tpu.memory_space<vmem>>, %arg5: memref<32x64xf32, #tpu.memory_space<vmem>>, %arg6: memref<64x8xf32, #tpu.memory_space<vmem>>, %arg7: memref<4x64xf32, #tpu.memory_space<vmem>>, %arg8: memref<152x8xf32, #tpu.memory_space<vmem>>) attributes {dimension_semantics = [#tpu.dimension_semantics<parallel>], iteration_bounds = array<i64: 2>, scalar_prefetch = 0 : i64, scratch_operands = 0 : i64, tpu.core_type = #tpu.core_type<tc>, window_params = [{transform_indices = @transform_0, window_bounds = array<i64: 152, 16>}, {pipeline_mode = #tpu.pipeline_mode<synchronous>, transform_indices = @transform_1, window_bounds = array<i64: 16, 64>}, {pipeline_mode = #tpu.pipeline_mode<synchronous>, transform_indices = @transform_2, window_bounds = array<i64: 32, 64>}, {pipeline_mode = #tpu.pipeline_mode<synchronous>, transform_indices = @transform_3, window_bounds = array<i64: 64, 32>}, {pipeline_mode = #tpu.pipeline_mode<synchronous>, transform_indices = @transform_4, window_bounds = array<i64: 32, 64>}, {pipeline_mode = #tpu.pipeline_mode<synchronous>, transform_indices = @transform_5, window_bounds = array<i64: 64, 8>}, {pipeline_mode = #tpu.pipeline_mode<synchronous>, transform_indices = @transform_6, window_bounds = array<i64: 4, 64>}, {transform_indices = @transform_7, window_bounds = array<i64: 152, 8>}]} {
    %c0 = arith.constant 0 : index
    %c0_0 = arith.constant 0 : index
    %0 = vector.load %arg1[%c0, %c0_0] : memref<152x16xf32, #tpu.memory_space<vmem>>, vector<152x16xf32>
    %c0_1 = arith.constant 0 : index
    %c0_2 = arith.constant 0 : index
    %1 = vector.load %arg7[%c0_1, %c0_2] : memref<4x64xf32, #tpu.memory_space<vmem>>, vector<1x64xf32>
    %c1 = arith.constant 1 : index
    %c0_3 = arith.constant 0 : index
    %2 = vector.load %arg7[%c1, %c0_3] : memref<4x64xf32, #tpu.memory_space<vmem>>, vector<1x32xf32>
    %c2 = arith.constant 2 : index
    %c0_4 = arith.constant 0 : index
    %3 = vector.load %arg7[%c2, %c0_4] : memref<4x64xf32, #tpu.memory_space<vmem>>, vector<1x64xf32>
    %c3 = arith.constant 3 : index
    %c0_5 = arith.constant 0 : index
    %4 = vector.load %arg7[%c3, %c0_5] : memref<4x64xf32, #tpu.memory_space<vmem>>, vector<1x8xf32>
    %c0_6 = arith.constant 0 : index
    %c0_7 = arith.constant 0 : index
    %5 = vector.load %arg2[%c0_6, %c0_7] : memref<16x64xf32, #tpu.memory_space<vmem>>, vector<16x64xf32>
    %cst = arith.constant dense<0.000000e+00> : vector<152x64xf32>
    %6 = tpu.matmul %0, %5, %cst {dimension_numbers = #tpu.dot_dimension_numbers<[1], [0], [0], [1], [0, 0, 1, 1], [], []>} : vector<152x16xf32>, vector<16x64xf32>, vector<152x64xf32> -> vector<152x64xf32>
    %7 = tpu.iota {dimensions = array<i32: 1>} : vector<152x32xi32>
    %cst_8 = arith.constant 0.000000e+00 : f32
    %8 = vector.broadcast %cst_8 : f32 to vector<152x32xf32>
    %9 = vector.extract_strided_slice %0 {offsets = [0, 3], sizes = [152, 1], strides = [1, 1]} : vector<152x16xf32> to vector<152x1xf32>
    %10 = arith.fptosi %9 : vector<152x1xf32> to vector<152x1xi32>
    %c0_i32 = arith.constant 0 : i32
    %11 = vector.broadcast %c0_i32 : i32 to vector<152x1xi32>
    %12 = arith.addi %10, %11 : vector<152x1xi32>
    %13 = vector.broadcast %12 : vector<152x1xi32> to vector<152x32xi32>
    %14 = arith.cmpi eq, %7, %13 : vector<152x32xi32>
    %15 = arith.extui %14 : vector<152x32xi1> to vector<152x32xi32>
    %16 = arith.sitofp %15 : vector<152x32xi32> to vector<152x32xf32>
    %17 = arith.addf %8, %16 : vector<152x32xf32>
    %18 = vector.extract_strided_slice %0 {offsets = [0, 4], sizes = [152, 1], strides = [1, 1]} : vector<152x16xf32> to vector<152x1xf32>
    %19 = arith.fptosi %18 : vector<152x1xf32> to vector<152x1xi32>
    %c10_i32 = arith.constant 10 : i32
    %20 = vector.broadcast %c10_i32 : i32 to vector<152x1xi32>
    %21 = arith.addi %19, %20 : vector<152x1xi32>
    %22 = vector.broadcast %21 : vector<152x1xi32> to vector<152x32xi32>
    %23 = arith.cmpi eq, %7, %22 : vector<152x32xi32>
    %24 = arith.extui %23 : vector<152x32xi1> to vector<152x32xi32>
    %25 = arith.sitofp %24 : vector<152x32xi32> to vector<152x32xf32>
    %26 = arith.addf %17, %25 : vector<152x32xf32>
    %cst_9 = arith.constant 0.000000e+00 : f32
    %27 = vector.broadcast %cst_9 : f32 to vector<152x32xf32>
    %cst_10 = arith.constant 0.000000e+00 : f32
    %28 = vector.broadcast %cst_10 : f32 to vector<152x1xf32>
    %29 = vector.extract_strided_slice %0 {offsets = [0, 5], sizes = [152, 1], strides = [1, 1]} : vector<152x16xf32> to vector<152x1xf32>
    %30 = arith.fptosi %29 : vector<152x1xf32> to vector<152x1xi32>
    %c0_i32_11 = arith.constant 0 : i32
    %31 = vector.broadcast %c0_i32_11 : i32 to vector<152x1xi32>
    %32 = arith.cmpi sgt, %30, %31 : vector<152x1xi32>
    %c20_i32 = arith.constant 20 : i32
    %33 = vector.broadcast %c20_i32 : i32 to vector<152x1xi32>
    %34 = arith.addi %30, %33 : vector<152x1xi32>
    %35 = vector.broadcast %34 : vector<152x1xi32> to vector<152x32xi32>
    %36 = arith.cmpi eq, %7, %35 : vector<152x32xi32>
    %37 = vector.broadcast %32 : vector<152x1xi1> to vector<152x32xi1>
    %38 = arith.andi %36, %37 : vector<152x32xi1>
    %39 = arith.extui %38 : vector<152x32xi1> to vector<152x32xi32>
    %40 = arith.sitofp %39 : vector<152x32xi32> to vector<152x32xf32>
    %41 = arith.addf %27, %40 : vector<152x32xf32>
    %42 = arith.extui %32 : vector<152x1xi1> to vector<152x1xi32>
    %43 = arith.sitofp %42 : vector<152x1xi32> to vector<152x1xf32>
    %44 = arith.addf %28, %43 : vector<152x1xf32>
    %45 = vector.extract_strided_slice %0 {offsets = [0, 6], sizes = [152, 1], strides = [1, 1]} : vector<152x16xf32> to vector<152x1xf32>
    %46 = arith.fptosi %45 : vector<152x1xf32> to vector<152x1xi32>
    %c0_i32_12 = arith.constant 0 : i32
    %47 = vector.broadcast %c0_i32_12 : i32 to vector<152x1xi32>
    %48 = arith.cmpi sgt, %46, %47 : vector<152x1xi32>
    %c20_i32_13 = arith.constant 20 : i32
    %49 = vector.broadcast %c20_i32_13 : i32 to vector<152x1xi32>
    %50 = arith.addi %46, %49 : vector<152x1xi32>
    %51 = vector.broadcast %50 : vector<152x1xi32> to vector<152x32xi32>
    %52 = arith.cmpi eq, %7, %51 : vector<152x32xi32>
    %53 = vector.broadcast %48 : vector<152x1xi1> to vector<152x32xi1>
    %54 = arith.andi %52, %53 : vector<152x32xi1>
    %55 = arith.extui %54 : vector<152x32xi1> to vector<152x32xi32>
    %56 = arith.sitofp %55 : vector<152x32xi32> to vector<152x32xf32>
    %57 = arith.addf %41, %56 : vector<152x32xf32>
    %58 = arith.extui %48 : vector<152x1xi1> to vector<152x1xi32>
    %59 = arith.sitofp %58 : vector<152x1xi32> to vector<152x1xf32>
    %60 = arith.addf %44, %59 : vector<152x1xf32>
    %61 = vector.extract_strided_slice %0 {offsets = [0, 7], sizes = [152, 1], strides = [1, 1]} : vector<152x16xf32> to vector<152x1xf32>
    %62 = arith.fptosi %61 : vector<152x1xf32> to vector<152x1xi32>
    %c0_i32_14 = arith.constant 0 : i32
    %63 = vector.broadcast %c0_i32_14 : i32 to vector<152x1xi32>
    %64 = arith.cmpi sgt, %62, %63 : vector<152x1xi32>
    %c20_i32_15 = arith.constant 20 : i32
    %65 = vector.broadcast %c20_i32_15 : i32 to vector<152x1xi32>
    %66 = arith.addi %62, %65 : vector<152x1xi32>
    %67 = vector.broadcast %66 : vector<152x1xi32> to vector<152x32xi32>
    %68 = arith.cmpi eq, %7, %67 : vector<152x32xi32>
    %69 = vector.broadcast %64 : vector<152x1xi1> to vector<152x32xi1>
    %70 = arith.andi %68, %69 : vector<152x32xi1>
    %71 = arith.extui %70 : vector<152x32xi1> to vector<152x32xi32>
    %72 = arith.sitofp %71 : vector<152x32xi32> to vector<152x32xf32>
    %73 = arith.addf %57, %72 : vector<152x32xf32>
    %74 = arith.extui %64 : vector<152x1xi1> to vector<152x1xi32>
    %75 = arith.sitofp %74 : vector<152x1xi32> to vector<152x1xf32>
    %76 = arith.addf %60, %75 : vector<152x1xf32>
    %77 = vector.extract_strided_slice %0 {offsets = [0, 8], sizes = [152, 1], strides = [1, 1]} : vector<152x16xf32> to vector<152x1xf32>
    %78 = arith.fptosi %77 : vector<152x1xf32> to vector<152x1xi32>
    %c0_i32_16 = arith.constant 0 : i32
    %79 = vector.broadcast %c0_i32_16 : i32 to vector<152x1xi32>
    %80 = arith.cmpi sgt, %78, %79 : vector<152x1xi32>
    %c20_i32_17 = arith.constant 20 : i32
    %81 = vector.broadcast %c20_i32_17 : i32 to vector<152x1xi32>
    %82 = arith.addi %78, %81 : vector<152x1xi32>
    %83 = vector.broadcast %82 : vector<152x1xi32> to vector<152x32xi32>
    %84 = arith.cmpi eq, %7, %83 : vector<152x32xi32>
    %85 = vector.broadcast %80 : vector<152x1xi1> to vector<152x32xi1>
    %86 = arith.andi %84, %85 : vector<152x32xi1>
    %87 = arith.extui %86 : vector<152x32xi1> to vector<152x32xi32>
    %88 = arith.sitofp %87 : vector<152x32xi32> to vector<152x32xf32>
    %89 = arith.addf %73, %88 : vector<152x32xf32>
    %90 = arith.extui %80 : vector<152x1xi1> to vector<152x1xi32>
    %91 = arith.sitofp %90 : vector<152x1xi32> to vector<152x1xf32>
    %92 = arith.addf %76, %91 : vector<152x1xf32>
    %cst_18 = arith.constant 1.000000e+00 : f32
    %93 = vector.broadcast %cst_18 : f32 to vector<152x1xf32>
    %94 = arith.maximumf %92, %93 : vector<152x1xf32>
    %95 = vector.broadcast %94 : vector<152x1xf32> to vector<152x32xf32>
    %96 = arith.divf %89, %95 : vector<152x32xf32>
    %97 = arith.addf %26, %96 : vector<152x32xf32>
    %c0_19 = arith.constant 0 : index
    %c0_20 = arith.constant 0 : index
    %98 = vector.load %arg3[%c0_19, %c0_20] : memref<32x64xf32, #tpu.memory_space<vmem>>, vector<32x64xf32>
    %cst_21 = arith.constant dense<0.000000e+00> : vector<152x64xf32>
    %99 = tpu.matmul %97, %98, %cst_21 {dimension_numbers = #tpu.dot_dimension_numbers<[1], [0], [0], [1], [0, 0, 1, 1], [], []>} : vector<152x32xf32>, vector<32x64xf32>, vector<152x64xf32> -> vector<152x64xf32>
    %100 = arith.addf %6, %99 : vector<152x64xf32>
    %101 = vector.broadcast %1 : vector<1x64xf32> to vector<152x64xf32>
    %102 = arith.addf %100, %101 : vector<152x64xf32>
    %cst_22 = arith.constant 0.000000e+00 : f32
    %103 = vector.broadcast %cst_22 : f32 to vector<152x64xf32>
    %104 = arith.maximumf %102, %103 : vector<152x64xf32>
    %c0_23 = arith.constant 0 : index
    %c0_24 = arith.constant 0 : index
    %105 = vector.load %arg4[%c0_23, %c0_24] : memref<64x32xf32, #tpu.memory_space<vmem>>, vector<64x32xf32>
    %cst_25 = arith.constant dense<0.000000e+00> : vector<152x32xf32>
    %106 = tpu.matmul %104, %105, %cst_25 {dimension_numbers = #tpu.dot_dimension_numbers<[1], [0], [0], [1], [0, 0, 1, 1], [], []>} : vector<152x64xf32>, vector<64x32xf32>, vector<152x32xf32> -> vector<152x32xf32>
    %107 = vector.broadcast %2 : vector<1x32xf32> to vector<152x32xf32>
    %108 = arith.addf %106, %107 : vector<152x32xf32>
    %cst_26 = arith.constant 0.000000e+00 : f32
    %109 = vector.broadcast %cst_26 : f32 to vector<152x32xf32>
    %110 = arith.maximumf %108, %109 : vector<152x32xf32>
    %c0_27 = arith.constant 0 : index
    %c0_28 = arith.constant 0 : index
    %111 = vector.load %arg5[%c0_27, %c0_28] : memref<32x64xf32, #tpu.memory_space<vmem>>, vector<32x64xf32>
    %cst_29 = arith.constant dense<0.000000e+00> : vector<152x64xf32>
    %112 = tpu.matmul %110, %111, %cst_29 {dimension_numbers = #tpu.dot_dimension_numbers<[1], [0], [0], [1], [0, 0, 1, 1], [], []>} : vector<152x32xf32>, vector<32x64xf32>, vector<152x64xf32> -> vector<152x64xf32>
    %113 = vector.broadcast %3 : vector<1x64xf32> to vector<152x64xf32>
    %114 = arith.addf %112, %113 : vector<152x64xf32>
    %cst_30 = arith.constant 0.000000e+00 : f32
    %115 = vector.broadcast %cst_30 : f32 to vector<152x64xf32>
    %116 = arith.maximumf %114, %115 : vector<152x64xf32>
    %c0_31 = arith.constant 0 : index
    %c0_32 = arith.constant 0 : index
    %117 = vector.load %arg6[%c0_31, %c0_32] : memref<64x8xf32, #tpu.memory_space<vmem>>, vector<64x8xf32>
    %cst_33 = arith.constant dense<0.000000e+00> : vector<152x8xf32>
    %118 = tpu.matmul %116, %117, %cst_33 {dimension_numbers = #tpu.dot_dimension_numbers<[1], [0], [0], [1], [0, 0, 1, 1], [], []>} : vector<152x64xf32>, vector<64x8xf32>, vector<152x8xf32> -> vector<152x8xf32>
    %119 = vector.broadcast %4 : vector<1x8xf32> to vector<152x8xf32>
    %120 = arith.addf %118, %119 : vector<152x8xf32>
    %121 = tpu.iota {dimensions = array<i32: 1>} : vector<152x8xi32>
    %cst_34 = arith.constant 0.000000e+00 : f32
    %122 = vector.broadcast %cst_34 : f32 to vector<152x8xf32>
    %123 = arith.subf %122, %120 : vector<152x8xf32>
    %124 = math.exp %123 : vector<152x8xf32>
    %cst_35 = arith.constant 1.000000e+00 : f32
    %125 = vector.broadcast %cst_35 : f32 to vector<152x8xf32>
    %126 = arith.addf %125, %124 : vector<152x8xf32>
    %cst_36 = arith.constant 1.000000e+00 : f32
    %127 = vector.broadcast %cst_36 : f32 to vector<152x8xf32>
    %128 = arith.divf %127, %126 : vector<152x8xf32>
    %cst_37 = arith.constant 9.99999993E-9 : f32
    %cst_38 = arith.constant 1.000000e+00 : f32
    %129 = vector.broadcast %cst_37 : f32 to vector<152x8xf32>
    %130 = arith.maximumf %129, %128 : vector<152x8xf32>
    %131 = vector.broadcast %cst_38 : f32 to vector<152x8xf32>
    %132 = arith.minimumf %131, %130 : vector<152x8xf32>
    %c1_i32 = arith.constant 1 : i32
    %133 = vector.broadcast %c1_i32 : i32 to vector<152x8xi32>
    %134 = arith.cmpi sge, %121, %133 : vector<152x8xi32>
    %c4_i32 = arith.constant 4 : i32
    %135 = vector.broadcast %c4_i32 : i32 to vector<152x8xi32>
    %136 = arith.cmpi sle, %121, %135 : vector<152x8xi32>
    %137 = arith.andi %134, %136 : vector<152x8xi1>
    %cst_39 = arith.constant 0xFF800000 : f32
    %138 = vector.broadcast %cst_39 : f32 to vector<152x8xf32>
    %139 = arith.select %137, %120, %138 : vector<152x8xi1>, vector<152x8xf32>
    %cst_40 = arith.constant dense<0xFF800000> : vector<152xf32>
    %140 = vector.multi_reduction <maximumf>, %139, %cst_40 [1] : vector<152x8xf32> to vector<152xf32>
    %141 = vector.shape_cast %140 : vector<152xf32> to vector<152x1xf32>
    %142 = vector.broadcast %141 : vector<152x1xf32> to vector<152x8xf32>
    %143 = arith.subf %139, %142 : vector<152x8xf32>
    %144 = math.exp %143 : vector<152x8xf32>
    %cst_41 = arith.constant dense<0.000000e+00> : vector<152xf32>
    %145 = vector.multi_reduction <add>, %144, %cst_41 [1] : vector<152x8xf32> to vector<152xf32>
    %146 = vector.shape_cast %145 : vector<152xf32> to vector<152x1xf32>
    %147 = vector.broadcast %146 : vector<152x1xf32> to vector<152x8xf32>
    %148 = arith.divf %144, %147 : vector<152x8xf32>
    %c0_i32_42 = arith.constant 0 : i32
    %149 = vector.broadcast %c0_i32_42 : i32 to vector<152x8xi32>
    %150 = arith.cmpi eq, %121, %149 : vector<152x8xi32>
    %151 = arith.select %150, %132, %148 : vector<152x8xi1>, vector<152x8xf32>
    %c0_43 = arith.constant 0 : index
    %c0_44 = arith.constant 0 : index
    %152 = vector.load %arg8[%c0_43, %c0_44] : memref<152x8xf32, #tpu.memory_space<vmem>>, vector<152x8xf32>
    tpu.vector_store %arg8[%c0_43, %c0_44], %151 {strides = array<i32>} : memref<152x8xf32, #tpu.memory_space<vmem>>, vector<152x8xf32>,
    return
  }
  func.func @transform_0(%arg0: i32) -> (i32, i32) {
    %c0_i32 = arith.constant 0 : i32
    %c0_i32_0 = arith.constant 0 : i32
    return %arg0, %c0_i32 : i32, i32
  }
  func.func @transform_1(%arg0: i32) -> (i32, i32) {
    %c0_i32 = arith.constant 0 : i32
    %c0_i32_0 = arith.constant 0 : i32
    %c0_i32_1 = arith.constant 0 : i32
    return %c0_i32, %c0_i32_0 : i32, i32
  }
  func.func @transform_2(%arg0: i32) -> (i32, i32) {
    %c0_i32 = arith.constant 0 : i32
    %c0_i32_0 = arith.constant 0 : i32
    %c0_i32_1 = arith.constant 0 : i32
    return %c0_i32, %c0_i32_0 : i32, i32
  }
  func.func @transform_3(%arg0: i32) -> (i32, i32) {
    %c0_i32 = arith.constant 0 : i32
    %c0_i32_0 = arith.constant 0 : i32
    %c0_i32_1 = arith.constant 0 : i32
    return %c0_i32, %c0_i32_0 : i32, i32
  }
  func.func @transform_4(%arg0: i32) -> (i32, i32) {
    %c0_i32 = arith.constant 0 : i32
    %c0_i32_0 = arith.constant 0 : i32
    %c0_i32_1 = arith.constant 0 : i32
    return %c0_i32, %c0_i32_0 : i32, i32
  }
  func.func @transform_5(%arg0: i32) -> (i32, i32) {
    %c0_i32 = arith.constant 0 : i32
    %c0_i32_0 = arith.constant 0 : i32
    %c0_i32_1 = arith.constant 0 : i32
    return %c0_i32, %c0_i32_0 : i32, i32
  }
  func.func @transform_6(%arg0: i32) -> (i32, i32) {
    %c0_i32 = arith.constant 0 : i32
    %c0_i32_0 = arith.constant 0 : i32
    %c0_i32_1 = arith.constant 0 : i32
    return %c0_i32, %c0_i32_0 : i32, i32
  }
  func.func @transform_7(%arg0: i32) -> (i32, i32) {
    %c0_i32 = arith.constant 0 : i32
    %c0_i32_0 = arith.constant 0 : i32
    return %arg0, %c0_i32 : i32, i32
  }
}

</mosaic_0001>

<llo_original>
// kernel: multitask_forward_pallas.1
$region0: #{multitask_forward_pallas.1}
  #allocation0 [shape = 'u32[]', space=smem, size = 0x4, offset = 0x4, fixed_abs, tag = 'smem constant byte address 0x4 - core index']
  #allocation1 [shape = 'u32[144,128]{1,0:T(1,128)}', space=vmem, size = 0x12000, scoped, tag = 'internal scratch']
  %s0 = inlined_call_operand.vmem [shape: f32[304,16], index: 0, kind: input, shape index: {}]
  %s1 = inlined_call_operand.vmem [shape: f32[16,64], index: 1, kind: input, shape index: {}]
  %s2 = inlined_call_operand.vmem [shape: f32[32,64], index: 2, kind: input, shape index: {}]
  %s3 = inlined_call_operand.vmem [shape: f32[64,32], index: 3, kind: input, shape index: {}]
  %s4 = inlined_call_operand.vmem [shape: f32[32,64], index: 4, kind: input, shape index: {}]
  %s5 = inlined_call_operand.vmem [shape: f32[64,8], index: 5, kind: input, shape index: {}]
  %s6 = inlined_call_operand.vmem [shape: f32[4,64], index: 6, kind: input, shape index: {}]
  %s7 = inlined_call_operand.vmem [shape: f32[304,8], index: 7, kind: output, shape index: {}]
  %s8 = sld [smem:[#allocation0]]
  $region61: #{multitask_forward_pallas.1} parent=0
    _
  %s10 = ssub.s32 1, %s8
  %s11 = scalar_select 0, %s10, %s8
  loop: start=0, step=1, limit=4
  $region2: #{multitask_forward_pallas.1} parent=0 // loop_pre_header
    _
  $region3: #{multitask_forward_pallas.1} parent=0 // loop_header
    %s13 = sphi 0, %s17
    %p14 = scmp.ge.s32.totalorder %s13, 4
    %s23 = sphi 0, %s25
    %s26 = sphi 0, %s23
    %s27 = sphi 0, %s26
    %s43 = sphi 0, %s27
    %s47 = sphi 0, %s47
    %s49 = sphi 0, %s47
    %s50 = sphi 0, %s49
    %s64 = sphi 0, %s50
    %s68 = sphi 0, %s68
    %s70 = sphi 0, %s68
    %s71 = sphi 0, %s70
    %s85 = sphi 0, %s71
    %s89 = sphi 0, %s89
    %s91 = sphi 0, %s89
    %s92 = sphi 0, %s91
    %s106 = sphi 0, %s92
    %s110 = sphi 0, %s110
    %s112 = sphi 0, %s110
    %s113 = sphi 0, %s112
    %s127 = sphi 0, %s113
    %s131 = sphi 0, %s131
    %s133 = sphi 0, %s131
    %s134 = sphi 0, %s133
    %s148 = sphi 0, %s134
    %s152 = sphi 0, %s152
    %s154 = sphi 0, %s152
    %s155 = sphi 0, %s154
    %s169 = sphi 0, %s155
    %s175 = sphi 0, %s177
    %s178 = sphi 0, %s175
    %s179 = sphi 0, %s178
    %s195 = sphi 0, %s179
  $region4: #{multitask_forward_pallas.1} parent=0 // loop_header_branch
    %16 = sbr.rel (%p14) target = $region8
  $region5: #{multitask_forward_pallas.1} parent=0 // loop_body
    %s18 = ssub.s32 %s13, 1
    %s19 = ssub.s32 %s13, 2
    %s20 = sadd.s32 %s13, 1
    %s21 = ssub.s32 %s13, %s20
    %p22 = scmp.eq.s32.totalorder %s21, 0
    %s24 = sadd.s32 %s23, 1
    %s25 = scalar_select %p22, %s23, %s24
    %p28 = pneg %p22
    %p29 = scmp.eq.s32.totalorder %s13, 1
    %p30 = por %p28, %p29
    %p31 = scmp.ne.s32.totalorder %s23, %s26
    %p32 = scmp.eq.s32.totalorder %s13, 0
    %p33 = por %p31, %p32
    %p34 = scmp.ne.s32.totalorder %s23, %s26
    %p35 = scmp.eq.s32.totalorder %s18, 1
    %p36 = por %p34, %p35
    %p37 = scmp.ne.s32.totalorder %s26, %s27
    %p38 = scmp.eq.s32.totalorder %s18, 0
    %p39 = por %p37, %p38
    %p40 = scmp.ne.s32.totalorder %s26, %s27
    %p41 = scmp.eq.s32.totalorder %s19, 1
    %p42 = por %p40, %p41
    %p44 = scmp.ne.s32.totalorder %s27, %s43
    %p45 = scmp.eq.s32.totalorder %s19, 0
    %p46 = por %p44, %p45
    %s48 = sadd.s32 %s47, 1
    %p51 = scmp.eq.s32.totalorder %s13, 1
    %p52 = scmp.ne.s32.totalorder %s47, %s49
    %p53 = scmp.eq.s32.totalorder %s13, 0
    %p54 = por %p52, %p53
    %p55 = scmp.ne.s32.totalorder %s47, %s49
    %p56 = scmp.eq.s32.totalorder %s18, 1
    %p57 = por %p55, %p56
    %p58 = scmp.ne.s32.totalorder %s49, %s50
    %p59 = scmp.eq.s32.totalorder %s18, 0
    %p60 = por %p58, %p59
    %p61 = scmp.ne.s32.totalorder %s49, %s50
    %p62 = scmp.eq.s32.totalorder %s19, 1
    %p63 = por %p61, %p62
    %p65 = scmp.ne.s32.totalorder %s50, %s64
    %p66 = scmp.eq.s32.totalorder %s19, 0
    %p67 = por %p65, %p66
    %s69 = sadd.s32 %s68, 1
    %p72 = scmp.eq.s32.totalorder %s13, 1
    %p73 = scmp.ne.s32.totalorder %s68, %s70
    %p74 = scmp.eq.s32.totalorder %s13, 0
    %p75 = por %p73, %p74
    %p76 = scmp.ne.s32.totalorder %s68, %s70
    %p77 = scmp.eq.s32.totalorder %s18, 1
    %p78 = por %p76, %p77
    %p79 = scmp.ne.s32.totalorder %s70, %s71
    %p80 = scmp.eq.s32.totalorder %s18, 0
    %p81 = por %p79, %p80
    %p82 = scmp.ne.s32.totalorder %s70, %s71
    %p83 = scmp.eq.s32.totalorder %s19, 1
    %p84 = por %p82, %p83
    %p86 = scmp.ne.s32.totalorder %s71, %s85
    %p87 = scmp.eq.s32.totalorder %s19, 0
    %p88 = por %p86, %p87
    %s90 = sadd.s32 %s89, 1
    %p93 = scmp.eq.s32.totalorder %s13, 1
    %p94 = scmp.ne.s32.totalorder %s89, %s91
    %p95 = scmp.eq.s32.totalorder %s13, 0
    %p96 = por %p94, %p95
    %p97 = scmp.ne.s32.totalorder %s89, %s91
    %p98 = scmp.eq.s32.totalorder %s18, 1
    %p99 = por %p97, %p98
    %p100 = scmp.ne.s32.totalorder %s91, %s92
    %p101 = scmp.eq.s32.totalorder %s18, 0
    %p102 = por %p100, %p101
    %p103 = scmp.ne.s32.totalorder %s91, %s92
    %p104 = scmp.eq.s32.totalorder %s19, 1
    %p105 = por %p103, %p104
    %p107 = scmp.ne.s32.totalorder %s92, %s106
    %p108 = scmp.eq.s32.totalorder %s19, 0
    %p109 = por %p107, %p108
    %s111 = sadd.s32 %s110, 1
    %p114 = scmp.eq.s32.totalorder %s13, 1
    %p115 = scmp.ne.s32.totalorder %s110, %s112
    %p116 = scmp.eq.s32.totalorder %s13, 0
    %p117 = por %p115, %p116
    %p118 = scmp.ne.s32.totalorder %s110, %s112
    %p119 = scmp.eq.s32.totalorder %s18, 1
    %p120 = por %p118, %p119
    %p121 = scmp.ne.s32.totalorder %s112, %s113
    %p122 = scmp.eq.s32.totalorder %s18, 0
    %p123 = por %p121, %p122
    %p124 = scmp.ne.s32.totalorder %s112, %s113
    %p125 = scmp.eq.s32.totalorder %s19, 1
    %p126 = por %p124, %p125
    %p128 = scmp.ne.s32.totalorder %s113, %s127
    %p129 = scmp.eq.s32.totalorder %s19, 0
    %p130 = por %p128, %p129
    %s132 = sadd.s32 %s131, 1
    %p135 = scmp.eq.s32.totalorder %s13, 1
    %p136 = scmp.ne.s32.totalorder %s131, %s133
    %p137 = scmp.eq.s32.totalorder %s13, 0
    %p138 = por %p136, %p137
    %p139 = scmp.ne.s32.totalorder %s131, %s133
    %p140 = scmp.eq.s32.totalorder %s18, 1
    %p141 = por %p139, %p140
    %p142 = scmp.ne.s32.totalorder %s133, %s134
    %p143 = scmp.eq.s32.totalorder %s18, 0
    %p144 = por %p142, %p143
    %p145 = scmp.ne.s32.totalorder %s133, %s134
    %p146 = scmp.eq.s32.totalorder %s19, 1
    %p147 = por %p145, %p146
    %p149 = scmp.ne.s32.totalorder %s134, %s148
    %p150 = scmp.eq.s32.totalorder %s19, 0
    %p151 = por %p149, %p150
    %s153 = sadd.s32 %s152, 1
    %p156 = scmp.eq.s32.totalorder %s13, 1
    %p157 = scmp.ne.s32.totalorder %s152, %s154
    %p158 = scmp.eq.s32.totalorder %s13, 0
    %p159 = por %p157, %p158
    %p160 = scmp.ne.s32.totalorder %s152, %s154
    %p161 = scmp.eq.s32.totalorder %s18, 1
    %p162 = por %p160, %p161
    %p163 = scmp.ne.s32.totalorder %s154, %s155
    %p164 = scmp.eq.s32.totalorder %s18, 0
    %p165 = por %p163, %p164
    %p166 = scmp.ne.s32.totalorder %s154, %s155
    %p167 = scmp.eq.s32.totalorder %s19, 1
    %p168 = por %p166, %p167
    %p170 = scmp.ne.s32.totalorder %s155, %s169
    %p171 = scmp.eq.s32.totalorder %s19, 0
    %p172 = por %p170, %p171
    %s173 = ssub.s32 %s13, %s20
    %p174 = scmp.eq.s32.totalorder %s173, 0
    %s176 = sadd.s32 %s175, 1
    %s177 = scalar_select %p174, %s175, %s176
    %p180 = pneg %p174
    %p181 = scmp.eq.s32.totalorder %s13, 1
    %p182 = por %p180, %p181
    %p183 = scmp.ne.s32.totalorder %s175, %s178
    %p184 = scmp.eq.s32.totalorder %s13, 0
    %p185 = por %p183, %p184
    %p186 = scmp.ne.s32.totalorder %s175, %s178
    %p187 = scmp.eq.s32.totalorder %s18, 1
    %p188 = por %p186, %p187
    %p189 = scmp.ne.s32.totalorder %s178, %s179
    %p190 = scmp.eq.s32.totalorder %s18, 0
    %p191 = por %p189, %p190
    %p192 = scmp.ne.s32.totalorder %s178, %s179
    %p193 = scmp.eq.s32.totalorder %s19, 1
    %p194 = por %p192, %p193
    %p196 = scmp.ne.s32.totalorder %s179, %s195
    %p197 = scmp.eq.s32.totalorder %s19, 0
    %p198 = por %p196, %p197
    %p199 = scmp.le.s32.totalorder 1, %s13
    %p200 = scmp.lt.s32.totalorder %s13, 3
    %p201 = pnand %p199, %p200
    %p202 = pneg %p201
    // Predicated region
    $region9: #{multitask_forward_pallas.1} parent=5 // pred_check
      _
    $region10: #{multitask_forward_pallas.1} parent=5 // pred_check_branch
      %204 = sbr.rel (%p201) target = $region12
    $region11: #{multitask_forward_pallas.1} parent=5 // pred_region
      %s205 = ssub.s32 %s13, 1
      // Predicated region
      $region13: #{multitask_forward_pallas.1} parent=11 // pred_check
        %p206 = pneg %p60
      $region14: #{multitask_forward_pallas.1} parent=11 // pred_check_branch
        %208 = sbr.rel (%p206) target = $region16
      $region15: #{multitask_forward_pallas.1} parent=11 // pred_region
        _
      $region16: #{multitask_forward_pallas.1} parent=11 // pred_fallthru
        _
      // Predicated region
      $region17: #{multitask_forward_pallas.1} parent=11 // pred_check
        %p209 = pneg %p81
      $region18: #{multitask_forward_pallas.1} parent=11 // pred_check_branch
        %211 = sbr.rel (%p209) target = $region20
      $region19: #{multitask_forward_pallas.1} parent=11 // pred_region
        _
      $region20: #{multitask_forward_pallas.1} parent=11 // pred_fallthru
        _
      // Predicated region
      $region21: #{multitask_forward_pallas.1} parent=11 // pred_check
        %p212 = pneg %p102
      $region22: #{multitask_forward_pallas.1} parent=11 // pred_check_branch
        %214 = sbr.rel (%p212) target = $region24
      $region23: #{multitask_forward_pallas.1} parent=11 // pred_region
        _
      $region24: #{multitask_forward_pallas.1} parent=11 // pred_fallthru
        _
      // Predicated region
      $region25: #{multitask_forward_pallas.1} parent=11 // pred_check
        %p215 = pneg %p123
      $region26: #{multitask_forward_pallas.1} parent=11 // pred_check_branch
        %217 = sbr.rel (%p215) target = $region28
      $region27: #{multitask_forward_pallas.1} parent=11 // pred_region
        _
      $region28: #{multitask_forward_pallas.1} parent=11 // pred_fallthru
        _
      // Predicated region
      $region29: #{multitask_forward_pallas.1} parent=11 // pred_check
        %p218 = pneg %p144
      $region30: #{multitask_forward_pallas.1} parent=11 // pred_check_branch
        %220 = sbr.rel (%p218) target = $region32
      $region31: #{multitask_forward_pallas.1} parent=11 // pred_region
        _
      $region32: #{multitask_forward_pallas.1} parent=11 // pred_fallthru
        _
      // Predicated region
      $region33: #{multitask_forward_pallas.1} parent=11 // pred_check
        %p221 = pneg %p165
      $region34: #{multitask_forward_pallas.1} parent=11 // pred_check_branch
        %223 = sbr.rel (%p221) target = $region36
      $region35: #{multitask_forward_pallas.1} parent=11 // pred_region
        _
      $region36: #{multitask_forward_pallas.1} parent=11 // pred_fallthru
        _
    $region12: #{multitask_forward_pallas.1} parent=5 // pred_fallthru
      _
    %p224 = scmp.lt.s32.totalorder %s13, 2
    // Predicated region
    $region37: #{multitask_forward_pallas.1} parent=5 // pred_check
      %p225 = pneg %p224
    $region38: #{multitask_forward_pallas.1} parent=5 // pred_check_branch
      %227 = sbr.rel (%p225) target = $region40
    $region39: #{multitask_forward_pallas.1} parent=5 // pred_region
      // Predicated region
      $region41: #{multitask_forward_pallas.1} parent=39 // pred_check
        %p228 = pneg %p33
      $region42: #{multitask_forward_pallas.1} parent=39 // pred_check_branch
        %230 = sbr.rel (%p228) target = $region44
      $region43: #{multitask_forward_pallas.1} parent=39 // pred_region
        %s231 = smul.u32 19, %s13
        %p232 = scmp.lt.s32.totalorder %s231, 37
        %s233 = scalar_select %p232, %s231, 37
        %s234 = smul.addr %s233, 8
        %s235 = scalar_lea.vmem %s0, %s234
        %s236 = smul.u32 19, %s13
      $region44: #{multitask_forward_pallas.1} parent=39 // pred_fallthru
        _
    $region40: #{multitask_forward_pallas.1} parent=5 // pred_fallthru
      _
    %p237 = scmp.le.s32.totalorder 1, %s13
    %p238 = scmp.lt.s32.totalorder %s13, 3
    %p239 = pnand %p237, %p238
    %p240 = pneg %p239
    // Predicated region
    $region45: #{multitask_forward_pallas.1} parent=5 // pred_check
      _
    $region46: #{multitask_forward_pallas.1} parent=5 // pred_check_branch
      %242 = sbr.rel (%p239) target = $region48
    $region47: #{multitask_forward_pallas.1} parent=5 // pred_region
      %s243 = ssub.s32 %s13, 1
      %s244 = smul.u32 19, %s18
      %p245 = scmp.lt.s32.totalorder %s244, 37
      %s246 = scalar_select %p245, %s244, 37
      %s247 = smul.addr %s246, 8
      %s248 = scalar_lea.vmem %s0, %s247
      %p249 = pneg %p39
      %p250 = pneg %p36
      %p251 = pneg %p60
      %p252 = pneg %p57
      %p253 = pneg %p81
      %p254 = pneg %p78
      %p255 = pneg %p102
      %p256 = pneg %p99
      %p257 = pneg %p123
      %p258 = pneg %p120
      %p259 = pneg %p144
      %p260 = pneg %p141
      %p261 = pneg %p165
      %p262 = pneg %p162
      %p263 = pneg %p191
      %p264 = pneg %p188
      %s265 = smul.u32 19, %s18
      %p266 = scmp.lt.s32.totalorder %s265, 37
      %s267 = scalar_select %p266, %s265, 37
      %s268 = smul.addr %s267, 8
      %s269 = scalar_lea.vmem %s7, %s268
      %s270 = smul.u32 19, %s18
      %p271 = scmp.lt.s32.totalorder %s270, 37
      %s272 = scalar_select %p271, %s270, 37
      %s273 = smul.addr %s272, 8
      %s274 = scalar_lea.vmem %s0, %s273
      %s275 = smul.u32 19, %s18
      %s276 = smul.u32 19, %s18
      %p277 = scmp.lt.s32.totalorder %s276, 37
      %s278 = scalar_select %p277, %s276, 37
      %s279 = smul.addr %s278, 8
      %s280 = scalar_lea.vmem %s7, %s279
      %s281 = smul.u32 19, %s18
      %v282 = vld [vmem:[%s274] sm:$0xff]
      %v283 = vld [vmem:[%s274 + $0x8] sm:$0xff]
      %v284 = vld [vmem:[%s274 + $0x10] sm:$0xff]
      %v285 = vld [vmem:[%s274 + $0x18] sm:$0xff]
      %v286 = vld [vmem:[%s274 + $0x20] sm:$0xff]
      %v287 = vld [vmem:[%s274 + $0x28] sm:$0xff]
      %v288 = vld [vmem:[%s274 + $0x30] sm:$0xff]
      %v289 = vld [vmem:[%s274 + $0x38] sm:$0xff]
      %v290 = vld [vmem:[%s274 + $0x40] sm:$0xff]
      %v291 = vld [vmem:[%s274 + $0x48] sm:$0xff]
      %v292 = vld [vmem:[%s274 + $0x50] sm:$0xff]
      %v293 = vld [vmem:[%s274 + $0x58] sm:$0xff]
      %v294 = vld [vmem:[%s274 + $0x60] sm:$0xff]
      %v295 = vld [vmem:[%s274 + $0x68] sm:$0xff]
      %v296 = vld [vmem:[%s274 + $0x70] sm:$0xff]
      %v297 = vld [vmem:[%s274 + $0x78] sm:$0xff]
      %v298 = vld [vmem:[%s274 + $0x80] sm:$0xff]
      %v299 = vld [vmem:[%s274 + $0x88] sm:$0xff]
      %v300 = vld [vmem:[%s274 + $0x90] sm:$0xff]
      %v301 = vld [vmem:[%s6] sm:$0x1]
      %v302 = vld [vmem:[%s6 + $0x1] sm:$0x1]
      %v303 = vld [vmem:[%s6 + $0x2] sm:$0x1]
      %v304 = vld [vmem:[%s6 + $0x3] sm:$0x1]
      %v305 = vld [vmem:[%s1] sm:$0xff]
      %v306 = vld [vmem:[%s1 + $0x8] sm:$0xff]
      %v307 = vlaneseq
      %v308 = vand.u32 %v307, 127
      %v309 = vcvt.f32.s32.to.zero.pseudo %v282
      %v310 = vcvt.f32.s32.to.zero.pseudo %v283
      %v311 = vcvt.f32.s32.to.zero.pseudo %v284
      %v312 = vcvt.f32.s32.to.zero.pseudo %v285
      %v313 = vcvt.f32.s32.to.zero.pseudo %v286
      %v314 = vcvt.f32.s32.to.zero.pseudo %v287
      %v315 = vcvt.f32.s32.to.zero.pseudo %v288
      %v316 = vcvt.f32.s32.to.zero.pseudo %v289
      %v317 = vcvt.f32.s32.to.zero.pseudo %v290
      %v318 = vcvt.f32.s32.to.zero.pseudo %v291
      %v319 = vcvt.f32.s32.to.zero.pseudo %v292
      %v320 = vcvt.f32.s32.to.zero.pseudo %v293
      %v321 = vcvt.f32.s32.to.zero.pseudo %v294
      %v322 = vcvt.f32.s32.to.zero.pseudo %v295
      %v323 = vcvt.f32.s32.to.zero.pseudo %v296
      %v324 = vcvt.f32.s32.to.zero.pseudo %v297
      %v325 = vcvt.f32.s32.to.zero.pseudo %v298
      %v326 = vcvt.f32.s32.to.zero.pseudo %v299
      %v327 = vcvt.f32.s32.to.zero.pseudo %v300
      %328 = vset.pattern.permute.xlu0 3
      %329 = vperm.xlu0 %328, %v309
      %v330 = vpop.permute.xlu0 %329
      %331 = vset.pattern.permute.xlu0 3
      %332 = vperm.xlu0 %331, %v310
      %v333 = vpop.permute.xlu0 %332
      %334 = vset.pattern.permute.xlu0 3
      %335 = vperm.xlu0 %334, %v311
      %v336 = vpop.permute.xlu0 %335
      %337 = vset.pattern.permute.xlu0 3
      %338 = vperm.xlu0 %337, %v312
      %v339 = vpop.permute.xlu0 %338
      %340 = vset.pattern.permute.xlu0 3
      %341 = vperm.xlu0 %340, %v313
      %v342 = vpop.permute.xlu0 %341
      %343 = vset.pattern.permute.xlu0 3
      %344 = vperm.xlu0 %343, %v314
      %v345 = vpop.permute.xlu0 %344
      %346 = vset.pattern.permute.xlu0 3
      %347 = vperm.xlu0 %346, %v315
      %v348 = vpop.permute.xlu0 %347
      %349 = vset.pattern.permute.xlu0 3
      %350 = vperm.xlu0 %349, %v316
      %v351 = vpop.permute.xlu0 %350
      %352 = vset.pattern.permute.xlu0 3
      %353 = vperm.xlu0 %352, %v317
      %v354 = vpop.permute.xlu0 %353
      %355 = vset.pattern.permute.xlu0 3
      %356 = vperm.xlu0 %355, %v318
      %v357 = vpop.permute.xlu0 %356
      %358 = vset.pattern.permute.xlu0 3
      %359 = vperm.xlu0 %358, %v319
      %v360 = vpop.permute.xlu0 %359
      %361 = vset.pattern.permute.xlu0 3
      %362 = vperm.xlu0 %361, %v320
      %v363 = vpop.permute.xlu0 %362
      %364 = vset.pattern.permute.xlu0 3
      %365 = vperm.xlu0 %364, %v321
      %v366 = vpop.permute.xlu0 %365
      %367 = vset.pattern.permute.xlu0 3
      %368 = vperm.xlu0 %367, %v322
      %v369 = vpop.permute.xlu0 %368
      %370 = vset.pattern.permute.xlu0 3
      %371 = vperm.xlu0 %370, %v323
      %v372 = vpop.permute.xlu0 %371
      %373 = vset.pattern.permute.xlu0 3
      %374 = vperm.xlu0 %373, %v324
      %v375 = vpop.permute.xlu0 %374
      %376 = vset.pattern.permute.xlu0 3
      %377 = vperm.xlu0 %376, %v325
      %v378 = vpop.permute.xlu0 %377
      %379 = vset.pattern.permute.xlu0 3
      %380 = vperm.xlu0 %379, %v326
      %v381 = vpop.permute.xlu0 %380
      %382 = vset.pattern.permute.xlu0 3
      %383 = vperm.xlu0 %382, %v327
      %v384 = vpop.permute.xlu0 %383
      %vm385 = vcmp.eq.s32.totalorder %v308, %v330
      %vm386 = vcmp.eq.s32.totalorder %v308, %v333
      %vm387 = vcmp.eq.s32.totalorder %v308, %v336
      %vm388 = vcmp.eq.s32.totalorder %v308, %v339
      %vm389 = vcmp.eq.s32.totalorder %v308, %v342
      %vm390 = vcmp.eq.s32.totalorder %v308, %v345
      %vm391 = vcmp.eq.s32.totalorder %v308, %v348
      %vm392 = vcmp.eq.s32.totalorder %v308, %v351
      %vm393 = vcmp.eq.s32.totalorder %v308, %v354
      %vm394 = vcmp.eq.s32.totalorder %v308, %v357
      %vm395 = vcmp.eq.s32.totalorder %v308, %v360
      %vm396 = vcmp.eq.s32.totalorder %v308, %v363
      %vm397 = vcmp.eq.s32.totalorder %v308, %v366
      %vm398 = vcmp.eq.s32.totalorder %v308, %v369
      %vm399 = vcmp.eq.s32.totalorder %v308, %v372
      %vm400 = vcmp.eq.s32.totalorder %v308, %v375
      %vm401 = vcmp.eq.s32.totalorder %v308, %v378
      %vm402 = vcmp.eq.s32.totalorder %v308, %v381
      %vm403 = vcmp.eq.s32.totalorder %v308, %v384
      %v404 = vsel %vm385, 1, 0
      %v405 = vsel %vm386, 1, 0
      %v406 = vsel %vm387, 1, 0
      %v407 = vsel %vm388, 1, 0
      %v408 = vsel %vm389, 1, 0
      %v409 = vsel %vm390, 1, 0
      %v410 = vsel %vm391, 1, 0
      %v411 = vsel %vm392, 1, 0
      %v412 = vsel %vm393, 1, 0
      %v413 = vsel %vm394, 1, 0
      %v414 = vsel %vm395, 1, 0
      %v415 = vsel %vm396, 1, 0
      %v416 = vsel %vm397, 1, 0
      %v417 = vsel %vm398, 1, 0
      %v418 = vsel %vm399, 1, 0
      %v419 = vsel %vm400, 1, 0
      %v420 = vsel %vm401, 1, 0
      %v421 = vsel %vm402, 1, 0
      %v422 = vsel %vm403, 1, 0
      %v423 = vcvt.s32.f32 %v404
      %v424 = vcvt.s32.f32 %v405
      %v425 = vcvt.s32.f32 %v406
      %v426 = vcvt.s32.f32 %v407
      %v427 = vcvt.s32.f32 %v408
      %v428 = vcvt.s32.f32 %v409
      %v429 = vcvt.s32.f32 %v410
      %v430 = vcvt.s32.f32 %v411
      %v431 = vcvt.s32.f32 %v412
      %v432 = vcvt.s32.f32 %v413
      %v433 = vcvt.s32.f32 %v414
      %v434 = vcvt.s32.f32 %v415
      %v435 = vcvt.s32.f32 %v416
      %v436 = vcvt.s32.f32 %v417
      %v437 = vcvt.s32.f32 %v418
      %v438 = vcvt.s32.f32 %v419
      %v439 = vcvt.s32.f32 %v420
      %v440 = vcvt.s32.f32 %v421
      %v441 = vcvt.s32.f32 %v422
      %v442 = vadd.f32 %v423, 0.0
      %v443 = vadd.f32 %v424, 0.0
      %v444 = vadd.f32 %v425, 0.0
      %v445 = vadd.f32 %v426, 0.0
      %v446 = vadd.f32 %v427, 0.0
      %v447 = vadd.f32 %v428, 0.0
      %v448 = vadd.f32 %v429, 0.0
      %v449 = vadd.f32 %v430, 0.0
      %v450 = vadd.f32 %v431, 0.0
      %v451 = vadd.f32 %v432, 0.0
      %v452 = vadd.f32 %v433, 0.0
      %v453 = vadd.f32 %v434, 0.0
      %v454 = vadd.f32 %v435, 0.0
      %v455 = vadd.f32 %v436, 0.0
      %v456 = vadd.f32 %v437, 0.0
      %v457 = vadd.f32 %v438, 0.0
      %v458 = vadd.f32 %v439, 0.0
      %v459 = vadd.f32 %v440, 0.0
      %v460 = vadd.f32 %v441, 0.0
      %v461 = vadd.s32 %v309, 10
      %v462 = vadd.s32 %v310, 10
      %v463 = vadd.s32 %v311, 10
      %v464 = vadd.s32 %v312, 10
      %v465 = vadd.s32 %v313, 10
      %v466 = vadd.s32 %v314, 10
      %v467 = vadd.s32 %v315, 10
      %v468 = vadd.s32 %v316, 10
      %v469 = vadd.s32 %v317, 10
      %v470 = vadd.s32 %v318, 10
      %v471 = vadd.s32 %v319, 10
      %v472 = vadd.s32 %v320, 10
      %v473 = vadd.s32 %v321, 10
      %v474 = vadd.s32 %v322, 10
      %v475 = vadd.s32 %v323, 10
      %v476 = vadd.s32 %v324, 10
      %v477 = vadd.s32 %v325, 10
      %v478 = vadd.s32 %v326, 10
      %v479 = vadd.s32 %v327, 10
      %480 = vset.pattern.permute.xlu0 4
      %481 = vperm.xlu0 %480, %v461
      %v482 = vpop.permute.xlu0 %481
      %483 = vset.pattern.permute.xlu0 4
      %484 = vperm.xlu0 %483, %v462
      %v485 = vpop.permute.xlu0 %484
      %486 = vset.pattern.permute.xlu0 4
      %487 = vperm.xlu0 %486, %v463
      %v488 = vpop.permute.xlu0 %487
      %489 = vset.pattern.permute.xlu0 4
      %490 = vperm.xlu0 %489, %v464
      %v491 = vpop.permute.xlu0 %490
      %492 = vset.pattern.permute.xlu0 4
      %493 = vperm.xlu0 %492, %v465
      %v494 = vpop.permute.xlu0 %493
      %495 = vset.pattern.permute.xlu0 4
      %496 = vperm.xlu0 %495, %v466
      %v497 = vpop.permute.xlu0 %496
      %498 = vset.pattern.permute.xlu0 4
      %499 = vperm.xlu0 %498, %v467
      %v500 = vpop.permute.xlu0 %499
      %501 = vset.pattern.permute.xlu0 4
      %502 = vperm.xlu0 %501, %v468
      %v503 = vpop.permute.xlu0 %502
      %504 = vset.pattern.permute.xlu0 4
      %505 = vperm.xlu0 %504, %v469
      %v506 = vpop.permute.xlu0 %505
      %507 = vset.pattern.permute.xlu0 4
      %508 = vperm.xlu0 %507, %v470
      %v509 = vpop.permute.xlu0 %508
      %510 = vset.pattern.permute.xlu0 4
      %511 = vperm.xlu0 %510, %v471
      %v512 = vpop.permute.xlu0 %511
      %513 = vset.pattern.permute.xlu0 4
      %514 = vperm.xlu0 %513, %v472
      %v515 = vpop.permute.xlu0 %514
      %516 = vset.pattern.permute.xlu0 4
      %517 = vperm.xlu0 %516, %v473
      %v518 = vpop.permute.xlu0 %517
      %519 = vset.pattern.permute.xlu0 4
      %520 = vperm.xlu0 %519, %v474
      %v521 = vpop.permute.xlu0 %520
      %522 = vset.pattern.permute.xlu0 4
      %523 = vperm.xlu0 %522, %v475
      %v524 = vpop.permute.xlu0 %523
      %525 = vset.pattern.permute.xlu0 4
      %526 = vperm.xlu0 %525, %v476
      %v527 = vpop.permute.xlu0 %526
      %528 = vset.pattern.permute.xlu0 4
      %529 = vperm.xlu0 %528, %v477
      %v530 = vpop.permute.xlu0 %529
      %531 = vset.pattern.permute.xlu0 4
      %532 = vperm.xlu0 %531, %v478
      %v533 = vpop.permute.xlu0 %532
      %534 = vset.pattern.permute.xlu0 4
      %535 = vperm.xlu0 %534, %v479
      %v536 = vpop.permute.xlu0 %535
      %vm537 = vcmp.eq.s32.totalorder %v308, %v482
      %vm538 = vcmp.eq.s32.totalorder %v308, %v485
      %vm539 = vcmp.eq.s32.totalorder %v308, %v488
      %vm540 = vcmp.eq.s32.totalorder %v308, %v491
      %vm541 = vcmp.eq.s32.totalorder %v308, %v494
      %vm542 = vcmp.eq.s32.totalorder %v308, %v497
      %vm543 = vcmp.eq.s32.totalorder %v308, %v500
      %vm544 = vcmp.eq.s32.totalorder %v308, %v503
      %vm545 = vcmp.eq.s32.totalorder %v308, %v506
      %vm546 = vcmp.eq.s32.totalorder %v308, %v509
      %vm547 = vcmp.eq.s32.totalorder %v308, %v512
      %vm548 = vcmp.eq.s32.totalorder %v308, %v515
      %vm549 = vcmp.eq.s32.totalorder %v308, %v518
      %vm550 = vcmp.eq.s32.totalorder %v308, %v521
      %vm551 = vcmp.eq.s32.totalorder %v308, %v524
      %vm552 = vcmp.eq.s32.totalorder %v308, %v527
      %vm553 = vcmp.eq.s32.totalorder %v308, %v530
      %vm554 = vcmp.eq.s32.totalorder %v308, %v533
      %vm555 = vcmp.eq.s32.totalorder %v308, %v536
      %v556 = vsel %vm537, 1, 0
      %v557 = vsel %vm538, 1, 0
      %v558 = vsel %vm539, 1, 0
      %v559 = vsel %vm540, 1, 0
      %v560 = vsel %vm541, 1, 0
      %v561 = vsel %vm542, 1, 0
      %v562 = vsel %vm543, 1, 0
      %v563 = vsel %vm544, 1, 0
      %v564 = vsel %vm545, 1, 0
      %v565 = vsel %vm546, 1, 0
      %v566 = vsel %vm547, 1, 0
      %v567 = vsel %vm548, 1, 0
      %v568 = vsel %vm549, 1, 0
      %v569 = vsel %vm550, 1, 0
      %v570 = vsel %vm551, 1, 0
      %v571 = vsel %vm552, 1, 0
      %v572 = vsel %vm553, 1, 0
      %v573 = vsel %vm554, 1, 0
      %v574 = vsel %vm555, 1, 0
      %v575 = vcvt.s32.f32 %v556
      %v576 = vcvt.s32.f32 %v557
      %v577 = vcvt.s32.f32 %v558
      %v578 = vcvt.s32.f32 %v559
      %v579 = vcvt.s32.f32 %v560
      %v580 = vcvt.s32.f32 %v561
      %v581 = vcvt.s32.f32 %v562
      %v582 = vcvt.s32.f32 %v563
      %v583 = vcvt.s32.f32 %v564
      %v584 = vcvt.s32.f32 %v565
      %v585 = vcvt.s32.f32 %v566
      %v586 = vcvt.s32.f32 %v567
      %v587 = vcvt.s32.f32 %v568
      %v588 = vcvt.s32.f32 %v569
      %v589 = vcvt.s32.f32 %v570
      %v590 = vcvt.s32.f32 %v571
      %v591 = vcvt.s32.f32 %v572
      %v592 = vcvt.s32.f32 %v573
      %v593 = vcvt.s32.f32 %v574
      %v594 = vadd.f32 %v442, %v575
      %v595 = vadd.f32 %v443, %v576
      %v596 = vadd.f32 %v444, %v577
      %v597 = vadd.f32 %v445, %v578
      %v598 = vadd.f32 %v446, %v579
      %v599 = vadd.f32 %v447, %v580
      %v600 = vadd.f32 %v448, %v581
      %v601 = vadd.f32 %v449, %v582
      %v602 = vadd.f32 %v450, %v583
      %v603 = vadd.f32 %v451, %v584
      %v604 = vadd.f32 %v452, %v585
      %v605 = vadd.f32 %v453, %v586
      %v606 = vadd.f32 %v454, %v587
      %v607 = vadd.f32 %v455, %v588
      %v608 = vadd.f32 %v456, %v589
      %v609 = vadd.f32 %v457, %v590
      %v610 = vadd.f32 %v458, %v591
      %v611 = vadd.f32 %v459, %v592
      %v612 = vadd.f32 %v460, %v593
      %vm613 = vcmp.gt.s32.totalorder %v309, 0
      %vm614 = vcmp.gt.s32.totalorder %v310, 0
      %vm615 = vcmp.gt.s32.totalorder %v311, 0
      %vm616 = vcmp.gt.s32.totalorder %v312, 0
      %vm617 = vcmp.gt.s32.totalorder %v313, 0
      %vm618 = vcmp.gt.s32.totalorder %v314, 0
      %vm619 = vcmp.gt.s32.totalorder %v315, 0
      %vm620 = vcmp.gt.s32.totalorder %v316, 0
      %vm621 = vcmp.gt.s32.totalorder %v317, 0
      %vm622 = vcmp.gt.s32.totalorder %v318, 0
      %vm623 = vcmp.gt.s32.totalorder %v319, 0
      %vm624 = vcmp.gt.s32.totalorder %v320, 0
      %vm625 = vcmp.gt.s32.totalorder %v321, 0
      %vm626 = vcmp.gt.s32.totalorder %v322, 0
      %vm627 = vcmp.gt.s32.totalorder %v323, 0
      %vm628 = vcmp.gt.s32.totalorder %v324, 0
      %vm629 = vcmp.gt.s32.totalorder %v325, 0
      %vm630 = vcmp.gt.s32.totalorder %v326, 0
      %vm631 = vcmp.gt.s32.totalorder %v327, 0
      %v632 = vadd.s32 %v309, 20
      %v633 = vadd.s32 %v310, 20
      %v634 = vadd.s32 %v311, 20
      %v635 = vadd.s32 %v312, 20
      %v636 = vadd.s32 %v313, 20
      %v637 = vadd.s32 %v314, 20
      %v638 = vadd.s32 %v315, 20
      %v639 = vadd.s32 %v316, 20
      %v640 = vadd.s32 %v317, 20
      %v641 = vadd.s32 %v318, 20
      %v642 = vadd.s32 %v319, 20
      %v643 = vadd.s32 %v320, 20
      %v644 = vadd.s32 %v321, 20
      %v645 = vadd.s32 %v322, 20
      %v646 = vadd.s32 %v323, 20
      %v647 = vadd.s32 %v324, 20
      %v648 = vadd.s32 %v325, 20
      %v649 = vadd.s32 %v326, 20
      %v650 = vadd.s32 %v327, 20
      %651 = vset.pattern.permute.xlu0 5
      %652 = vperm.xlu0 %651, %v632
      %v653 = vpop.permute.xlu0 %652
      %654 = vset.pattern.permute.xlu0 5
      %655 = vperm.xlu0 %654, %v633
      %v656 = vpop.permute.xlu0 %655
      %657 = vset.pattern.permute.xlu0 5
      %658 = vperm.xlu0 %657, %v634
      %v659 = vpop.permute.xlu0 %658
      %660 = vset.pattern.permute.xlu0 5
      %661 = vperm.xlu0 %660, %v635
      %v662 = vpop.permute.xlu0 %661
      %663 = vset.pattern.permute.xlu0 5
      %664 = vperm.xlu0 %663, %v636
      %v665 = vpop.permute.xlu0 %664
      %666 = vset.pattern.permute.xlu0 5
      %667 = vperm.xlu0 %666, %v637
      %v668 = vpop.permute.xlu0 %667
      %669 = vset.pattern.permute.xlu0 5
      %670 = vperm.xlu0 %669, %v638
      %v671 = vpop.permute.xlu0 %670
      %672 = vset.pattern.permute.xlu0 5
      %673 = vperm.xlu0 %672, %v639
      %v674 = vpop.permute.xlu0 %673
      %675 = vset.pattern.permute.xlu0 5
      %676 = vperm.xlu0 %675, %v640
      %v677 = vpop.permute.xlu0 %676
      %678 = vset.pattern.permute.xlu0 5
      %679 = vperm.xlu0 %678, %v641
      %v680 = vpop.permute.xlu0 %679
      %681 = vset.pattern.permute.xlu0 5
      %682 = vperm.xlu0 %681, %v642
      %v683 = vpop.permute.xlu0 %682
      %684 = vset.pattern.permute.xlu0 5
      %685 = vperm.xlu0 %684, %v643
      %v686 = vpop.permute.xlu0 %685
      %687 = vset.pattern.permute.xlu0 5
      %688 = vperm.xlu0 %687, %v644
      %v689 = vpop.permute.xlu0 %688
      %690 = vset.pattern.permute.xlu0 5
      %691 = vperm.xlu0 %690, %v645
      %v692 = vpop.permute.xlu0 %691
      %693 = vset.pattern.permute.xlu0 5
      %694 = vperm.xlu0 %693, %v646
      %v695 = vpop.permute.xlu0 %694
      %696 = vset.pattern.permute.xlu0 5
      %697 = vperm.xlu0 %696, %v647
      %v698 = vpop.permute.xlu0 %697
      %699 = vset.pattern.permute.xlu0 5
      %700 = vperm.xlu0 %699, %v648
      %v701 = vpop.permute.xlu0 %700
      %702 = vset.pattern.permute.xlu0 5
      %703 = vperm.xlu0 %702, %v649
      %v704 = vpop.permute.xlu0 %703
      %705 = vset.pattern.permute.xlu0 5
      %706 = vperm.xlu0 %705, %v650
      %v707 = vpop.permute.xlu0 %706
      %vm708 = vcmp.eq.s32.totalorder %v308, %v653
      %vm709 = vcmp.eq.s32.totalorder %v308, %v656
      %vm710 = vcmp.eq.s32.totalorder %v308, %v659
      %vm711 = vcmp.eq.s32.totalorder %v308, %v662
      %vm712 = vcmp.eq.s32.totalorder %v308, %v665
      %vm713 = vcmp.eq.s32.totalorder %v308, %v668
      %vm714 = vcmp.eq.s32.totalorder %v308, %v671
      %vm715 = vcmp.eq.s32.totalorder %v308, %v674
      %vm716 = vcmp.eq.s32.totalorder %v308, %v677
      %vm717 = vcmp.eq.s32.totalorder %v308, %v680
      %vm718 = vcmp.eq.s32.totalorder %v308, %v683
      %vm719 = vcmp.eq.s32.totalorder %v308, %v686
      %vm720 = vcmp.eq.s32.totalorder %v308, %v689
      %vm721 = vcmp.eq.s32.totalorder %v308, %v692
      %vm722 = vcmp.eq.s32.totalorder %v308, %v695
      %vm723 = vcmp.eq.s32.totalorder %v308, %v698
      %vm724 = vcmp.eq.s32.totalorder %v308, %v701
      %vm725 = vcmp.eq.s32.totalorder %v308, %v704
      %vm726 = vcmp.eq.s32.totalorder %v308, %v707
      %v727 = vsel %vm613, 1, 0
      %v728 = vsel %vm614, 1, 0
      %v729 = vsel %vm615, 1, 0
      %v730 = vsel %vm616, 1, 0
      %v731 = vsel %vm617, 1, 0
      %v732 = vsel %vm618, 1, 0
      %v733 = vsel %vm619, 1, 0
      %v734 = vsel %vm620, 1, 0
      %v735 = vsel %vm621, 1, 0
      %v736 = vsel %vm622, 1, 0
      %v737 = vsel %vm623, 1, 0
      %v738 = vsel %vm624, 1, 0
      %v739 = vsel %vm625, 1, 0
      %v740 = vsel %vm626, 1, 0
      %v741 = vsel %vm627, 1, 0
      %v742 = vsel %vm628, 1, 0
      %v743 = vsel %vm629, 1, 0
      %v744 = vsel %vm630, 1, 0
      %v745 = vsel %vm631, 1, 0
      %746 = vset.pattern.permute.xlu0 5
      %747 = vperm.xlu0 %746, %v727
      %v748 = vpop.permute.xlu0 %747
      %749 = vset.pattern.permute.xlu0 5
      %750 = vperm.xlu0 %749, %v728
      %v751 = vpop.permute.xlu0 %750
      %752 = vset.pattern.permute.xlu0 5
      %753 = vperm.xlu0 %752, %v729
      %v754 = vpop.permute.xlu0 %753
      %755 = vset.pattern.permute.xlu0 5
      %756 = vperm.xlu0 %755, %v730
      %v757 = vpop.permute.xlu0 %756
      %758 = vset.pattern.permute.xlu0 5
      %759 = vperm.xlu0 %758, %v731
      %v760 = vpop.permute.xlu0 %759
      %761 = vset.pattern.permute.xlu0 5
      %762 = vperm.xlu0 %761, %v732
      %v763 = vpop.permute.xlu0 %762
      %764 = vset.pattern.permute.xlu0 5
      %765 = vperm.xlu0 %764, %v733
      %v766 = vpop.permute.xlu0 %765
      %767 = vset.pattern.permute.xlu0 5
      %768 = vperm.xlu0 %767, %v734
      %v769 = vpop.permute.xlu0 %768
      %770 = vset.pattern.permute.xlu0 5
      %771 = vperm.xlu0 %770, %v735
      %v772 = vpop.permute.xlu0 %771
      %773 = vset.pattern.permute.xlu0 5
      %774 = vperm.xlu0 %773, %v736
      %v775 = vpop.permute.xlu0 %774
      %776 = vset.pattern.permute.xlu0 5
      %777 = vperm.xlu0 %776, %v737
      %v778 = vpop.permute.xlu0 %777
      %779 = vset.pattern.permute.xlu0 5
      %780 = vperm.xlu0 %779, %v738
      %v781 = vpop.permute.xlu0 %780
      %782 = vset.pattern.permute.xlu0 5
      %783 = vperm.xlu0 %782, %v739
      %v784 = vpop.permute.xlu0 %783
      %785 = vset.pattern.permute.xlu0 5
      %786 = vperm.xlu0 %785, %v740
      %v787 = vpop.permute.xlu0 %786
      %788 = vset.pattern.permute.xlu0 5
      %789 = vperm.xlu0 %788, %v741
      %v790 = vpop.permute.xlu0 %789
      %791 = vset.pattern.permute.xlu0 5
      %792 = vperm.xlu0 %791, %v742
      %v793 = vpop.permute.xlu0 %792
      %794 = vset.pattern.permute.xlu0 5
      %795 = vperm.xlu0 %794, %v743
      %v796 = vpop.permute.xlu0 %795
      %797 = vset.pattern.permute.xlu0 5
      %798 = vperm.xlu0 %797, %v744
      %v799 = vpop.permute.xlu0 %798
      %800 = vset.pattern.permute.xlu0 5
      %801 = vperm.xlu0 %800, %v745
      %v802 = vpop.permute.xlu0 %801
      %vm803 = vcmp.eq.s32.totalorder %v748, 1
      %vm804 = vcmp.eq.s32.totalorder %v751, 1
      %vm805 = vcmp.eq.s32.totalorder %v754, 1
      %vm806 = vcmp.eq.s32.totalorder %v757, 1
      %vm807 = vcmp.eq.s32.totalorder %v760, 1
      %vm808 = vcmp.eq.s32.totalorder %v763, 1
      %vm809 = vcmp.eq.s32.totalorder %v766, 1
      %vm810 = vcmp.eq.s32.totalorder %v769, 1
      %vm811 = vcmp.eq.s32.totalorder %v772, 1
      %vm812 = vcmp.eq.s32.totalorder %v775, 1
      %vm813 = vcmp.eq.s32.totalorder %v778, 1
      %vm814 = vcmp.eq.s32.totalorder %v781, 1
      %vm815 = vcmp.eq.s32.totalorder %v784, 1
      %vm816 = vcmp.eq.s32.totalorder %v787, 1
      %vm817 = vcmp.eq.s32.totalorder %v790, 1
      %vm818 = vcmp.eq.s32.totalorder %v793, 1
      %vm819 = vcmp.eq.s32.totalorder %v796, 1
      %vm820 = vcmp.eq.s32.totalorder %v799, 1
      %vm821 = vcmp.eq.s32.totalorder %v802, 1
      %vm822 = vmand %vm708, %vm803
      %vm823 = vmand %vm709, %vm804
      %vm824 = vmand %vm710, %vm805
      %vm825 = vmand %vm711, %vm806
      %vm826 = vmand %vm712, %vm807
      %vm827 = vmand %vm713, %vm808
      %vm828 = vmand %vm714, %vm809
      %vm829 = vmand %vm715, %vm810
      %vm830 = vmand %vm716, %vm811
      %vm831 = vmand %vm717, %vm812
      %vm832 = vmand %vm718, %vm813
      %vm833 = vmand %vm719, %vm814
      %vm834 = vmand %vm720, %vm815
      %vm835 = vmand %vm721, %vm816
      %vm836 = vmand %vm722, %vm817
      %vm837 = vmand %vm723, %vm818
      %vm838 = vmand %vm724, %vm819
      %vm839 = vmand %vm725, %vm820
      %vm840 = vmand %vm726, %vm821
      %v841 = vsel %vm822, 1, 0
      %v842 = vsel %vm823, 1, 0
      %v843 = vsel %vm824, 1, 0
      %v844 = vsel %vm825, 1, 0
      %v845 = vsel %vm826, 1, 0
      %v846 = vsel %vm827, 1, 0
      %v847 = vsel %vm828, 1, 0
      %v848 = vsel %vm829, 1, 0
      %v849 = vsel %vm830, 1, 0
      %v850 = vsel %vm831, 1, 0
      %v851 = vsel %vm832, 1, 0
      %v852 = vsel %vm833, 1, 0
      %v853 = vsel %vm834, 1, 0
      %v854 = vsel %vm835, 1, 0
      %v855 = vsel %vm836, 1, 0
      %v856 = vsel %vm837, 1, 0
      %v857 = vsel %vm838, 1, 0
      %v858 = vsel %vm839, 1, 0
      %v859 = vsel %vm840, 1, 0
      %v860 = vcvt.s32.f32 %v841
      %v861 = vcvt.s32.f32 %v842
      %v862 = vcvt.s32.f32 %v843
      %v863 = vcvt.s32.f32 %v844
      %v864 = vcvt.s32.f32 %v845
      %v865 = vcvt.s32.f32 %v846
      %v866 = vcvt.s32.f32 %v847
      %v867 = vcvt.s32.f32 %v848
      %v868 = vcvt.s32.f32 %v849
      %v869 = vcvt.s32.f32 %v850
      %v870 = vcvt.s32.f32 %v851
      %v871 = vcvt.s32.f32 %v852
      %v872 = vcvt.s32.f32 %v853
      %v873 = vcvt.s32.f32 %v854
      %v874 = vcvt.s32.f32 %v855
      %v875 = vcvt.s32.f32 %v856
      %v876 = vcvt.s32.f32 %v857
      %v877 = vcvt.s32.f32 %v858
      %v878 = vcvt.s32.f32 %v859
      %v879 = vadd.f32 %v860, 0.0
      %v880 = vadd.f32 %v861, 0.0
      %v881 = vadd.f32 %v862, 0.0
      %v882 = vadd.f32 %v863, 0.0
      %v883 = vadd.f32 %v864, 0.0
      %v884 = vadd.f32 %v865, 0.0
      %v885 = vadd.f32 %v866, 0.0
      %v886 = vadd.f32 %v867, 0.0
      %v887 = vadd.f32 %v868, 0.0
      %v888 = vadd.f32 %v869, 0.0
      %v889 = vadd.f32 %v870, 0.0
      %v890 = vadd.f32 %v871, 0.0
      %v891 = vadd.f32 %v872, 0.0
      %v892 = vadd.f32 %v873, 0.0
      %v893 = vadd.f32 %v874, 0.0
      %v894 = vadd.f32 %v875, 0.0
      %v895 = vadd.f32 %v876, 0.0
      %v896 = vadd.f32 %v877, 0.0
      %v897 = vadd.f32 %v878, 0.0
      %v898 = vcvt.s32.f32 %v727
      %v899 = vcvt.s32.f32 %v728
      %v900 = vcvt.s32.f32 %v729
      %v901 = vcvt.s32.f32 %v730
      %v902 = vcvt.s32.f32 %v731
      %v903 = vcvt.s32.f32 %v732
      %v904 = vcvt.s32.f32 %v733
      %v905 = vcvt.s32.f32 %v734
      %v906 = vcvt.s32.f32 %v735
      %v907 = vcvt.s32.f32 %v736
      %v908 = vcvt.s32.f32 %v737
      %v909 = vcvt.s32.f32 %v738
      %v910 = vcvt.s32.f32 %v739
      %v911 = vcvt.s32.f32 %v740
      %v912 = vcvt.s32.f32 %v741
      %v913 = vcvt.s32.f32 %v742
      %v914 = vcvt.s32.f32 %v743
      %v915 = vcvt.s32.f32 %v744
      %v916 = vcvt.s32.f32 %v745
      %v917 = vadd.f32 %v898, 0.0
      %v918 = vadd.f32 %v899, 0.0
      %v919 = vadd.f32 %v900, 0.0
      %v920 = vadd.f32 %v901, 0.0
      %v921 = vadd.f32 %v902, 0.0
      %v922 = vadd.f32 %v903, 0.0
      %v923 = vadd.f32 %v904, 0.0
      %v924 = vadd.f32 %v905, 0.0
      %v925 = vadd.f32 %v906, 0.0
      %v926 = vadd.f32 %v907, 0.0
      %v927 = vadd.f32 %v908, 0.0
      %v928 = vadd.f32 %v909, 0.0
      %v929 = vadd.f32 %v910, 0.0
      %v930 = vadd.f32 %v911, 0.0
      %v931 = vadd.f32 %v912, 0.0
      %v932 = vadd.f32 %v913, 0.0
      %v933 = vadd.f32 %v914, 0.0
      %v934 = vadd.f32 %v915, 0.0
      %v935 = vadd.f32 %v916, 0.0
      %936 = vset.pattern.permute.xlu0 6
      %937 = vperm.xlu0 %936, %v632
      %v938 = vpop.permute.xlu0 %937
      %939 = vset.pattern.permute.xlu0 6
      %940 = vperm.xlu0 %939, %v633
      %v941 = vpop.permute.xlu0 %940
      %942 = vset.pattern.permute.xlu0 6
      %943 = vperm.xlu0 %942, %v634
      %v944 = vpop.permute.xlu0 %943
      %945 = vset.pattern.permute.xlu0 6
      %946 = vperm.xlu0 %945, %v635
      %v947 = vpop.permute.xlu0 %946
      %948 = vset.pattern.permute.xlu0 6
      %949 = vperm.xlu0 %948, %v636
      %v950 = vpop.permute.xlu0 %949
      %951 = vset.pattern.permute.xlu0 6
      %952 = vperm.xlu0 %951, %v637
      %v953 = vpop.permute.xlu0 %952
      %954 = vset.pattern.permute.xlu0 6
      %955 = vperm.xlu0 %954, %v638
      %v956 = vpop.permute.xlu0 %955
      %957 = vset.pattern.permute.xlu0 6
      %958 = vperm.xlu0 %957, %v639
      %v959 = vpop.permute.xlu0 %958
      %960 = vset.pattern.permute.xlu0 6
      %961 = vperm.xlu0 %960, %v640
      %v962 = vpop.permute.xlu0 %961
      %963 = vset.pattern.permute.xlu0 6
      %964 = vperm.xlu0 %963, %v641
      %v965 = vpop.permute.xlu0 %964
      %966 = vset.pattern.permute.xlu0 6
      %967 = vperm.xlu0 %966, %v642
      %v968 = vpop.permute.xlu0 %967
      %969 = vset.pattern.permute.xlu0 6
      %970 = vperm.xlu0 %969, %v643
      %v971 = vpop.permute.xlu0 %970
      %972 = vset.pattern.permute.xlu0 6
      %973 = vperm.xlu0 %972, %v644
      %v974 = vpop.permute.xlu0 %973
      %975 = vset.pattern.permute.xlu0 6
      %976 = vperm.xlu0 %975, %v645
      %v977 = vpop.permute.xlu0 %976
      %978 = vset.pattern.permute.xlu0 6
      %979 = vperm.xlu0 %978, %v646
      %v980 = vpop.permute.xlu0 %979
      %981 = vset.pattern.permute.xlu0 6
      %982 = vperm.xlu0 %981, %v647
      %v983 = vpop.permute.xlu0 %982
      %984 = vset.pattern.permute.xlu0 6
      %985 = vperm.xlu0 %984, %v648
      %v986 = vpop.permute.xlu0 %985
      %987 = vset.pattern.permute.xlu0 6
      %988 = vperm.xlu0 %987, %v649
      %v989 = vpop.permute.xlu0 %988
      %990 = vset.pattern.permute.xlu0 6
      %991 = vperm.xlu0 %990, %v650
      %v992 = vpop.permute.xlu0 %991
      %vm993 = vcmp.eq.s32.totalorder %v308, %v938
      %vm994 = vcmp.eq.s32.totalorder %v308, %v941
      %vm995 = vcmp.eq.s32.totalorder %v308, %v944
      %vm996 = vcmp.eq.s32.totalorder %v308, %v947
      %vm997 = vcmp.eq.s32.totalorder %v308, %v950
      %vm998 = vcmp.eq.s32.totalorder %v308, %v953
      %vm999 = vcmp.eq.s32.totalorder %v308, %v956
      %vm1000 = vcmp.eq.s32.totalorder %v308, %v959
      %vm1001 = vcmp.eq.s32.totalorder %v308, %v962
      %vm1002 = vcmp.eq.s32.totalorder %v308, %v965
      %vm1003 = vcmp.eq.s32.totalorder %v308, %v968
      %vm1004 = vcmp.eq.s32.totalorder %v308, %v971
      %vm1005 = vcmp.eq.s32.totalorder %v308, %v974
      %vm1006 = vcmp.eq.s32.totalorder %v308, %v977
      %vm1007 = vcmp.eq.s32.totalorder %v308, %v980
      %vm1008 = vcmp.eq.s32.totalorder %v308, %v983
      %vm1009 = vcmp.eq.s32.totalorder %v308, %v986
      %vm1010 = vcmp.eq.s32.totalorder %v308, %v989
      %vm1011 = vcmp.eq.s32.totalorder %v308, %v992
      %1012 = vset.pattern.permute.xlu0 6
      %1013 = vperm.xlu0 %1012, %v727
      %v1014 = vpop.permute.xlu0 %1013
      %1015 = vset.pattern.permute.xlu0 6
      %1016 = vperm.xlu0 %1015, %v728
      %v1017 = vpop.permute.xlu0 %1016
      %1018 = vset.pattern.permute.xlu0 6
      %1019 = vperm.xlu0 %1018, %v729
      %v1020 = vpop.permute.xlu0 %1019
      %1021 = vset.pattern.permute.xlu0 6
      %1022 = vperm.xlu0 %1021, %v730
      %v1023 = vpop.permute.xlu0 %1022
      %1024 = vset.pattern.permute.xlu0 6
      %1025 = vperm.xlu0 %1024, %v731
      %v1026 = vpop.permute.xlu0 %1025
      %1027 = vset.pattern.permute.xlu0 6
      %1028 = vperm.xlu0 %1027, %v732
      %v1029 = vpop.permute.xlu0 %1028
      %1030 = vset.pattern.permute.xlu0 6
      %1031 = vperm.xlu0 %1030, %v733
      %v1032 = vpop.permute.xlu0 %1031
      %1033 = vset.pattern.permute.xlu0 6
      %1034 = vperm.xlu0 %1033, %v734
      %v1035 = vpop.permute.xlu0 %1034
      %1036 = vset.pattern.permute.xlu0 6
      %1037 = vperm.xlu0 %1036, %v735
      %v1038 = vpop.permute.xlu0 %1037
      %1039 = vset.pattern.permute.xlu0 6
      %1040 = vperm.xlu0 %1039, %v736
      %v1041 = vpop.permute.xlu0 %1040
      %1042 = vset.pattern.permute.xlu0 6
      %1043 = vperm.xlu0 %1042, %v737
      %v1044 = vpop.permute.xlu0 %1043
      %1045 = vset.pattern.permute.xlu0 6
      %1046 = vperm.xlu0 %1045, %v738
      %v1047 = vpop.permute.xlu0 %1046
      %1048 = vset.pattern.permute.xlu0 6
      %1049 = vperm.xlu0 %1048, %v739
      %v1050 = vpop.permute.xlu0 %1049
      %1051 = vset.pattern.permute.xlu0 6
      %1052 = vperm.xlu0 %1051, %v740
      %v1053 = vpop.permute.xlu0 %1052
      %1054 = vset.pattern.permute.xlu0 6
      %1055 = vperm.xlu0 %1054, %v741
      %v1056 = vpop.permute.xlu0 %1055
      %1057 = vset.pattern.permute.xlu0 6
      %1058 = vperm.xlu0 %1057, %v742
      %v1059 = vpop.permute.xlu0 %1058
      %1060 = vset.pattern.permute.xlu0 6
      %1061 = vperm.xlu0 %1060, %v743
      %v1062 = vpop.permute.xlu0 %1061
      %1063 = vset.pattern.permute.xlu0 6
      %1064 = vperm.xlu0 %1063, %v744
      %v1065 = vpop.permute.xlu0 %1064
      %1066 = vset.pattern.permute.xlu0 6
      %1067 = vperm.xlu0 %1066, %v745
      %v1068 = vpop.permute.xlu0 %1067
      %vm1069 = vcmp.eq.s32.totalorder %v1014, 1
      %vm1070 = vcmp.eq.s32.totalorder %v1017, 1
      %vm1071 = vcmp.eq.s32.totalorder %v1020, 1
      %vm1072 = vcmp.eq.s32.totalorder %v1023, 1
      %vm1073 = vcmp.eq.s32.totalorder %v1026, 1
      %vm1074 = vcmp.eq.s32.totalorder %v1029, 1
      %vm1075 = vcmp.eq.s32.totalorder %v1032, 1
      %vm1076 = vcmp.eq.s32.totalorder %v1035, 1
      %vm1077 = vcmp.eq.s32.totalorder %v1038, 1
      %vm1078 = vcmp.eq.s32.totalorder %v1041, 1
      %vm1079 = vcmp.eq.s32.totalorder %v1044, 1
      %vm1080 = vcmp.eq.s32.totalorder %v1047, 1
      %vm1081 = vcmp.eq.s32.totalorder %v1050, 1
      %vm1082 = vcmp.eq.s32.totalorder %v1053, 1
      %vm1083 = vcmp.eq.s32.totalorder %v1056, 1
      %vm1084 = vcmp.eq.s32.totalorder %v1059, 1
      %vm1085 = vcmp.eq.s32.totalorder %v1062, 1
      %vm1086 = vcmp.eq.s32.totalorder %v1065, 1
      %vm1087 = vcmp.eq.s32.totalorder %v1068, 1
      %vm1088 = vmand %vm993, %vm1069
      %vm1089 = vmand %vm994, %vm1070
      %vm1090 = vmand %vm995, %vm1071
      %vm1091 = vmand %vm996, %vm1072
      %vm1092 = vmand %vm997, %vm1073
      %vm1093 = vmand %vm998, %vm1074
      %vm1094 = vmand %vm999, %vm1075
      %vm1095 = vmand %vm1000, %vm1076
      %vm1096 = vmand %vm1001, %vm1077
      %vm1097 = vmand %vm1002, %vm1078
      %vm1098 = vmand %vm1003, %vm1079
      %vm1099 = vmand %vm1004, %vm1080
      %vm1100 = vmand %vm1005, %vm1081
      %vm1101 = vmand %vm1006, %vm1082
      %vm1102 = vmand %vm1007, %vm1083
      %vm1103 = vmand %vm1008, %vm1084
      %vm1104 = vmand %vm1009, %vm1085
      %vm1105 = vmand %vm1010, %vm1086
      %vm1106 = vmand %vm1011, %vm1087
      %v1107 = vsel %vm1088, 1, 0
      %v1108 = vsel %vm1089, 1, 0
      %v1109 = vsel %vm1090, 1, 0
      %v1110 = vsel %vm1091, 1, 0
      %v1111 = vsel %vm1092, 1, 0
      %v1112 = vsel %vm1093, 1, 0
      %v1113 = vsel %vm1094, 1, 0
      %v1114 = vsel %vm1095, 1, 0
      %v1115 = vsel %vm1096, 1, 0
      %v1116 = vsel %vm1097, 1, 0
      %v1117 = vsel %vm1098, 1, 0
      %v1118 = vsel %vm1099, 1, 0
      %v1119 = vsel %vm1100, 1, 0
      %v1120 = vsel %vm1101, 1, 0
      %v1121 = vsel %vm1102, 1, 0
      %v1122 = vsel %vm1103, 1, 0
      %v1123 = vsel %vm1104, 1, 0
      %v1124 = vsel %vm1105, 1, 0
      %v1125 = vsel %vm1106, 1, 0
      %v1126 = vcvt.s32.f32 %v1107
      %v1127 = vcvt.s32.f32 %v1108
      %v1128 = vcvt.s32.f32 %v1109
      %v1129 = vcvt.s32.f32 %v1110
      %v1130 = vcvt.s32.f32 %v1111
      %v1131 = vcvt.s32.f32 %v1112
      %v1132 = vcvt.s32.f32 %v1113
      %v1133 = vcvt.s32.f32 %v1114
      %v1134 = vcvt.s32.f32 %v1115
      %v1135 = vcvt.s32.f32 %v1116
      %v1136 = vcvt.s32.f32 %v1117
      %v1137 = vcvt.s32.f32 %v1118
      %v1138 = vcvt.s32.f32 %v1119
      %v1139 = vcvt.s32.f32 %v1120
      %v1140 = vcvt.s32.f32 %v1121
      %v1141 = vcvt.s32.f32 %v1122
      %v1142 = vcvt.s32.f32 %v1123
      %v1143 = vcvt.s32.f32 %v1124
      %v1144 = vcvt.s32.f32 %v1125
      %v1145 = vadd.f32 %v879, %v1126
      %v1146 = vadd.f32 %v880, %v1127
      %v1147 = vadd.f32 %v881, %v1128
      %v1148 = vadd.f32 %v882, %v1129
      %v1149 = vadd.f32 %v883, %v1130
      %v1150 = vadd.f32 %v884, %v1131
      %v1151 = vadd.f32 %v885, %v1132
      %v1152 = vadd.f32 %v886, %v1133
      %v1153 = vadd.f32 %v887, %v1134
      %v1154 = vadd.f32 %v888, %v1135
      %v1155 = vadd.f32 %v889, %v1136
      %v1156 = vadd.f32 %v890, %v1137
      %v1157 = vadd.f32 %v891, %v1138
      %v1158 = vadd.f32 %v892, %v1139
      %v1159 = vadd.f32 %v893, %v1140
      %v1160 = vadd.f32 %v894, %v1141
      %v1161 = vadd.f32 %v895, %v1142
      %v1162 = vadd.f32 %v896, %v1143
      %v1163 = vadd.f32 %v897, %v1144
      %1183 = vrot.lane.b32.xlu0 %v898, 127
      %v1184 = vpop.permute.xlu0 %1183
      %1185 = vrot.lane.b32.xlu0 %v899, 127
      %v1186 = vpop.permute.xlu0 %1185
      %1187 = vrot.lane.b32.xlu0 %v900, 127
      %v1188 = vpop.permute.xlu0 %1187
      %1189 = vrot.lane.b32.xlu0 %v901, 127
      %v1190 = vpop.permute.xlu0 %1189
      %1191 = vrot.lane.b32.xlu0 %v902, 127
      %v1192 = vpop.permute.xlu0 %1191
      %1193 = vrot.lane.b32.xlu0 %v903, 127
      %v1194 = vpop.permute.xlu0 %1193
      %1195 = vrot.lane.b32.xlu0 %v904, 127
      %v1196 = vpop.permute.xlu0 %1195
      %1197 = vrot.lane.b32.xlu0 %v905, 127
      %v1198 = vpop.permute.xlu0 %1197
      %1199 = vrot.lane.b32.xlu0 %v906, 127
      %v1200 = vpop.permute.xlu0 %1199
      %1201 = vrot.lane.b32.xlu0 %v907, 127
      %v1202 = vpop.permute.xlu0 %1201
      %1203 = vrot.lane.b32.xlu0 %v908, 127
      %v1204 = vpop.permute.xlu0 %1203
      %1205 = vrot.lane.b32.xlu0 %v909, 127
      %v1206 = vpop.permute.xlu0 %1205
      %1207 = vrot.lane.b32.xlu0 %v910, 127
      %v1208 = vpop.permute.xlu0 %1207
      %1209 = vrot.lane.b32.xlu0 %v911, 127
      %v1210 = vpop.permute.xlu0 %1209
      %1211 = vrot.lane.b32.xlu0 %v912, 127
      %v1212 = vpop.permute.xlu0 %1211
      %1213 = vrot.lane.b32.xlu0 %v913, 127
      %v1214 = vpop.permute.xlu0 %1213
      %1215 = vrot.lane.b32.xlu0 %v914, 127
      %v1216 = vpop.permute.xlu0 %1215
      %1217 = vrot.lane.b32.xlu0 %v915, 127
      %v1218 = vpop.permute.xlu0 %1217
      %1219 = vrot.lane.b32.xlu0 %v916, 127
      %v1220 = vpop.permute.xlu0 %1219
      %v1240 = vadd.f32 %v917, %v1184
      %v1241 = vadd.f32 %v918, %v1186
      %v1242 = vadd.f32 %v919, %v1188
      %v1243 = vadd.f32 %v920, %v1190
      %v1244 = vadd.f32 %v921, %v1192
      %v1245 = vadd.f32 %v922, %v1194
      %v1246 = vadd.f32 %v923, %v1196
      %v1247 = vadd.f32 %v924, %v1198
      %v1248 = vadd.f32 %v925, %v1200
      %v1249 = vadd.f32 %v926, %v1202
      %v1250 = vadd.f32 %v927, %v1204
      %v1251 = vadd.f32 %v928, %v1206
      %v1252 = vadd.f32 %v929, %v1208
      %v1253 = vadd.f32 %v930, %v1210
      %v1254 = vadd.f32 %v931, %v1212
      %v1255 = vadd.f32 %v932, %v1214
      %v1256 = vadd.f32 %v933, %v1216
      %v1257 = vadd.f32 %v934, %v1218
      %v1258 = vadd.f32 %v935, %v1220
      %1259 = vset.pattern.permute.xlu0 7
      %1260 = vperm.xlu0 %1259, %v632
      %v1261 = vpop.permute.xlu0 %1260
      %1262 = vset.pattern.permute.xlu0 7
      %1263 = vperm.xlu0 %1262, %v633
      %v1264 = vpop.permute.xlu0 %1263
      %1265 = vset.pattern.permute.xlu0 7
      %1266 = vperm.xlu0 %1265, %v634
      %v1267 = vpop.permute.xlu0 %1266
      %1268 = vset.pattern.permute.xlu0 7
      %1269 = vperm.xlu0 %1268, %v635
      %v1270 = vpop.permute.xlu0 %1269
      %1271 = vset.pattern.permute.xlu0 7
      %1272 = vperm.xlu0 %1271, %v636
      %v1273 = vpop.permute.xlu0 %1272
      %1274 = vset.pattern.permute.xlu0 7
      %1275 = vperm.xlu0 %1274, %v637
      %v1276 = vpop.permute.xlu0 %1275
      %1277 = vset.pattern.permute.xlu0 7
      %1278 = vperm.xlu0 %1277, %v638
      %v1279 = vpop.permute.xlu0 %1278
      %1280 = vset.pattern.permute.xlu0 7
      %1281 = vperm.xlu0 %1280, %v639
      %v1282 = vpop.permute.xlu0 %1281
      %1283 = vset.pattern.permute.xlu0 7
      %1284 = vperm.xlu0 %1283, %v640
      %v1285 = vpop.permute.xlu0 %1284
      %1286 = vset.pattern.permute.xlu0 7
      %1287 = vperm.xlu0 %1286, %v641
      %v1288 = vpop.permute.xlu0 %1287
      %1289 = vset.pattern.permute.xlu0 7
      %1290 = vperm.xlu0 %1289, %v642
      %v1291 = vpop.permute.xlu0 %1290
      %1292 = vset.pattern.permute.xlu0 7
      %1293 = vperm.xlu0 %1292, %v643
      %v1294 = vpop.permute.xlu0 %1293
      %1295 = vset.pattern.permute.xlu0 7
      %1296 = vperm.xlu0 %1295, %v644
      %v1297 = vpop.permute.xlu0 %1296
      %1298 = vset.pattern.permute.xlu0 7
      %1299 = vperm.xlu0 %1298, %v645
      %v1300 = vpop.permute.xlu0 %1299
      %1301 = vset.pattern.permute.xlu0 7
      %1302 = vperm.xlu0 %1301, %v646
      %v1303 = vpop.permute.xlu0 %1302
      %1304 = vset.pattern.permute.xlu0 7
      %1305 = vperm.xlu0 %1304, %v647
      %v1306 = vpop.permute.xlu0 %1305
      %1307 = vset.pattern.permute.xlu0 7
      %1308 = vperm.xlu0 %1307, %v648
      %v1309 = vpop.permute.xlu0 %1308
      %1310 = vset.pattern.permute.xlu0 7
      %1311 = vperm.xlu0 %1310, %v649
      %v1312 = vpop.permute.xlu0 %1311
      %1313 = vset.pattern.permute.xlu0 7
      %1314 = vperm.xlu0 %1313, %v650
      %v1315 = vpop.permute.xlu0 %1314
      %vm1316 = vcmp.eq.s32.totalorder %v308, %v1261
      %vm1317 = vcmp.eq.s32.totalorder %v308, %v1264
      %vm1318 = vcmp.eq.s32.totalorder %v308, %v1267
      %vm1319 = vcmp.eq.s32.totalorder %v308, %v1270
      %vm1320 = vcmp.eq.s32.totalorder %v308, %v1273
      %vm1321 = vcmp.eq.s32.totalorder %v308, %v1276
      %vm1322 = vcmp.eq.s32.totalorder %v308, %v1279
      %vm1323 = vcmp.eq.s32.totalorder %v308, %v1282
      %vm1324 = vcmp.eq.s32.totalorder %v308, %v1285
      %vm1325 = vcmp.eq.s32.totalorder %v308, %v1288
      %vm1326 = vcmp.eq.s32.totalorder %v308, %v1291
      %vm1327 = vcmp.eq.s32.totalorder %v308, %v1294
      %vm1328 = vcmp.eq.s32.totalorder %v308, %v1297
      %vm1329 = vcmp.eq.s32.totalorder %v308, %v1300
      %vm1330 = vcmp.eq.s32.totalorder %v308, %v1303
      %vm1331 = vcmp.eq.s32.totalorder %v308, %v1306
      %vm1332 = vcmp.eq.s32.totalorder %v308, %v1309
      %vm1333 = vcmp.eq.s32.totalorder %v308, %v1312
      %vm1334 = vcmp.eq.s32.totalorder %v308, %v1315
      %1335 = vset.pattern.permute.xlu0 7
      %1336 = vperm.xlu0 %1335, %v727
      %v1337 = vpop.permute.xlu0 %1336
      %1338 = vset.pattern.permute.xlu0 7
      %1339 = vperm.xlu0 %1338, %v728
      %v1340 = vpop.permute.xlu0 %1339
      %1341 = vset.pattern.permute.xlu0 7
      %1342 = vperm.xlu0 %1341, %v729
      %v1343 = vpop.permute.xlu0 %1342
      %1344 = vset.pattern.permute.xlu0 7
      %1345 = vperm.xlu0 %1344, %v730
      %v1346 = vpop.permute.xlu0 %1345
      %1347 = vset.pattern.permute.xlu0 7
      %1348 = vperm.xlu0 %1347, %v731
      %v1349 = vpop.permute.xlu0 %1348
      %1350 = vset.pattern.permute.xlu0 7
      %1351 = vperm.xlu0 %1350, %v732
      %v1352 = vpop.permute.xlu0 %1351
      %1353 = vset.pattern.permute.xlu0 7
      %1354 = vperm.xlu0 %1353, %v733
      %v1355 = vpop.permute.xlu0 %1354
      %1356 = vset.pattern.permute.xlu0 7
      %1357 = vperm.xlu0 %1356, %v734
      %v1358 = vpop.permute.xlu0 %1357
      %1359 = vset.pattern.permute.xlu0 7
      %1360 = vperm.xlu0 %1359, %v735
      %v1361 = vpop.permute.xlu0 %1360
      %1362 = vset.pattern.permute.xlu0 7
      %1363 = vperm.xlu0 %1362, %v736
      %v1364 = vpop.permute.xlu0 %1363
      %1365 = vset.pattern.permute.xlu0 7
      %1366 = vperm.xlu0 %1365, %v737
      %v1367 = vpop.permute.xlu0 %1366
      %1368 = vset.pattern.permute.xlu0 7
      %1369 = vperm.xlu0 %1368, %v738
      %v1370 = vpop.permute.xlu0 %1369
      %1371 = vset.pattern.permute.xlu0 7
      %1372 = vperm.xlu0 %1371, %v739
      %v1373 = vpop.permute.xlu0 %1372
      %1374 = vset.pattern.permute.xlu0 7
      %1375 = vperm.xlu0 %1374, %v740
      %v1376 = vpop.permute.xlu0 %1375
      %1377 = vset.pattern.permute.xlu0 7
      %1378 = vperm.xlu0 %1377, %v741
      %v1379 = vpop.permute.xlu0 %1378
      %1380 = vset.pattern.permute.xlu0 7
      %1381 = vperm.xlu0 %1380, %v742
      %v1382 = vpop.permute.xlu0 %1381
      %1383 = vset.pattern.permute.xlu0 7
      %1384 = vperm.xlu0 %1383, %v743
      %v1385 = vpop.permute.xlu0 %1384
      %1386 = vset.pattern.permute.xlu0 7
      %1387 = vperm.xlu0 %1386, %v744
      %v1388 = vpop.permute.xlu0 %1387
      %1389 = vset.pattern.permute.xlu0 7
      %1390 = vperm.xlu0 %1389, %v745
      %v1391 = vpop.permute.xlu0 %1390
      %vm1392 = vcmp.eq.s32.totalorder %v1337, 1
      %vm1393 = vcmp.eq.s32.totalorder %v1340, 1
      %vm1394 = vcmp.eq.s32.totalorder %v1343, 1
      %vm1395 = vcmp.eq.s32.totalorder %v1346, 1
      %vm1396 = vcmp.eq.s32.totalorder %v1349, 1
      %vm1397 = vcmp.eq.s32.totalorder %v1352, 1
      %vm1398 = vcmp.eq.s32.totalorder %v1355, 1
      %vm1399 = vcmp.eq.s32.totalorder %v1358, 1
      %vm1400 = vcmp.eq.s32.totalorder %v1361, 1
      %vm1401 = vcmp.eq.s32.totalorder %v1364, 1
      %vm1402 = vcmp.eq.s32.totalorder %v1367, 1
      %vm1403 = vcmp.eq.s32.totalorder %v1370, 1
      %vm1404 = vcmp.eq.s32.totalorder %v1373, 1
      %vm1405 = vcmp.eq.s32.totalorder %v1376, 1
      %vm1406 = vcmp.eq.s32.totalorder %v1379, 1
      %vm1407 = vcmp.eq.s32.totalorder %v1382, 1
      %vm1408 = vcmp.eq.s32.totalorder %v1385, 1
      %vm1409 = vcmp.eq.s32.totalorder %v1388, 1
      %vm1410 = vcmp.eq.s32.totalorder %v1391, 1
      %vm1411 = vmand %vm1316, %vm1392
      %vm1412 = vmand %vm1317, %vm1393
      %vm1413 = vmand %vm1318, %vm1394
      %vm1414 = vmand %vm1319, %vm1395
      %vm1415 = vmand %vm1320, %vm1396
      %vm1416 = vmand %vm1321, %vm1397
      %vm1417 = vmand %vm1322, %vm1398
      %vm1418 = vmand %vm1323, %vm1399
      %vm1419 = vmand %vm1324, %vm1400
      %vm1420 = vmand %vm1325, %vm1401
      %vm1421 = vmand %vm1326, %vm1402
      %vm1422 = vmand %vm1327, %vm1403
      %vm1423 = vmand %vm1328, %vm1404
      %vm1424 = vmand %vm1329, %vm1405
      %vm1425 = vmand %vm1330, %vm1406
      %vm1426 = vmand %vm1331, %vm1407
      %vm1427 = vmand %vm1332, %vm1408
      %vm1428 = vmand %vm1333, %vm1409
      %vm1429 = vmand %vm1334, %vm1410
      %v1430 = vsel %vm1411, 1, 0
      %v1431 = vsel %vm1412, 1, 0
      %v1432 = vsel %vm1413, 1, 0
      %v1433 = vsel %vm1414, 1, 0
      %v1434 = vsel %vm1415, 1, 0
      %v1435 = vsel %vm1416, 1, 0
      %v1436 = vsel %vm1417, 1, 0
      %v1437 = vsel %vm1418, 1, 0
      %v1438 = vsel %vm1419, 1, 0
      %v1439 = vsel %vm1420, 1, 0
      %v1440 = vsel %vm1421, 1, 0
      %v1441 = vsel %vm1422, 1, 0
      %v1442 = vsel %vm1423, 1, 0
      %v1443 = vsel %vm1424, 1, 0
      %v1444 = vsel %vm1425, 1, 0
      %v1445 = vsel %vm1426, 1, 0
      %v1446 = vsel %vm1427, 1, 0
      %v1447 = vsel %vm1428, 1, 0
      %v1448 = vsel %vm1429, 1, 0
      %v1449 = vcvt.s32.f32 %v1430
      %v1450 = vcvt.s32.f32 %v1431
      %v1451 = vcvt.s32.f32 %v1432
      %v1452 = vcvt.s32.f32 %v1433
      %v1453 = vcvt.s32.f32 %v1434
      %v1454 = vcvt.s32.f32 %v1435
      %v1455 = vcvt.s32.f32 %v1436
      %v1456 = vcvt.s32.f32 %v1437
      %v1457 = vcvt.s32.f32 %v1438
      %v1458 = vcvt.s32.f32 %v1439
      %v1459 = vcvt.s32.f32 %v1440
      %v1460 = vcvt.s32.f32 %v1441
      %v1461 = vcvt.s32.f32 %v1442
      %v1462 = vcvt.s32.f32 %v1443
      %v1463 = vcvt.s32.f32 %v1444
      %v1464 = vcvt.s32.f32 %v1445
      %v1465 = vcvt.s32.f32 %v1446
      %v1466 = vcvt.s32.f32 %v1447
      %v1467 = vcvt.s32.f32 %v1448
      %v1468 = vadd.f32 %v1145, %v1449
      %v1469 = vadd.f32 %v1146, %v1450
      %v1470 = vadd.f32 %v1147, %v1451
      %v1471 = vadd.f32 %v1148, %v1452
      %v1472 = vadd.f32 %v1149, %v1453
      %v1473 = vadd.f32 %v1150, %v1454
      %v1474 = vadd.f32 %v1151, %v1455
      %v1475 = vadd.f32 %v1152, %v1456
      %v1476 = vadd.f32 %v1153, %v1457
      %v1477 = vadd.f32 %v1154, %v1458
      %v1478 = vadd.f32 %v1155, %v1459
      %v1479 = vadd.f32 %v1156, %v1460
      %v1480 = vadd.f32 %v1157, %v1461
      %v1481 = vadd.f32 %v1158, %v1462
      %v1482 = vadd.f32 %v1159, %v1463
      %v1483 = vadd.f32 %v1160, %v1464
      %v1484 = vadd.f32 %v1161, %v1465
      %v1485 = vadd.f32 %v1162, %v1466
      %v1486 = vadd.f32 %v1163, %v1467
      %1487 = vrot.lane.b32.xlu0 %v898, 126
      %v1488 = vpop.permute.xlu0 %1487
      %1489 = vrot.lane.b32.xlu0 %v899, 126
      %v1490 = vpop.permute.xlu0 %1489
      %1491 = vrot.lane.b32.xlu0 %v900, 126
      %v1492 = vpop.permute.xlu0 %1491
      %1493 = vrot.lane.b32.xlu0 %v901, 126
      %v1494 = vpop.permute.xlu0 %1493
      %1495 = vrot.lane.b32.xlu0 %v902, 126
      %v1496 = vpop.permute.xlu0 %1495
      %1497 = vrot.lane.b32.xlu0 %v903, 126
      %v1498 = vpop.permute.xlu0 %1497
      %1499 = vrot.lane.b32.xlu0 %v904, 126
      %v1500 = vpop.permute.xlu0 %1499
      %1501 = vrot.lane.b32.xlu0 %v905, 126
      %v1502 = vpop.permute.xlu0 %1501
      %1503 = vrot.lane.b32.xlu0 %v906, 126
      %v1504 = vpop.permute.xlu0 %1503
      %1505 = vrot.lane.b32.xlu0 %v907, 126
      %v1506 = vpop.permute.xlu0 %1505
      %1507 = vrot.lane.b32.xlu0 %v908, 126
      %v1508 = vpop.permute.xlu0 %1507
      %1509 = vrot.lane.b32.xlu0 %v909, 126
      %v1510 = vpop.permute.xlu0 %1509
      %1511 = vrot.lane.b32.xlu0 %v910, 126
      %v1512 = vpop.permute.xlu0 %1511
      %1513 = vrot.lane.b32.xlu0 %v911, 126
      %v1514 = vpop.permute.xlu0 %1513
      %1515 = vrot.lane.b32.xlu0 %v912, 126
      %v1516 = vpop.permute.xlu0 %1515
      %1517 = vrot.lane.b32.xlu0 %v913, 126
      %v1518 = vpop.permute.xlu0 %1517
      %1519 = vrot.lane.b32.xlu0 %v914, 126
      %v1520 = vpop.permute.xlu0 %1519
      %1521 = vrot.lane.b32.xlu0 %v915, 126
      %v1522 = vpop.permute.xlu0 %1521
      %1523 = vrot.lane.b32.xlu0 %v916, 126
      %v1524 = vpop.permute.xlu0 %1523
      %v1544 = vadd.f32 %v1240, %v1488
      %v1545 = vadd.f32 %v1241, %v1490
      %v1546 = vadd.f32 %v1242, %v1492
      %v1547 = vadd.f32 %v1243, %v1494
      %v1548 = vadd.f32 %v1244, %v1496
      %v1549 = vadd.f32 %v1245, %v1498
      %v1550 = vadd.f32 %v1246, %v1500
      %v1551 = vadd.f32 %v1247, %v1502
      %v1552 = vadd.f32 %v1248, %v1504
      %v1553 = vadd.f32 %v1249, %v1506
      %v1554 = vadd.f32 %v1250, %v1508
      %v1555 = vadd.f32 %v1251, %v1510
      %v1556 = vadd.f32 %v1252, %v1512
      %v1557 = vadd.f32 %v1253, %v1514
      %v1558 = vadd.f32 %v1254, %v1516
      %v1559 = vadd.f32 %v1255, %v1518
      %v1560 = vadd.f32 %v1256, %v1520
      %v1561 = vadd.f32 %v1257, %v1522
      %v1562 = vadd.f32 %v1258, %v1524
      %1563 = vset.pattern.permute.xlu0 8
      %1564 = vperm.xlu0 %1563, %v632
      %v1565 = vpop.permute.xlu0 %1564
      %1566 = vset.pattern.permute.xlu0 8
      %1567 = vperm.xlu0 %1566, %v633
      %v1568 = vpop.permute.xlu0 %1567
      %1569 = vset.pattern.permute.xlu0 8
      %1570 = vperm.xlu0 %1569, %v634
      %v1571 = vpop.permute.xlu0 %1570
      %1572 = vset.pattern.permute.xlu0 8
      %1573 = vperm.xlu0 %1572, %v635
      %v1574 = vpop.permute.xlu0 %1573
      %1575 = vset.pattern.permute.xlu0 8
      %1576 = vperm.xlu0 %1575, %v636
      %v1577 = vpop.permute.xlu0 %1576
      %1578 = vset.pattern.permute.xlu0 8
      %1579 = vperm.xlu0 %1578, %v637
      %v1580 = vpop.permute.xlu0 %1579
      %1581 = vset.pattern.permute.xlu0 8
      %1582 = vperm.xlu0 %1581, %v638
      %v1583 = vpop.permute.xlu0 %1582
      %1584 = vset.pattern.permute.xlu0 8
      %1585 = vperm.xlu0 %1584, %v639
      %v1586 = vpop.permute.xlu0 %1585
      %1587 = vset.pattern.permute.xlu0 8
      %1588 = vperm.xlu0 %1587, %v640
      %v1589 = vpop.permute.xlu0 %1588
      %1590 = vset.pattern.permute.xlu0 8
      %1591 = vperm.xlu0 %1590, %v641
      %v1592 = vpop.permute.xlu0 %1591
      %1593 = vset.pattern.permute.xlu0 8
      %1594 = vperm.xlu0 %1593, %v642
      %v1595 = vpop.permute.xlu0 %1594
      %1596 = vset.pattern.permute.xlu0 8
      %1597 = vperm.xlu0 %1596, %v643
      %v1598 = vpop.permute.xlu0 %1597
      %1599 = vset.pattern.permute.xlu0 8
      %1600 = vperm.xlu0 %1599, %v644
      %v1601 = vpop.permute.xlu0 %1600
      %1602 = vset.pattern.permute.xlu0 8
      %1603 = vperm.xlu0 %1602, %v645
      %v1604 = vpop.permute.xlu0 %1603
      %1605 = vset.pattern.permute.xlu0 8
      %1606 = vperm.xlu0 %1605, %v646
      %v1607 = vpop.permute.xlu0 %1606
      %1608 = vset.pattern.permute.xlu0 8
      %1609 = vperm.xlu0 %1608, %v647
      %v1610 = vpop.permute.xlu0 %1609
      %1611 = vset.pattern.permute.xlu0 8
      %1612 = vperm.xlu0 %1611, %v648
      %v1613 = vpop.permute.xlu0 %1612
      %1614 = vset.pattern.permute.xlu0 8
      %1615 = vperm.xlu0 %1614, %v649
      %v1616 = vpop.permute.xlu0 %1615
      %1617 = vset.pattern.permute.xlu0 8
      %1618 = vperm.xlu0 %1617, %v650
      %v1619 = vpop.permute.xlu0 %1618
      %vm1620 = vcmp.eq.s32.totalorder %v308, %v1565
      %vm1621 = vcmp.eq.s32.totalorder %v308, %v1568
      %vm1622 = vcmp.eq.s32.totalorder %v308, %v1571
      %vm1623 = vcmp.eq.s32.totalorder %v308, %v1574
      %vm1624 = vcmp.eq.s32.totalorder %v308, %v1577
      %vm1625 = vcmp.eq.s32.totalorder %v308, %v1580
      %vm1626 = vcmp.eq.s32.totalorder %v308, %v1583
      %vm1627 = vcmp.eq.s32.totalorder %v308, %v1586
      %vm1628 = vcmp.eq.s32.totalorder %v308, %v1589
      %vm1629 = vcmp.eq.s32.totalorder %v308, %v1592
      %vm1630 = vcmp.eq.s32.totalorder %v308, %v1595
      %vm1631 = vcmp.eq.s32.totalorder %v308, %v1598
      %vm1632 = vcmp.eq.s32.totalorder %v308, %v1601
      %vm1633 = vcmp.eq.s32.totalorder %v308, %v1604
      %vm1634 = vcmp.eq.s32.totalorder %v308, %v1607
      %vm1635 = vcmp.eq.s32.totalorder %v308, %v1610
      %vm1636 = vcmp.eq.s32.totalorder %v308, %v1613
      %vm1637 = vcmp.eq.s32.totalorder %v308, %v1616
      %vm1638 = vcmp.eq.s32.totalorder %v308, %v1619
      %1639 = vset.pattern.permute.xlu0 8
      %1640 = vperm.xlu0 %1639, %v727
      %v1641 = vpop.permute.xlu0 %1640
      %1642 = vset.pattern.permute.xlu0 8
      %1643 = vperm.xlu0 %1642, %v728
      %v1644 = vpop.permute.xlu0 %1643
      %1645 = vset.pattern.permute.xlu0 8
      %1646 = vperm.xlu0 %1645, %v729
      %v1647 = vpop.permute.xlu0 %1646
      %1648 = vset.pattern.permute.xlu0 8
      %1649 = vperm.xlu0 %1648, %v730
      %v1650 = vpop.permute.xlu0 %1649
      %1651 = vset.pattern.permute.xlu0 8
      %1652 = vperm.xlu0 %1651, %v731
      %v1653 = vpop.permute.xlu0 %1652
      %1654 = vset.pattern.permute.xlu0 8
      %1655 = vperm.xlu0 %1654, %v732
      %v1656 = vpop.permute.xlu0 %1655
      %1657 = vset.pattern.permute.xlu0 8
      %1658 = vperm.xlu0 %1657, %v733
      %v1659 = vpop.permute.xlu0 %1658
      %1660 = vset.pattern.permute.xlu0 8
      %1661 = vperm.xlu0 %1660, %v734
      %v1662 = vpop.permute.xlu0 %1661
      %1663 = vset.pattern.permute.xlu0 8
      %1664 = vperm.xlu0 %1663, %v735
      %v1665 = vpop.permute.xlu0 %1664
      %1666 = vset.pattern.permute.xlu0 8
      %1667 = vperm.xlu0 %1666, %v736
      %v1668 = vpop.permute.xlu0 %1667
      %1669 = vset.pattern.permute.xlu0 8
      %1670 = vperm.xlu0 %1669, %v737
      %v1671 = vpop.permute.xlu0 %1670
      %1672 = vset.pattern.permute.xlu0 8
      %1673 = vperm.xlu0 %1672, %v738
      %v1674 = vpop.permute.xlu0 %1673
      %1675 = vset.pattern.permute.xlu0 8
      %1676 = vperm.xlu0 %1675, %v739
      %v1677 = vpop.permute.xlu0 %1676
      %1678 = vset.pattern.permute.xlu0 8
      %1679 = vperm.xlu0 %1678, %v740
      %v1680 = vpop.permute.xlu0 %1679
      %1681 = vset.pattern.permute.xlu0 8
      %1682 = vperm.xlu0 %1681, %v741
      %v1683 = vpop.permute.xlu0 %1682
      %1684 = vset.pattern.permute.xlu0 8
      %1685 = vperm.xlu0 %1684, %v742
      %v1686 = vpop.permute.xlu0 %1685
      %1687 = vset.pattern.permute.xlu0 8
      %1688 = vperm.xlu0 %1687, %v743
      %v1689 = vpop.permute.xlu0 %1688
      %1690 = vset.pattern.permute.xlu0 8
      %1691 = vperm.xlu0 %1690, %v744
      %v1692 = vpop.permute.xlu0 %1691
      %1693 = vset.pattern.permute.xlu0 8
      %1694 = vperm.xlu0 %1693, %v745
      %v1695 = vpop.permute.xlu0 %1694
      %vm1696 = vcmp.eq.s32.totalorder %v1641, 1
      %vm1697 = vcmp.eq.s32.totalorder %v1644, 1
      %vm1698 = vcmp.eq.s32.totalorder %v1647, 1
      %vm1699 = vcmp.eq.s32.totalorder %v1650, 1
      %vm1700 = vcmp.eq.s32.totalorder %v1653, 1
      %vm1701 = vcmp.eq.s32.totalorder %v1656, 1
      %vm1702 = vcmp.eq.s32.totalorder %v1659, 1
      %vm1703 = vcmp.eq.s32.totalorder %v1662, 1
      %vm1704 = vcmp.eq.s32.totalorder %v1665, 1
      %vm1705 = vcmp.eq.s32.totalorder %v1668, 1
      %vm1706 = vcmp.eq.s32.totalorder %v1671, 1
      %vm1707 = vcmp.eq.s32.totalorder %v1674, 1
      %vm1708 = vcmp.eq.s32.totalorder %v1677, 1
      %vm1709 = vcmp.eq.s32.totalorder %v1680, 1
      %vm1710 = vcmp.eq.s32.totalorder %v1683, 1
      %vm1711 = vcmp.eq.s32.totalorder %v1686, 1
      %vm1712 = vcmp.eq.s32.totalorder %v1689, 1
      %vm1713 = vcmp.eq.s32.totalorder %v1692, 1
      %vm1714 = vcmp.eq.s32.totalorder %v1695, 1
      %vm1715 = vmand %vm1620, %vm1696
      %vm1716 = vmand %vm1621, %vm1697
      %vm1717 = vmand %vm1622, %vm1698
      %vm1718 = vmand %vm1623, %vm1699
      %vm1719 = vmand %vm1624, %vm1700
      %vm1720 = vmand %vm1625, %vm1701
      %vm1721 = vmand %vm1626, %vm1702
      %vm1722 = vmand %vm1627, %vm1703
      %vm1723 = vmand %vm1628, %vm1704
      %vm1724 = vmand %vm1629, %vm1705
      %vm1725 = vmand %vm1630, %vm1706
      %vm1726 = vmand %vm1631, %vm1707
      %vm1727 = vmand %vm1632, %vm1708
      %vm1728 = vmand %vm1633, %vm1709
      %vm1729 = vmand %vm1634, %vm1710
      %vm1730 = vmand %vm1635, %vm1711
      %vm1731 = vmand %vm1636, %vm1712
      %vm1732 = vmand %vm1637, %vm1713
      %vm1733 = vmand %vm1638, %vm1714
      %v1734 = vsel %vm1715, 1, 0
      %v1735 = vsel %vm1716, 1, 0
      %v1736 = vsel %vm1717, 1, 0
      %v1737 = vsel %vm1718, 1, 0
      %v1738 = vsel %vm1719, 1, 0
      %v1739 = vsel %vm1720, 1, 0
      %v1740 = vsel %vm1721, 1, 0
      %v1741 = vsel %vm1722, 1, 0
      %v1742 = vsel %vm1723, 1, 0
      %v1743 = vsel %vm1724, 1, 0
      %v1744 = vsel %vm1725, 1, 0
      %v1745 = vsel %vm1726, 1, 0
      %v1746 = vsel %vm1727, 1, 0
      %v1747 = vsel %vm1728, 1, 0
      %v1748 = vsel %vm1729, 1, 0
      %v1749 = vsel %vm1730, 1, 0
      %v1750 = vsel %vm1731, 1, 0
      %v1751 = vsel %vm1732, 1, 0
      %v1752 = vsel %vm1733, 1, 0
      %v1753 = vcvt.s32.f32 %v1734
      %v1754 = vcvt.s32.f32 %v1735
      %v1755 = vcvt.s32.f32 %v1736
      %v1756 = vcvt.s32.f32 %v1737
      %v1757 = vcvt.s32.f32 %v1738
      %v1758 = vcvt.s32.f32 %v1739
      %v1759 = vcvt.s32.f32 %v1740
      %v1760 = vcvt.s32.f32 %v1741
      %v1761 = vcvt.s32.f32 %v1742
      %v1762 = vcvt.s32.f32 %v1743
      %v1763 = vcvt.s32.f32 %v1744
      %v1764 = vcvt.s32.f32 %v1745
      %v1765 = vcvt.s32.f32 %v1746
      %v1766 = vcvt.s32.f32 %v1747
      %v1767 = vcvt.s32.f32 %v1748
      %v1768 = vcvt.s32.f32 %v1749
      %v1769 = vcvt.s32.f32 %v1750
      %v1770 = vcvt.s32.f32 %v1751
      %v1771 = vcvt.s32.f32 %v1752
      %v1772 = vadd.f32 %v1468, %v1753
      %v1773 = vadd.f32 %v1469, %v1754
      %v1774 = vadd.f32 %v1470, %v1755
      %v1775 = vadd.f32 %v1471, %v1756
      %v1776 = vadd.f32 %v1472, %v1757
      %v1777 = vadd.f32 %v1473, %v1758
      %v1778 = vadd.f32 %v1474, %v1759
      %v1779 = vadd.f32 %v1475, %v1760
      %v1780 = vadd.f32 %v1476, %v1761
      %v1781 = vadd.f32 %v1477, %v1762
      %v1782 = vadd.f32 %v1478, %v1763
      %v1783 = vadd.f32 %v1479, %v1764
      %v1784 = vadd.f32 %v1480, %v1765
      %v1785 = vadd.f32 %v1481, %v1766
      %v1786 = vadd.f32 %v1482, %v1767
      %v1787 = vadd.f32 %v1483, %v1768
      %v1788 = vadd.f32 %v1484, %v1769
      %v1789 = vadd.f32 %v1485, %v1770
      %v1790 = vadd.f32 %v1486, %v1771
      %1791 = vrot.lane.b32.xlu0 %v898, 125
      %v1792 = vpop.permute.xlu0 %1791
      %1793 = vrot.lane.b32.xlu0 %v899, 125
      %v1794 = vpop.permute.xlu0 %1793
      %1795 = vrot.lane.b32.xlu0 %v900, 125
      %v1796 = vpop.permute.xlu0 %1795
      %1797 = vrot.lane.b32.xlu0 %v901, 125
      %v1798 = vpop.permute.xlu0 %1797
      %1799 = vrot.lane.b32.xlu0 %v902, 125
      %v1800 = vpop.permute.xlu0 %1799
      %1801 = vrot.lane.b32.xlu0 %v903, 125
      %v1802 = vpop.permute.xlu0 %1801
      %1803 = vrot.lane.b32.xlu0 %v904, 125
      %v1804 = vpop.permute.xlu0 %1803
      %1805 = vrot.lane.b32.xlu0 %v905, 125
      %v1806 = vpop.permute.xlu0 %1805
      %1807 = vrot.lane.b32.xlu0 %v906, 125
      %v1808 = vpop.permute.xlu0 %1807
      %1809 = vrot.lane.b32.xlu0 %v907, 125
      %v1810 = vpop.permute.xlu0 %1809
      %1811 = vrot.lane.b32.xlu0 %v908, 125
      %v1812 = vpop.permute.xlu0 %1811
      %1813 = vrot.lane.b32.xlu0 %v909, 125
      %v1814 = vpop.permute.xlu0 %1813
      %1815 = vrot.lane.b32.xlu0 %v910, 125
      %v1816 = vpop.permute.xlu0 %1815
      %1817 = vrot.lane.b32.xlu0 %v911, 125
      %v1818 = vpop.permute.xlu0 %1817
      %1819 = vrot.lane.b32.xlu0 %v912, 125
      %v1820 = vpop.permute.xlu0 %1819
      %1821 = vrot.lane.b32.xlu0 %v913, 125
      %v1822 = vpop.permute.xlu0 %1821
      %1823 = vrot.lane.b32.xlu0 %v914, 125
      %v1824 = vpop.permute.xlu0 %1823
      %1825 = vrot.lane.b32.xlu0 %v915, 125
      %v1826 = vpop.permute.xlu0 %1825
      %1827 = vrot.lane.b32.xlu0 %v916, 125
      %v1828 = vpop.permute.xlu0 %1827
      %v1848 = vadd.f32 %v1544, %v1792
      %v1849 = vadd.f32 %v1545, %v1794
      %v1850 = vadd.f32 %v1546, %v1796
      %v1851 = vadd.f32 %v1547, %v1798
      %v1852 = vadd.f32 %v1548, %v1800
      %v1853 = vadd.f32 %v1549, %v1802
      %v1854 = vadd.f32 %v1550, %v1804
      %v1855 = vadd.f32 %v1551, %v1806
      %v1856 = vadd.f32 %v1552, %v1808
      %v1857 = vadd.f32 %v1553, %v1810
      %v1858 = vadd.f32 %v1554, %v1812
      %v1859 = vadd.f32 %v1555, %v1814
      %v1860 = vadd.f32 %v1556, %v1816
      %v1861 = vadd.f32 %v1557, %v1818
      %v1862 = vadd.f32 %v1558, %v1820
      %v1863 = vadd.f32 %v1559, %v1822
      %v1864 = vadd.f32 %v1560, %v1824
      %v1865 = vadd.f32 %v1561, %v1826
      %v1866 = vadd.f32 %v1562, %v1828
      %v1867 = vmax.f32 %v1848, 1.0
      %v1868 = vmax.f32 %v1849, 1.0
      %v1869 = vmax.f32 %v1850, 1.0
      %v1870 = vmax.f32 %v1851, 1.0
      %v1871 = vmax.f32 %v1852, 1.0
      %v1872 = vmax.f32 %v1853, 1.0
      %v1873 = vmax.f32 %v1854, 1.0
      %v1874 = vmax.f32 %v1855, 1.0
      %v1875 = vmax.f32 %v1856, 1.0
      %v1876 = vmax.f32 %v1857, 1.0
      %v1877 = vmax.f32 %v1858, 1.0
      %v1878 = vmax.f32 %v1859, 1.0
      %v1879 = vmax.f32 %v1860, 1.0
      %v1880 = vmax.f32 %v1861, 1.0
      %v1881 = vmax.f32 %v1862, 1.0
      %v1882 = vmax.f32 %v1863, 1.0
      %v1883 = vmax.f32 %v1864, 1.0
      %v1884 = vmax.f32 %v1865, 1.0
      %v1885 = vmax.f32 %v1866, 1.0
      %1887 = vset.pattern.permute.xlu0 5
      %1888 = vperm.xlu0 %1887, %v1867
      %v1889 = vpop.permute.xlu0 %1888
      %1892 = vset.pattern.permute.xlu0 5
      %1893 = vperm.xlu0 %1892, %v1868
      %v1894 = vpop.permute.xlu0 %1893
      %1897 = vset.pattern.permute.xlu0 5
      %1898 = vperm.xlu0 %1897, %v1869
      %v1899 = vpop.permute.xlu0 %1898
      %1902 = vset.pattern.permute.xlu0 5
      %1903 = vperm.xlu0 %1902, %v1870
      %v1904 = vpop.permute.xlu0 %1903
      %1907 = vset.pattern.permute.xlu0 5
      %1908 = vperm.xlu0 %1907, %v1871
      %v1909 = vpop.permute.xlu0 %1908
      %1912 = vset.pattern.permute.xlu0 5
      %1913 = vperm.xlu0 %1912, %v1872
      %v1914 = vpop.permute.xlu0 %1913
      %1917 = vset.pattern.permute.xlu0 5
      %1918 = vperm.xlu0 %1917, %v1873
      %v1919 = vpop.permute.xlu0 %1918
      %1922 = vset.pattern.permute.xlu0 5
      %1923 = vperm.xlu0 %1922, %v1874
      %v1924 = vpop.permute.xlu0 %1923
      %1927 = vset.pattern.permute.xlu0 5
      %1928 = vperm.xlu0 %1927, %v1875
      %v1929 = vpop.permute.xlu0 %1928
      %1932 = vset.pattern.permute.xlu0 5
      %1933 = vperm.xlu0 %1932, %v1876
      %v1934 = vpop.permute.xlu0 %1933
      %1937 = vset.pattern.permute.xlu0 5
      %1938 = vperm.xlu0 %1937, %v1877
      %v1939 = vpop.permute.xlu0 %1938
      %1942 = vset.pattern.permute.xlu0 5
      %1943 = vperm.xlu0 %1942, %v1878
      %v1944 = vpop.permute.xlu0 %1943
      %1947 = vset.pattern.permute.xlu0 5
      %1948 = vperm.xlu0 %1947, %v1879
      %v1949 = vpop.permute.xlu0 %1948
      %1952 = vset.pattern.permute.xlu0 5
      %1953 = vperm.xlu0 %1952, %v1880
      %v1954 = vpop.permute.xlu0 %1953
      %1957 = vset.pattern.permute.xlu0 5
      %1958 = vperm.xlu0 %1957, %v1881
      %v1959 = vpop.permute.xlu0 %1958
      %1962 = vset.pattern.permute.xlu0 5
      %1963 = vperm.xlu0 %1962, %v1882
      %v1964 = vpop.permute.xlu0 %1963
      %1967 = vset.pattern.permute.xlu0 5
      %1968 = vperm.xlu0 %1967, %v1883
      %v1969 = vpop.permute.xlu0 %1968
      %1972 = vset.pattern.permute.xlu0 5
      %1973 = vperm.xlu0 %1972, %v1884
      %v1974 = vpop.permute.xlu0 %1973
      %1977 = vset.pattern.permute.xlu0 5
      %1978 = vperm.xlu0 %1977, %v1885
      %v1979 = vpop.permute.xlu0 %1978
      %v1981 = vrcp.pop %v1889
      %v1982 = vmul.f32 %v1772, %v1981
      %v1983 = vrcp.pop %v1894
      %v1984 = vmul.f32 %v1773, %v1983
      %v1985 = vrcp.pop %v1899
      %v1986 = vmul.f32 %v1774, %v1985
      %v1987 = vrcp.pop %v1904
      %v1988 = vmul.f32 %v1775, %v1987
      %v1989 = vrcp.pop %v1909
      %v1990 = vmul.f32 %v1776, %v1989
      %v1991 = vrcp.pop %v1914
      %v1992 = vmul.f32 %v1777, %v1991
      %v1993 = vrcp.pop %v1919
      %v1994 = vmul.f32 %v1778, %v1993
      %v1995 = vrcp.pop %v1924
      %v1996 = vmul.f32 %v1779, %v1995
      %v1997 = vrcp.pop %v1929
      %v1998 = vmul.f32 %v1780, %v1997
      %v1999 = vrcp.pop %v1934
      %v2000 = vmul.f32 %v1781, %v1999
      %v2001 = vrcp.pop %v1939
      %v2002 = vmul.f32 %v1782, %v2001
      %v2003 = vrcp.pop %v1944
      %v2004 = vmul.f32 %v1783, %v2003
      %v2005 = vrcp.pop %v1949
      %v2006 = vmul.f32 %v1784, %v2005
      %v2007 = vrcp.pop %v1954
      %v2008 = vmul.f32 %v1785, %v2007
      %v2009 = vrcp.pop %v1959
      %v2010 = vmul.f32 %v1786, %v2009
      %v2011 = vrcp.pop %v1964
      %v2012 = vmul.f32 %v1787, %v2011
      %v2013 = vrcp.pop %v1969
      %v2014 = vmul.f32 %v1788, %v2013
      %v2015 = vrcp.pop %v1974
      %v2016 = vmul.f32 %v1789, %v2015
      %v2017 = vrcp.pop %v1979
      %v2018 = vmul.f32 %v1790, %v2017
      %v2019 = vadd.f32 %v594, %v1982
      %v2020 = vadd.f32 %v595, %v1984
      %v2021 = vadd.f32 %v596, %v1986
      %v2022 = vadd.f32 %v597, %v1988
      %v2023 = vadd.f32 %v598, %v1990
      %v2024 = vadd.f32 %v599, %v1992
      %v2025 = vadd.f32 %v600, %v1994
      %v2026 = vadd.f32 %v601, %v1996
      %v2027 = vadd.f32 %v602, %v1998
      %v2028 = vadd.f32 %v603, %v2000
      %v2029 = vadd.f32 %v604, %v2002
      %v2030 = vadd.f32 %v605, %v2004
      %v2031 = vadd.f32 %v606, %v2006
      %v2032 = vadd.f32 %v607, %v2008
      %v2033 = vadd.f32 %v608, %v2010
      %v2034 = vadd.f32 %v609, %v2012
      %v2035 = vadd.f32 %v610, %v2014
      %v2036 = vadd.f32 %v611, %v2016
      %v2037 = vadd.f32 %v612, %v2018
      %v2038 = vld [vmem:[%s2] sm:$0xff]
      %v2039 = vld [vmem:[%s2 + $0x8] sm:$0xff]
      %v2040 = vld [vmem:[%s2 + $0x10] sm:$0xff]
      %v2041 = vld [vmem:[%s2 + $0x18] sm:$0xff]
      %vm2042 = vcmask 261120
      %v2044 = vsel %vm2042, %v2019, 0
      %v2047 = vsel %vm2042, %v2020, 0
      %v2050 = vsel %vm2042, %v2021, 0
      %v2053 = vsel %vm2042, %v2022, 0
      %v2056 = vsel %vm2042, %v2023, 0
      %v2059 = vsel %vm2042, %v2024, 0
      %v2062 = vsel %vm2042, %v2025, 0
      %v2065 = vsel %vm2042, %v2026, 0
      %v2068 = vsel %vm2042, %v2027, 0
      %v2071 = vsel %vm2042, %v2028, 0
      %v2074 = vsel %vm2042, %v2029, 0
      %v2077 = vsel %vm2042, %v2030, 0
      %v2080 = vsel %vm2042, %v2031, 0
      %v2083 = vsel %vm2042, %v2032, 0
      %v2086 = vsel %vm2042, %v2033, 0
      %v2089 = vsel %vm2042, %v2034, 0
      %v2092 = vsel %vm2042, %v2035, 0
      %v2095 = vsel %vm2042, %v2036, 0
      %v2098 = vsel %vm2042, %v2037, 0
      %2100 = vmatprep.subr.mxu0 0.0
      %2101 = vmatpush1.msra.mxu0 %v2038
      %2102 = vmatprep.subr.mxu0 0.0
      %2103 = vmatpush1.msra.mxu0 %v2039
      %2104 = vmatprep.subr.mxu0 0.0
      %2105 = vmatpush1.msra.mxu0 %v2040
      %2106 = vmatprep.subr.mxu0 0.0
      %2107 = vmatpush1.msra.mxu0 %v2041
      %2108 = vmatprep.subr.mxu0 0.0
      %2109 = vmatpush1.msra.mxu0 0.0
      %2110 = vmatprep.subr.mxu0 0.0
      %2111 = vmatpush1.msra.mxu0 0.0
      %2112 = vmatprep.subr.mxu0 0.0
      %2113 = vmatpush1.msra.mxu0 0.0
      %2114 = vmatprep.subr.mxu0 0.0
      %2115 = vmatpush1.msra.mxu0 0.0
      %2116 = vmatprep.subr.mxu0 0.0
      %2117 = vmatpush1.msra.mxu0 0.0
      %2118 = vmatprep.subr.mxu0 0.0
      %2119 = vmatpush1.msra.mxu0 0.0
      %2120 = vmatprep.subr.mxu0 0.0
      %2121 = vmatpush1.msra.mxu0 0.0
      %2122 = vmatprep.subr.mxu0 0.0
      %2123 = vmatpush1.msra.mxu0 0.0
      %2124 = vmatprep.subr.mxu0 0.0
      %2125 = vmatpush1.msra.mxu0 0.0
      %2126 = vmatprep.subr.mxu0 0.0
      %2127 = vmatpush1.msra.mxu0 0.0
      %2128 = vmatprep.subr.mxu0 0.0
      %2129 = vmatpush1.msra.mxu0 0.0
      %2130 = vmatprep.subr.mxu0 0.0
      %2131 = vmatpush1.msra.mxu0 0.0
      %2132 = vmatprep.subr.mxu0 0.0
      %2133 = vmatpush1.msra.mxu0 0.0
      %2134 = vmatprep.subr.mxu0 0.0
      %2135 = vmatpush1.msra.mxu0 0.0
      %2136 = vmatprep.subr.mxu0 0.0
      %2137 = vmatpush1.msra.mxu0 0.0
      %2138 = vmatprep.subr.mxu0 0.0
      %2139 = vmatpush1.msra.mxu0 0.0
      %2140 = vmatprep.subr.mxu0 0.0
      %2141 = vmatpush1.msra.mxu0 0.0
      %2142 = vmatprep.subr.mxu0 0.0
      %2143 = vmatpush1.msra.mxu0 0.0
      %2144 = vmatprep.subr.mxu0 0.0
      %2145 = vmatpush1.msra.mxu0 0.0
      %2146 = vmatprep.subr.mxu0 0.0
      %2147 = vmatpush1.msra.mxu0 0.0
      %2148 = vmatprep.subr.mxu0 0.0
      %2149 = vmatpush1.msra.mxu0 0.0
      %2150 = vmatprep.subr.mxu0 0.0
      %2151 = vmatpush1.msra.mxu0 0.0
      %2152 = vmatprep.subr.mxu0 0.0
      %2153 = vmatpush1.msra.mxu0 0.0
      %2154 = vmatprep.subr.mxu0 0.0
      %2155 = vmatpush1.msra.mxu0 0.0
      %2156 = vmatprep.subr.mxu0 0.0
      %2157 = vmatpush1.msra.mxu0 0.0
      %2158 = vmatprep.subr.mxu0 0.0
      %2159 = vmatpush1.msra.mxu0 0.0
      %2160 = vmatprep.subr.mxu0 0.0
      %2161 = vmatpush1.msra.mxu0 0.0
      %2162 = vmatprep.subr.mxu0 0.0
      %2163 = vmatpush1.msra.mxu0 0.0
      %2164 = vmatprep.mubr.f32.mxu0 0.0
      %2165 = vmatmul.mubr.f32.gmra.mrb[0].mxu0 %v2044
      %v2166 = vpop.f32.mrb[0].mxu0
      %v2167 = vadd.f32 0.0, %v2166
      %v2168 = vpop.f32.mrb[0].mxu0
      %2169 = vmatprep.mubr.f32.mxu0 0.0
      %2170 = vmatmul.mubr.f32.gmra.mrb[0].mxu0 %v2047
      %v2171 = vpop.f32.mrb[0].mxu0
      %v2172 = vadd.f32 0.0, %v2171
      %v2173 = vpop.f32.mrb[0].mxu0
      %2174 = vmatprep.mubr.f32.mxu0 0.0
      %2175 = vmatmul.mubr.f32.gmra.mrb[0].mxu0 %v2050
      %v2176 = vpop.f32.mrb[0].mxu0
      %v2177 = vadd.f32 0.0, %v2176
      %v2178 = vpop.f32.mrb[0].mxu0
      %2179 = vmatprep.mubr.f32.mxu0 0.0
      %2180 = vmatmul.mubr.f32.gmra.mrb[0].mxu0 %v2053
      %v2181 = vpop.f32.mrb[0].mxu0
      %v2182 = vadd.f32 0.0, %v2181
      %v2183 = vpop.f32.mrb[0].mxu0
      %2184 = vmatprep.mubr.f32.mxu0 0.0
      %2185 = vmatmul.mubr.f32.gmra.mrb[0].mxu0 %v2056
      %v2186 = vpop.f32.mrb[0].mxu0
      %v2187 = vadd.f32 0.0, %v2186
      %v2188 = vpop.f32.mrb[0].mxu0
      %2189 = vmatprep.mubr.f32.mxu0 0.0
      %2190 = vmatmul.mubr.f32.gmra.mrb[0].mxu0 %v2059
      %v2191 = vpop.f32.mrb[0].mxu0
      %v2192 = vadd.f32 0.0, %v2191
      %v2193 = vpop.f32.mrb[0].mxu0
      %2194 = vmatprep.mubr.f32.mxu0 0.0
      %2195 = vmatmul.mubr.f32.gmra.mrb[0].mxu0 %v2062
      %v2196 = vpop.f32.mrb[0].mxu0
      %v2197 = vadd.f32 0.0, %v2196
      %v2198 = vpop.f32.mrb[0].mxu0
      %2199 = vmatprep.mubr.f32.mxu0 0.0
      %2200 = vmatmul.mubr.f32.gmra.mrb[0].mxu0 %v2065
      %v2201 = vpop.f32.mrb[0].mxu0
      %v2202 = vadd.f32 0.0, %v2201
      %v2203 = vpop.f32.mrb[0].mxu0
      %2204 = vmatprep.mubr.f32.mxu0 0.0
      %2205 = vmatmul.mubr.f32.gmra.mrb[0].mxu0 %v2068
      %v2206 = vpop.f32.mrb[0].mxu0
      %v2207 = vadd.f32 0.0, %v2206
      %v2208 = vpop.f32.mrb[0].mxu0
      %2209 = vmatprep.mubr.f32.mxu0 0.0
      %2210 = vmatmul.mubr.f32.gmra.mrb[0].mxu0 %v2071
      %v2211 = vpop.f32.mrb[0].mxu0
      %v2212 = vadd.f32 0.0, %v2211
      %v2213 = vpop.f32.mrb[0].mxu0
      %2214 = vmatprep.mubr.f32.mxu0 0.0
      %2215 = vmatmul.mubr.f32.gmra.mrb[0].mxu0 %v2074
      %v2216 = vpop.f32.mrb[0].mxu0
      %v2217 = vadd.f32 0.0, %v2216
      %v2218 = vpop.f32.mrb[0].mxu0
      %2219 = vmatprep.mubr.f32.mxu0 0.0
      %2220 = vmatmul.mubr.f32.gmra.mrb[0].mxu0 %v2077
      %v2221 = vpop.f32.mrb[0].mxu0
      %v2222 = vadd.f32 0.0, %v2221
      %v2223 = vpop.f32.mrb[0].mxu0
      %2224 = vmatprep.mubr.f32.mxu0 0.0
      %2225 = vmatmul.mubr.f32.gmra.mrb[0].mxu0 %v2080
      %v2226 = vpop.f32.mrb[0].mxu0
      %v2227 = vadd.f32 0.0, %v2226
      %v2228 = vpop.f32.mrb[0].mxu0
      %2229 = vmatprep.mubr.f32.mxu0 0.0
      %2230 = vmatmul.mubr.f32.gmra.mrb[0].mxu0 %v2083
      %v2231 = vpop.f32.mrb[0].mxu0
      %v2232 = vadd.f32 0.0, %v2231
      %v2233 = vpop.f32.mrb[0].mxu0
      %2234 = vmatprep.mubr.f32.mxu0 0.0
      %2235 = vmatmul.mubr.f32.gmra.mrb[0].mxu0 %v2086
      %v2236 = vpop.f32.mrb[0].mxu0
      %v2237 = vadd.f32 0.0, %v2236
      %v2238 = vpop.f32.mrb[0].mxu0
      %2239 = vmatprep.mubr.f32.mxu0 0.0
      %2240 = vmatmul.mubr.f32.gmra.mrb[0].mxu0 %v2089
      %v2241 = vpop.f32.mrb[0].mxu0
      %v2242 = vadd.f32 0.0, %v2241
      %v2243 = vpop.f32.mrb[0].mxu0
      %2244 = vmatprep.mubr.f32.mxu0 0.0
      %2245 = vmatmul.mubr.f32.gmra.mrb[0].mxu0 %v2092
      %v2246 = vpop.f32.mrb[0].mxu0
      %v2247 = vadd.f32 0.0, %v2246
      %v2248 = vpop.f32.mrb[0].mxu0
      %2249 = vmatprep.mubr.f32.mxu0 0.0
      %2250 = vmatmul.mubr.f32.gmra.mrb[0].mxu0 %v2095
      %v2251 = vpop.f32.mrb[0].mxu0
      %v2252 = vadd.f32 0.0, %v2251
      %v2253 = vpop.f32.mrb[0].mxu0
      %2254 = vmatprep.mubr.f32.mxu0 0.0
      %2255 = vmatmul.mubr.f32.gmra.mrb[0].mxu0 %v2098
      %v2256 = vpop.f32.mrb[0].mxu0
      %v2257 = vadd.f32 0.0, %v2256
      %v2258 = vpop.f32.mrb[0].mxu0
      %2259 = vdwg.mxu0
      %vm2260 = vcmask 130048
      %v2262 = vsel %vm2260, %v282, 0
      %v2265 = vsel %vm2260, %v283, 0
      %v2268 = vsel %vm2260, %v284, 0
      %v2271 = vsel %vm2260, %v285, 0
      %v2274 = vsel %vm2260, %v286, 0
      %v2277 = vsel %vm2260, %v287, 0
      %v2280 = vsel %vm2260, %v288, 0
      %v2283 = vsel %vm2260, %v289, 0
      %v2286 = vsel %vm2260, %v290, 0
      %v2289 = vsel %vm2260, %v291, 0
      %v2292 = vsel %vm2260, %v292, 0
      %v2295 = vsel %vm2260, %v293, 0
      %v2298 = vsel %vm2260, %v294, 0
      %v2301 = vsel %vm2260, %v295, 0
      %v2304 = vsel %vm2260, %v296, 0
      %v2307 = vsel %vm2260, %v297, 0
      %v2310 = vsel %vm2260, %v298, 0
      %v2313 = vsel %vm2260, %v299, 0
      %v2316 = vsel %vm2260, %v300, 0
      %2318 = vmatprep.subr.mxu0 0.0
      %2319 = vmatpush1.msra.mxu0 %v305
      %2320 = vmatprep.subr.mxu0 0.0
      %2321 = vmatpush1.msra.mxu0 %v306
      %2322 = vmatprep.subr.mxu0 0.0
      %2323 = vmatpush1.msra.mxu0 0.0
      %2324 = vmatprep.subr.mxu0 0.0
      %2325 = vmatpush1.msra.mxu0 0.0
      %2326 = vmatprep.subr.mxu0 0.0
      %2327 = vmatpush1.msra.mxu0 0.0
      %2328 = vmatprep.subr.mxu0 0.0
      %2329 = vmatpush1.msra.mxu0 0.0
      %2330 = vmatprep.subr.mxu0 0.0
      %2331 = vmatpush1.msra.mxu0 0.0
      %2332 = vmatprep.subr.mxu0 0.0
      %2333 = vmatpush1.msra.mxu0 0.0
      %2334 = vmatprep.subr.mxu0 0.0
      %2335 = vmatpush1.msra.mxu0 0.0
      %2336 = vmatprep.subr.mxu0 0.0
      %2337 = vmatpush1.msra.mxu0 0.0
      %2338 = vmatprep.subr.mxu0 0.0
      %2339 = vmatpush1.msra.mxu0 0.0
      %2340 = vmatprep.subr.mxu0 0.0
      %2341 = vmatpush1.msra.mxu0 0.0
      %2342 = vmatprep.subr.mxu0 0.0
      %2343 = vmatpush1.msra.mxu0 0.0
      %2344 = vmatprep.subr.mxu0 0.0
      %2345 = vmatpush1.msra.mxu0 0.0
      %2346 = vmatprep.subr.mxu0 0.0
      %2347 = vmatpush1.msra.mxu0 0.0
      %2348 = vmatprep.subr.mxu0 0.0
      %2349 = vmatpush1.msra.mxu0 0.0
      %2350 = vmatprep.subr.mxu0 0.0
      %2351 = vmatpush1.msra.mxu0 0.0
      %2352 = vmatprep.subr.mxu0 0.0
      %2353 = vmatpush1.msra.mxu0 0.0
      %2354 = vmatprep.subr.mxu0 0.0
      %2355 = vmatpush1.msra.mxu0 0.0
      %2356 = vmatprep.subr.mxu0 0.0
      %2357 = vmatpush1.msra.mxu0 0.0
      %2358 = vmatprep.subr.mxu0 0.0
      %2359 = vmatpush1.msra.mxu0 0.0
      %2360 = vmatprep.subr.mxu0 0.0
      %2361 = vmatpush1.msra.mxu0 0.0
      %2362 = vmatprep.subr.mxu0 0.0
      %2363 = vmatpush1.msra.mxu0 0.0
      %2364 = vmatprep.subr.mxu0 0.0
      %2365 = vmatpush1.msra.mxu0 0.0
      %2366 = vmatprep.subr.mxu0 0.0
      %2367 = vmatpush1.msra.mxu0 0.0
      %2368 = vmatprep.subr.mxu0 0.0
      %2369 = vmatpush1.msra.mxu0 0.0
      %2370 = vmatprep.subr.mxu0 0.0
      %2371 = vmatpush1.msra.mxu0 0.0
      %2372 = vmatprep.subr.mxu0 0.0
      %2373 = vmatpush1.msra.mxu0 0.0
      %2374 = vmatprep.subr.mxu0 0.0
      %2375 = vmatpush1.msra.mxu0 0.0
      %2376 = vmatprep.subr.mxu0 0.0
      %2377 = vmatpush1.msra.mxu0 0.0
      %2378 = vmatprep.subr.mxu0 0.0
      %2379 = vmatpush1.msra.mxu0 0.0
      %2380 = vmatprep.subr.mxu0 0.0
      %2381 = vmatpush1.msra.mxu0 0.0
      %2382 = vmatprep.mubr.f32.mxu0 0.0
      %2383 = vmatmul.mubr.f32.gmra.mrb[0].mxu0 %v2262
      %v2384 = vpop.f32.mrb[0].mxu0
      %v2385 = vadd.f32 %v2167, %v2384
      %v2386 = vpop.f32.mrb[0].mxu0
      %2387 = vmatprep.mubr.f32.mxu0 0.0
      %2388 = vmatmul.mubr.f32.gmra.mrb[0].mxu0 %v2265
      %v2389 = vpop.f32.mrb[0].mxu0
      %v2390 = vadd.f32 %v2172, %v2389
      %v2391 = vpop.f32.mrb[0].mxu0
      %2392 = vmatprep.mubr.f32.mxu0 0.0
      %2393 = vmatmul.mubr.f32.gmra.mrb[0].mxu0 %v2268
      %v2394 = vpop.f32.mrb[0].mxu0
      %v2395 = vadd.f32 %v2177, %v2394
      %v2396 = vpop.f32.mrb[0].mxu0
      %2397 = vmatprep.mubr.f32.mxu0 0.0
      %2398 = vmatmul.mubr.f32.gmra.mrb[0].mxu0 %v2271
      %v2399 = vpop.f32.mrb[0].mxu0
      %v2400 = vadd.f32 %v2182, %v2399
      %v2401 = vpop.f32.mrb[0].mxu0
      %2402 = vmatprep.mubr.f32.mxu0 0.0
      %2403 = vmatmul.mubr.f32.gmra.mrb[0].mxu0 %v2274
      %v2404 = vpop.f32.mrb[0].mxu0
      %v2405 = vadd.f32 %v2187, %v2404
      %v2406 = vpop.f32.mrb[0].mxu0
      %2407 = vmatprep.mubr.f32.mxu0 0.0
      %2408 = vmatmul.mubr.f32.gmra.mrb[0].mxu0 %v2277
      %v2409 = vpop.f32.mrb[0].mxu0
      %v2410 = vadd.f32 %v2192, %v2409
      %v2411 = vpop.f32.mrb[0].mxu0
      %2412 = vmatprep.mubr.f32.mxu0 0.0
      %2413 = vmatmul.mubr.f32.gmra.mrb[0].mxu0 %v2280
      %v2414 = vpop.f32.mrb[0].mxu0
      %v2415 = vadd.f32 %v2197, %v2414
      %v2416 = vpop.f32.mrb[0].mxu0
      %2417 = vmatprep.mubr.f32.mxu0 0.0
      %2418 = vmatmul.mubr.f32.gmra.mrb[0].mxu0 %v2283
      %v2419 = vpop.f32.mrb[0].mxu0
      %v2420 = vadd.f32 %v2202, %v2419
      %v2421 = vpop.f32.mrb[0].mxu0
      %2422 = vmatprep.mubr.f32.mxu0 0.0
      %2423 = vmatmul.mubr.f32.gmra.mrb[0].mxu0 %v2286
      %v2424 = vpop.f32.mrb[0].mxu0
      %v2425 = vadd.f32 %v2207, %v2424
      %v2426 = vpop.f32.mrb[0].mxu0
      %2427 = vmatprep.mubr.f32.mxu0 0.0
      %2428 = vmatmul.mubr.f32.gmra.mrb[0].mxu0 %v2289
      %v2429 = vpop.f32.mrb[0].mxu0
      %v2430 = vadd.f32 %v2212, %v2429
      %v2431 = vpop.f32.mrb[0].mxu0
      %2432 = vmatprep.mubr.f32.mxu0 0.0
      %2433 = vmatmul.mubr.f32.gmra.mrb[0].mxu0 %v2292
      %v2434 = vpop.f32.mrb[0].mxu0
      %v2435 = vadd.f32 %v2217, %v2434
      %v2436 = vpop.f32.mrb[0].mxu0
      %2437 = vmatprep.mubr.f32.mxu0 0.0
      %2438 = vmatmul.mubr.f32.gmra.mrb[0].mxu0 %v2295
      %v2439 = vpop.f32.mrb[0].mxu0
      %v2440 = vadd.f32 %v2222, %v2439
      %v2441 = vpop.f32.mrb[0].mxu0
      %2442 = vmatprep.mubr.f32.mxu0 0.0
      %2443 = vmatmul.mubr.f32.gmra.mrb[0].mxu0 %v2298
      %v2444 = vpop.f32.mrb[0].mxu0
      %v2445 = vadd.f32 %v2227, %v2444
      %v2446 = vpop.f32.mrb[0].mxu0
      %2447 = vmatprep.mubr.f32.mxu0 0.0
      %2448 = vmatmul.mubr.f32.gmra.mrb[0].mxu0 %v2301
      %v2449 = vpop.f32.mrb[0].mxu0
      %v2450 = vadd.f32 %v2232, %v2449
      %v2451 = vpop.f32.mrb[0].mxu0
      %2452 = vmatprep.mubr.f32.mxu0 0.0
      %2453 = vmatmul.mubr.f32.gmra.mrb[0].mxu0 %v2304
      %v2454 = vpop.f32.mrb[0].mxu0
      %v2455 = vadd.f32 %v2237, %v2454
      %v2456 = vpop.f32.mrb[0].mxu0
      %2457 = vmatprep.mubr.f32.mxu0 0.0
      %2458 = vmatmul.mubr.f32.gmra.mrb[0].mxu0 %v2307
      %v2459 = vpop.f32.mrb[0].mxu0
      %v2460 = vadd.f32 %v2242, %v2459
      %v2461 = vpop.f32.mrb[0].mxu0
      %2462 = vmatprep.mubr.f32.mxu0 0.0
      %2463 = vmatmul.mubr.f32.gmra.mrb[0].mxu0 %v2310
      %v2464 = vpop.f32.mrb[0].mxu0
      %v2465 = vadd.f32 %v2247, %v2464
      %v2466 = vpop.f32.mrb[0].mxu0
      %2467 = vmatprep.mubr.f32.mxu0 0.0
      %2468 = vmatmul.mubr.f32.gmra.mrb[0].mxu0 %v2313
      %v2469 = vpop.f32.mrb[0].mxu0
      %v2470 = vadd.f32 %v2252, %v2469
      %v2471 = vpop.f32.mrb[0].mxu0
      %2472 = vmatprep.mubr.f32.mxu0 0.0
      %2473 = vmatmul.mubr.f32.gmra.mrb[0].mxu0 %v2316
      %v2474 = vpop.f32.mrb[0].mxu0
      %v2475 = vadd.f32 %v2257, %v2474
      %v2476 = vpop.f32.mrb[0].mxu0
      %2477 = vdwg.mxu0
      %v2478 = vlaneseq
      %v2479 = vshrl.u32 %v2478, 7
      %v2480 = vsub.s32 0, %v2479
      %v2481 = vrot.slane %v301, %v2480
      %v2482 = vadd.f32 %v2385, %v2481
      %v2483 = vadd.f32 %v2390, %v2481
      %v2484 = vadd.f32 %v2395, %v2481
      %v2485 = vadd.f32 %v2400, %v2481
      %v2486 = vadd.f32 %v2405, %v2481
      %v2487 = vadd.f32 %v2410, %v2481
      %v2488 = vadd.f32 %v2415, %v2481
      %v2489 = vadd.f32 %v2420, %v2481
      %v2490 = vadd.f32 %v2425, %v2481
      %v2491 = vadd.f32 %v2430, %v2481
      %v2492 = vadd.f32 %v2435, %v2481
      %v2493 = vadd.f32 %v2440, %v2481
      %v2494 = vadd.f32 %v2445, %v2481
      %v2495 = vadd.f32 %v2450, %v2481
      %v2496 = vadd.f32 %v2455, %v2481
      %v2497 = vadd.f32 %v2460, %v2481
      %v2498 = vadd.f32 %v2465, %v2481
      %v2499 = vadd.f32 %v2470, %v2481
      %v2500 = vadd.f32 %v2475, %v2481
      %v2501 = vmax.f32 %v2482, 0.0
      %v2502 = vmax.f32 %v2483, 0.0
      %v2503 = vmax.f32 %v2484, 0.0
      %v2504 = vmax.f32 %v2485, 0.0
      %v2505 = vmax.f32 %v2486, 0.0
      %v2506 = vmax.f32 %v2487, 0.0
      %v2507 = vmax.f32 %v2488, 0.0
      %v2508 = vmax.f32 %v2489, 0.0
      %v2509 = vmax.f32 %v2490, 0.0
      %v2510 = vmax.f32 %v2491, 0.0
      %v2511 = vmax.f32 %v2492, 0.0
      %v2512 = vmax.f32 %v2493, 0.0
      %v2513 = vmax.f32 %v2494, 0.0
      %v2514 = vmax.f32 %v2495, 0.0
      %v2515 = vmax.f32 %v2496, 0.0
      %v2516 = vmax.f32 %v2497, 0.0
      %v2517 = vmax.f32 %v2498, 0.0
      %v2518 = vmax.f32 %v2499, 0.0
      %v2519 = vmax.f32 %v2500, 0.0
      %v2520 = vld [vmem:[%s3] sm:$0xff]
      %v2521 = vld [vmem:[%s3 + $0x8] sm:$0xff]
      %v2522 = vld [vmem:[%s3 + $0x10] sm:$0xff]
      %v2523 = vld [vmem:[%s3 + $0x18] sm:$0xff]
      %v2524 = vld [vmem:[%s3 + $0x20] sm:$0xff]
      %v2525 = vld [vmem:[%s3 + $0x28] sm:$0xff]
      %v2526 = vld [vmem:[%s3 + $0x30] sm:$0xff]
      %v2527 = vld [vmem:[%s3 + $0x38] sm:$0xff]
      %v2528 = vlaneseq
      %v2529 = vshrl.u32 %v2528, 7
      %v2530 = vsub.s32 0, %v2529
      %v2531 = vrot.slane %v302, %v2530
      %vm2532 = vcmask 523264
      %v2534 = vsel %vm2532, %v2501, 0
      %v2537 = vsel %vm2532, %v2502, 0
      %v2540 = vsel %vm2532, %v2503, 0
      %v2543 = vsel %vm2532, %v2504, 0
      %v2546 = vsel %vm2532, %v2505, 0
      %v2549 = vsel %vm2532, %v2506, 0
      %v2552 = vsel %vm2532, %v2507, 0
      %v2555 = vsel %vm2532, %v2508, 0
      %v2558 = vsel %vm2532, %v2509, 0
      %v2561 = vsel %vm2532, %v2510, 0
      %v2564 = vsel %vm2532, %v2511, 0
      %v2567 = vsel %vm2532, %v2512, 0
      %v2570 = vsel %vm2532, %v2513, 0
      %v2573 = vsel %vm2532, %v2514, 0
      %v2576 = vsel %vm2532, %v2515, 0
      %v2579 = vsel %vm2532, %v2516, 0
      %v2582 = vsel %vm2532, %v2517, 0
      %v2585 = vsel %vm2532, %v2518, 0
      %v2588 = vsel %vm2532, %v2519, 0
      %2590 = vmatprep.subr.mxu0 0.0
      %2591 = vmatpush1.msra.mxu0 %v2520
      %2592 = vmatprep.subr.mxu0 0.0
      %2593 = vmatpush1.msra.mxu0 %v2521
      %2594 = vmatprep.subr.mxu0 0.0
      %2595 = vmatpush1.msra.mxu0 %v2522
      %2596 = vmatprep.subr.mxu0 0.0
      %2597 = vmatpush1.msra.mxu0 %v2523
      %2598 = vmatprep.subr.mxu0 0.0
      %2599 = vmatpush1.msra.mxu0 %v2524
      %2600 = vmatprep.subr.mxu0 0.0
      %2601 = vmatpush1.msra.mxu0 %v2525
      %2602 = vmatprep.subr.mxu0 0.0
      %2603 = vmatpush1.msra.mxu0 %v2526
      %2604 = vmatprep.subr.mxu0 0.0
      %2605 = vmatpush1.msra.mxu0 %v2527
      %2606 = vmatprep.subr.mxu0 0.0
      %2607 = vmatpush1.msra.mxu0 0.0
      %2608 = vmatprep.subr.mxu0 0.0
      %2609 = vmatpush1.msra.mxu0 0.0
      %2610 = vmatprep.subr.mxu0 0.0
      %2611 = vmatpush1.msra.mxu0 0.0
      %2612 = vmatprep.subr.mxu0 0.0
      %2613 = vmatpush1.msra.mxu0 0.0
      %2614 = vmatprep.subr.mxu0 0.0
      %2615 = vmatpush1.msra.mxu0 0.0
      %2616 = vmatprep.subr.mxu0 0.0
      %2617 = vmatpush1.msra.mxu0 0.0
      %2618 = vmatprep.subr.mxu0 0.0
      %2619 = vmatpush1.msra.mxu0 0.0
      %2620 = vmatprep.subr.mxu0 0.0
      %2621 = vmatpush1.msra.mxu0 0.0
      %2622 = vmatprep.subr.mxu0 0.0
      %2623 = vmatpush1.msra.mxu0 0.0
      %2624 = vmatprep.subr.mxu0 0.0
      %2625 = vmatpush1.msra.mxu0 0.0
      %2626 = vmatprep.subr.mxu0 0.0
      %2627 = vmatpush1.msra.mxu0 0.0
      %2628 = vmatprep.subr.mxu0 0.0
      %2629 = vmatpush1.msra.mxu0 0.0
      %2630 = vmatprep.subr.mxu0 0.0
      %2631 = vmatpush1.msra.mxu0 0.0
      %2632 = vmatprep.subr.mxu0 0.0
      %2633 = vmatpush1.msra.mxu0 0.0
      %2634 = vmatprep.subr.mxu0 0.0
      %2635 = vmatpush1.msra.mxu0 0.0
      %2636 = vmatprep.subr.mxu0 0.0
      %2637 = vmatpush1.msra.mxu0 0.0
      %2638 = vmatprep.subr.mxu0 0.0
      %2639 = vmatpush1.msra.mxu0 0.0
      %2640 = vmatprep.subr.mxu0 0.0
      %2641 = vmatpush1.msra.mxu0 0.0
      %2642 = vmatprep.subr.mxu0 0.0
      %2643 = vmatpush1.msra.mxu0 0.0
      %2644 = vmatprep.subr.mxu0 0.0
      %2645 = vmatpush1.msra.mxu0 0.0
      %2646 = vmatprep.subr.mxu0 0.0
      %2647 = vmatpush1.msra.mxu0 0.0
      %2648 = vmatprep.subr.mxu0 0.0
      %2649 = vmatpush1.msra.mxu0 0.0
      %2650 = vmatprep.subr.mxu0 0.0
      %2651 = vmatpush1.msra.mxu0 0.0
      %2652 = vmatprep.subr.mxu0 0.0
      %2653 = vmatpush1.msra.mxu0 0.0
      %2654 = vmatprep.mubr.f32.mxu0 0.0
      %2655 = vmatmul.mubr.f32.gmra.mrb[0].mxu0 %v2534
      %v2656 = vpop.f32.mrb[0].mxu0
      %v2657 = vadd.f32 %v2531, %v2656
      %v2658 = vpop.f32.mrb[0].mxu0
      %2659 = vmatprep.mubr.f32.mxu0 0.0
      %2660 = vmatmul.mubr.f32.gmra.mrb[0].mxu0 %v2537
      %v2661 = vpop.f32.mrb[0].mxu0
      %v2662 = vadd.f32 %v2531, %v2661
      %v2663 = vpop.f32.mrb[0].mxu0
      %2664 = vmatprep.mubr.f32.mxu0 0.0
      %2665 = vmatmul.mubr.f32.gmra.mrb[0].mxu0 %v2540
      %v2666 = vpop.f32.mrb[0].mxu0
      %v2667 = vadd.f32 %v2531, %v2666
      %v2668 = vpop.f32.mrb[0].mxu0
      %2669 = vmatprep.mubr.f32.mxu0 0.0
      %2670 = vmatmul.mubr.f32.gmra.mrb[0].mxu0 %v2543
      %v2671 = vpop.f32.mrb[0].mxu0
      %v2672 = vadd.f32 %v2531, %v2671
      %v2673 = vpop.f32.mrb[0].mxu0
      %2674 = vmatprep.mubr.f32.mxu0 0.0
      %2675 = vmatmul.mubr.f32.gmra.mrb[0].mxu0 %v2546
      %v2676 = vpop.f32.mrb[0].mxu0
      %v2677 = vadd.f32 %v2531, %v2676
      %v2678 = vpop.f32.mrb[0].mxu0
      %2679 = vmatprep.mubr.f32.mxu0 0.0
      %2680 = vmatmul.mubr.f32.gmra.mrb[0].mxu0 %v2549
      %v2681 = vpop.f32.mrb[0].mxu0
      %v2682 = vadd.f32 %v2531, %v2681
      %v2683 = vpop.f32.mrb[0].mxu0
      %2684 = vmatprep.mubr.f32.mxu0 0.0
      %2685 = vmatmul.mubr.f32.gmra.mrb[0].mxu0 %v2552
      %v2686 = vpop.f32.mrb[0].mxu0
      %v2687 = vadd.f32 %v2531, %v2686
      %v2688 = vpop.f32.mrb[0].mxu0
      %2689 = vmatprep.mubr.f32.mxu0 0.0
      %2690 = vmatmul.mubr.f32.gmra.mrb[0].mxu0 %v2555
      %v2691 = vpop.f32.mrb[0].mxu0
      %v2692 = vadd.f32 %v2531, %v2691
      %v2693 = vpop.f32.mrb[0].mxu0
      %2694 = vmatprep.mubr.f32.mxu0 0.0
      %2695 = vmatmul.mubr.f32.gmra.mrb[0].mxu0 %v2558
      %v2696 = vpop.f32.mrb[0].mxu0
      %v2697 = vadd.f32 %v2531, %v2696
      %v2698 = vpop.f32.mrb[0].mxu0
      %2699 = vmatprep.mubr.f32.mxu0 0.0
      %2700 = vmatmul.mubr.f32.gmra.mrb[0].mxu0 %v2561
      %v2701 = vpop.f32.mrb[0].mxu0
      %v2702 = vadd.f32 %v2531, %v2701
      %v2703 = vpop.f32.mrb[0].mxu0
      %2704 = vmatprep.mubr.f32.mxu0 0.0
      %2705 = vmatmul.mubr.f32.gmra.mrb[0].mxu0 %v2564
      %v2706 = vpop.f32.mrb[0].mxu0
      %v2707 = vadd.f32 %v2531, %v2706
      %v2708 = vpop.f32.mrb[0].mxu0
      %2709 = vmatprep.mubr.f32.mxu0 0.0
      %2710 = vmatmul.mubr.f32.gmra.mrb[0].mxu0 %v2567
      %v2711 = vpop.f32.mrb[0].mxu0
      %v2712 = vadd.f32 %v2531, %v2711
      %v2713 = vpop.f32.mrb[0].mxu0
      %2714 = vmatprep.mubr.f32.mxu0 0.0
      %2715 = vmatmul.mubr.f32.gmra.mrb[0].mxu0 %v2570
      %v2716 = vpop.f32.mrb[0].mxu0
      %v2717 = vadd.f32 %v2531, %v2716
      %v2718 = vpop.f32.mrb[0].mxu0
      %2719 = vmatprep.mubr.f32.mxu0 0.0
      %2720 = vmatmul.mubr.f32.gmra.mrb[0].mxu0 %v2573
      %v2721 = vpop.f32.mrb[0].mxu0
      %v2722 = vadd.f32 %v2531, %v2721
      %v2723 = vpop.f32.mrb[0].mxu0
      %2724 = vmatprep.mubr.f32.mxu0 0.0
      %2725 = vmatmul.mubr.f32.gmra.mrb[0].mxu0 %v2576
      %v2726 = vpop.f32.mrb[0].mxu0
      %v2727 = vadd.f32 %v2531, %v2726
      %v2728 = vpop.f32.mrb[0].mxu0
      %2729 = vmatprep.mubr.f32.mxu0 0.0
      %2730 = vmatmul.mubr.f32.gmra.mrb[0].mxu0 %v2579
      %v2731 = vpop.f32.mrb[0].mxu0
      %v2732 = vadd.f32 %v2531, %v2731
      %v2733 = vpop.f32.mrb[0].mxu0
      %2734 = vmatprep.mubr.f32.mxu0 0.0
      %2735 = vmatmul.mubr.f32.gmra.mrb[0].mxu0 %v2582
      %v2736 = vpop.f32.mrb[0].mxu0
      %v2737 = vadd.f32 %v2531, %v2736
      %v2738 = vpop.f32.mrb[0].mxu0
      %2739 = vmatprep.mubr.f32.mxu0 0.0
      %2740 = vmatmul.mubr.f32.gmra.mrb[0].mxu0 %v2585
      %v2741 = vpop.f32.mrb[0].mxu0
      %v2742 = vadd.f32 %v2531, %v2741
      %v2743 = vpop.f32.mrb[0].mxu0
      %2744 = vmatprep.mubr.f32.mxu0 0.0
      %2745 = vmatmul.mubr.f32.gmra.mrb[0].mxu0 %v2588
      %v2746 = vpop.f32.mrb[0].mxu0
      %v2747 = vadd.f32 %v2531, %v2746
      %v2748 = vpop.f32.mrb[0].mxu0
      %2749 = vdwg.mxu0
      %v2750 = vmax.f32 %v2657, 0.0
      %v2751 = vmax.f32 %v2662, 0.0
      %v2752 = vmax.f32 %v2667, 0.0
      %v2753 = vmax.f32 %v2672, 0.0
      %v2754 = vmax.f32 %v2677, 0.0
      %v2755 = vmax.f32 %v2682, 0.0
      %v2756 = vmax.f32 %v2687, 0.0
      %v2757 = vmax.f32 %v2692, 0.0
      %v2758 = vmax.f32 %v2697, 0.0
      %v2759 = vmax.f32 %v2702, 0.0
      %v2760 = vmax.f32 %v2707, 0.0
      %v2761 = vmax.f32 %v2712, 0.0
      %v2762 = vmax.f32 %v2717, 0.0
      %v2763 = vmax.f32 %v2722, 0.0
      %v2764 = vmax.f32 %v2727, 0.0
      %v2765 = vmax.f32 %v2732, 0.0
      %v2766 = vmax.f32 %v2737, 0.0
      %v2767 = vmax.f32 %v2742, 0.0
      %v2768 = vmax.f32 %v2747, 0.0
      %v2769 = vld [vmem:[%s4] sm:$0xff]
      %v2770 = vld [vmem:[%s4 + $0x8] sm:$0xff]
      %v2771 = vld [vmem:[%s4 + $0x10] sm:$0xff]
      %v2772 = vld [vmem:[%s4 + $0x18] sm:$0xff]
      %v2773 = vlaneseq
      %v2774 = vshrl.u32 %v2773, 7
      %v2775 = vsub.s32 0, %v2774
      %v2776 = vrot.slane %v303, %v2775
      %v2778 = vsel %vm2042, %v2750, 0
      %v2781 = vsel %vm2042, %v2751, 0
      %v2784 = vsel %vm2042, %v2752, 0
      %v2787 = vsel %vm2042, %v2753, 0
      %v2790 = vsel %vm2042, %v2754, 0
      %v2793 = vsel %vm2042, %v2755, 0
      %v2796 = vsel %vm2042, %v2756, 0
      %v2799 = vsel %vm2042, %v2757, 0
      %v2802 = vsel %vm2042, %v2758, 0
      %v2805 = vsel %vm2042, %v2759, 0
      %v2808 = vsel %vm2042, %v2760, 0
      %v2811 = vsel %vm2042, %v2761, 0
      %v2814 = vsel %vm2042, %v2762, 0
      %v2817 = vsel %vm2042, %v2763, 0
      %v2820 = vsel %vm2042, %v2764, 0
      %v2823 = vsel %vm2042, %v2765, 0
      %v2826 = vsel %vm2042, %v2766, 0
      %v2829 = vsel %vm2042, %v2767, 0
      %v2832 = vsel %vm2042, %v2768, 0
      %2834 = vmatprep.subr.mxu0 0.0
      %2835 = vmatpush1.msra.mxu0 %v2769
      %2836 = vmatprep.subr.mxu0 0.0
      %2837 = vmatpush1.msra.mxu0 %v2770
      %2838 = vmatprep.subr.mxu0 0.0
      %2839 = vmatpush1.msra.mxu0 %v2771
      %2840 = vmatprep.subr.mxu0 0.0
      %2841 = vmatpush1.msra.mxu0 %v2772
      %2842 = vmatprep.subr.mxu0 0.0
      %2843 = vmatpush1.msra.mxu0 0.0
      %2844 = vmatprep.subr.mxu0 0.0
      %2845 = vmatpush1.msra.mxu0 0.0
      %2846 = vmatprep.subr.mxu0 0.0
      %2847 = vmatpush1.msra.mxu0 0.0
      %2848 = vmatprep.subr.mxu0 0.0
      %2849 = vmatpush1.msra.mxu0 0.0
      %2850 = vmatprep.subr.mxu0 0.0
      %2851 = vmatpush1.msra.mxu0 0.0
      %2852 = vmatprep.subr.mxu0 0.0
      %2853 = vmatpush1.msra.mxu0 0.0
      %2854 = vmatprep.subr.mxu0 0.0
      %2855 = vmatpush1.msra.mxu0 0.0
      %2856 = vmatprep.subr.mxu0 0.0
      %2857 = vmatpush1.msra.mxu0 0.0
      %2858 = vmatprep.subr.mxu0 0.0
      %2859 = vmatpush1.msra.mxu0 0.0
      %2860 = vmatprep.subr.mxu0 0.0
      %2861 = vmatpush1.msra.mxu0 0.0
      %2862 = vmatprep.subr.mxu0 0.0
      %2863 = vmatpush1.msra.mxu0 0.0
      %2864 = vmatprep.subr.mxu0 0.0
      %2865 = vmatpush1.msra.mxu0 0.0
      %2866 = vmatprep.subr.mxu0 0.0
      %2867 = vmatpush1.msra.mxu0 0.0
      %2868 = vmatprep.subr.mxu0 0.0
      %2869 = vmatpush1.msra.mxu0 0.0
      %2870 = vmatprep.subr.mxu0 0.0
      %2871 = vmatpush1.msra.mxu0 0.0
      %2872 = vmatprep.subr.mxu0 0.0
      %2873 = vmatpush1.msra.mxu0 0.0
      %2874 = vmatprep.subr.mxu0 0.0
      %2875 = vmatpush1.msra.mxu0 0.0
      %2876 = vmatprep.subr.mxu0 0.0
      %2877 = vmatpush1.msra.mxu0 0.0
      %2878 = vmatprep.subr.mxu0 0.0
      %2879 = vmatpush1.msra.mxu0 0.0
      %2880 = vmatprep.subr.mxu0 0.0
      %2881 = vmatpush1.msra.mxu0 0.0
      %2882 = vmatprep.subr.mxu0 0.0
      %2883 = vmatpush1.msra.mxu0 0.0
      %2884 = vmatprep.subr.mxu0 0.0
      %2885 = vmatpush1.msra.mxu0 0.0
      %2886 = vmatprep.subr.mxu0 0.0
      %2887 = vmatpush1.msra.mxu0 0.0
      %2888 = vmatprep.subr.mxu0 0.0
      %2889 = vmatpush1.msra.mxu0 0.0
      %2890 = vmatprep.subr.mxu0 0.0
      %2891 = vmatpush1.msra.mxu0 0.0
      %2892 = vmatprep.subr.mxu0 0.0
      %2893 = vmatpush1.msra.mxu0 0.0
      %2894 = vmatprep.subr.mxu0 0.0
      %2895 = vmatpush1.msra.mxu0 0.0
      %2896 = vmatprep.subr.mxu0 0.0
      %2897 = vmatpush1.msra.mxu0 0.0
      %2898 = vmatprep.mubr.f32.mxu0 0.0
      %2899 = vmatmul.mubr.f32.gmra.mrb[0].mxu0 %v2778
      %v2900 = vpop.f32.mrb[0].mxu0
      %v2901 = vadd.f32 %v2776, %v2900
      %v2902 = vpop.f32.mrb[0].mxu0
      %2903 = vmatprep.mubr.f32.mxu0 0.0
      %2904 = vmatmul.mubr.f32.gmra.mrb[0].mxu0 %v2781
      %v2905 = vpop.f32.mrb[0].mxu0
      %v2906 = vadd.f32 %v2776, %v2905
      %v2907 = vpop.f32.mrb[0].mxu0
      %2908 = vmatprep.mubr.f32.mxu0 0.0
      %2909 = vmatmul.mubr.f32.gmra.mrb[0].mxu0 %v2784
      %v2910 = vpop.f32.mrb[0].mxu0
      %v2911 = vadd.f32 %v2776, %v2910
      %v2912 = vpop.f32.mrb[0].mxu0
      %2913 = vmatprep.mubr.f32.mxu0 0.0
      %2914 = vmatmul.mubr.f32.gmra.mrb[0].mxu0 %v2787
      %v2915 = vpop.f32.mrb[0].mxu0
      %v2916 = vadd.f32 %v2776, %v2915
      %v2917 = vpop.f32.mrb[0].mxu0
      %2918 = vmatprep.mubr.f32.mxu0 0.0
      %2919 = vmatmul.mubr.f32.gmra.mrb[0].mxu0 %v2790
      %v2920 = vpop.f32.mrb[0].mxu0
      %v2921 = vadd.f32 %v2776, %v2920
      %v2922 = vpop.f32.mrb[0].mxu0
      %2923 = vmatprep.mubr.f32.mxu0 0.0
      %2924 = vmatmul.mubr.f32.gmra.mrb[0].mxu0 %v2793
      %v2925 = vpop.f32.mrb[0].mxu0
      %v2926 = vadd.f32 %v2776, %v2925
      %v2927 = vpop.f32.mrb[0].mxu0
      %2928 = vmatprep.mubr.f32.mxu0 0.0
      %2929 = vmatmul.mubr.f32.gmra.mrb[0].mxu0 %v2796
      %v2930 = vpop.f32.mrb[0].mxu0
      %v2931 = vadd.f32 %v2776, %v2930
      %v2932 = vpop.f32.mrb[0].mxu0
      %2933 = vmatprep.mubr.f32.mxu0 0.0
      %2934 = vmatmul.mubr.f32.gmra.mrb[0].mxu0 %v2799
      %v2935 = vpop.f32.mrb[0].mxu0
      %v2936 = vadd.f32 %v2776, %v2935
      %v2937 = vpop.f32.mrb[0].mxu0
      %2938 = vmatprep.mubr.f32.mxu0 0.0
      %2939 = vmatmul.mubr.f32.gmra.mrb[0].mxu0 %v2802
      %v2940 = vpop.f32.mrb[0].mxu0
      %v2941 = vadd.f32 %v2776, %v2940
      %v2942 = vpop.f32.mrb[0].mxu0
      %2943 = vmatprep.mubr.f32.mxu0 0.0
      %2944 = vmatmul.mubr.f32.gmra.mrb[0].mxu0 %v2805
      %v2945 = vpop.f32.mrb[0].mxu0
      %v2946 = vadd.f32 %v2776, %v2945
      %v2947 = vpop.f32.mrb[0].mxu0
      %2948 = vmatprep.mubr.f32.mxu0 0.0
      %2949 = vmatmul.mubr.f32.gmra.mrb[0].mxu0 %v2808
      %v2950 = vpop.f32.mrb[0].mxu0
      %v2951 = vadd.f32 %v2776, %v2950
      %v2952 = vpop.f32.mrb[0].mxu0
      %2953 = vmatprep.mubr.f32.mxu0 0.0
      %2954 = vmatmul.mubr.f32.gmra.mrb[0].mxu0 %v2811
      %v2955 = vpop.f32.mrb[0].mxu0
      %v2956 = vadd.f32 %v2776, %v2955
      %v2957 = vpop.f32.mrb[0].mxu0
      %2958 = vmatprep.mubr.f32.mxu0 0.0
      %2959 = vmatmul.mubr.f32.gmra.mrb[0].mxu0 %v2814
      %v2960 = vpop.f32.mrb[0].mxu0
      %v2961 = vadd.f32 %v2776, %v2960
      %v2962 = vpop.f32.mrb[0].mxu0
      %2963 = vmatprep.mubr.f32.mxu0 0.0
      %2964 = vmatmul.mubr.f32.gmra.mrb[0].mxu0 %v2817
      %v2965 = vpop.f32.mrb[0].mxu0
      %v2966 = vadd.f32 %v2776, %v2965
      %v2967 = vpop.f32.mrb[0].mxu0
      %2968 = vmatprep.mubr.f32.mxu0 0.0
      %2969 = vmatmul.mubr.f32.gmra.mrb[0].mxu0 %v2820
      %v2970 = vpop.f32.mrb[0].mxu0
      %v2971 = vadd.f32 %v2776, %v2970
      %v2972 = vpop.f32.mrb[0].mxu0
      %2973 = vmatprep.mubr.f32.mxu0 0.0
      %2974 = vmatmul.mubr.f32.gmra.mrb[0].mxu0 %v2823
      %v2975 = vpop.f32.mrb[0].mxu0
      %v2976 = vadd.f32 %v2776, %v2975
      %v2977 = vpop.f32.mrb[0].mxu0
      %2978 = vmatprep.mubr.f32.mxu0 0.0
      %2979 = vmatmul.mubr.f32.gmra.mrb[0].mxu0 %v2826
      %v2980 = vpop.f32.mrb[0].mxu0
      %v2981 = vadd.f32 %v2776, %v2980
      %v2982 = vpop.f32.mrb[0].mxu0
      %2983 = vmatprep.mubr.f32.mxu0 0.0
      %2984 = vmatmul.mubr.f32.gmra.mrb[0].mxu0 %v2829
      %v2985 = vpop.f32.mrb[0].mxu0
      %v2986 = vadd.f32 %v2776, %v2985
      %v2987 = vpop.f32.mrb[0].mxu0
      %2988 = vmatprep.mubr.f32.mxu0 0.0
      %2989 = vmatmul.mubr.f32.gmra.mrb[0].mxu0 %v2832
      %v2990 = vpop.f32.mrb[0].mxu0
      %v2991 = vadd.f32 %v2776, %v2990
      %v2992 = vpop.f32.mrb[0].mxu0
      %2993 = vdwg.mxu0
      %v2994 = vmax.f32 %v2901, 0.0
      %v2995 = vmax.f32 %v2906, 0.0
      %v2996 = vmax.f32 %v2911, 0.0
      %v2997 = vmax.f32 %v2916, 0.0
      %v2998 = vmax.f32 %v2921, 0.0
      %v2999 = vmax.f32 %v2926, 0.0
      %v3000 = vmax.f32 %v2931, 0.0
      %v3001 = vmax.f32 %v2936, 0.0
      %v3002 = vmax.f32 %v2941, 0.0
      %v3003 = vmax.f32 %v2946, 0.0
      %v3004 = vmax.f32 %v2951, 0.0
      %v3005 = vmax.f32 %v2956, 0.0
      %v3006 = vmax.f32 %v2961, 0.0
      %v3007 = vmax.f32 %v2966, 0.0
      %v3008 = vmax.f32 %v2971, 0.0
      %v3009 = vmax.f32 %v2976, 0.0
      %v3010 = vmax.f32 %v2981, 0.0
      %v3011 = vmax.f32 %v2986, 0.0
      %v3012 = vmax.f32 %v2991, 0.0
      %v3013 = vld [vmem:[%s5] sm:$0xff]
      %v3014 = vld [vmem:[%s5 + $0x8] sm:$0xff]
      %v3015 = vld [vmem:[%s5 + $0x10] sm:$0xff]
      %v3016 = vld [vmem:[%s5 + $0x18] sm:$0xff]
      %v3017 = vld [vmem:[%s5 + $0x20] sm:$0xff]
      %v3018 = vld [vmem:[%s5 + $0x28] sm:$0xff]
      %v3019 = vld [vmem:[%s5 + $0x30] sm:$0xff]
      %v3020 = vld [vmem:[%s5 + $0x38] sm:$0xff]
      %v3021 = vlaneseq
      %v3022 = vshrl.u32 %v3021, 7
      %v3023 = vsub.s32 0, %v3022
      %v3024 = vrot.slane %v304, %v3023
      %v3026 = vsel %vm2532, %v2994, 0
      %v3029 = vsel %vm2532, %v2995, 0
      %v3032 = vsel %vm2532, %v2996, 0
      %v3035 = vsel %vm2532, %v2997, 0
      %v3038 = vsel %vm2532, %v2998, 0
      %v3041 = vsel %vm2532, %v2999, 0
      %v3044 = vsel %vm2532, %v3000, 0
      %v3047 = vsel %vm2532, %v3001, 0
      %v3050 = vsel %vm2532, %v3002, 0
      %v3053 = vsel %vm2532, %v3003, 0
      %v3056 = vsel %vm2532, %v3004, 0
      %v3059 = vsel %vm2532, %v3005, 0
      %v3062 = vsel %vm2532, %v3006, 0
      %v3065 = vsel %vm2532, %v3007, 0
      %v3068 = vsel %vm2532, %v3008, 0
      %v3071 = vsel %vm2532, %v3009, 0
      %v3074 = vsel %vm2532, %v3010, 0
      %v3077 = vsel %vm2532, %v3011, 0
      %v3080 = vsel %vm2532, %v3012, 0
      %3082 = vmatprep.subr.mxu0 0.0
      %3083 = vmatpush1.msra.mxu0 %v3013
      %3084 = vmatprep.subr.mxu0 0.0
      %3085 = vmatpush1.msra.mxu0 %v3014
      %3086 = vmatprep.subr.mxu0 0.0
      %3087 = vmatpush1.msra.mxu0 %v3015
      %3088 = vmatprep.subr.mxu0 0.0
      %3089 = vmatpush1.msra.mxu0 %v3016
      %3090 = vmatprep.subr.mxu0 0.0
      %3091 = vmatpush1.msra.mxu0 %v3017
      %3092 = vmatprep.subr.mxu0 0.0
      %3093 = vmatpush1.msra.mxu0 %v3018
      %3094 = vmatprep.subr.mxu0 0.0
      %3095 = vmatpush1.msra.mxu0 %v3019
      %3096 = vmatprep.subr.mxu0 0.0
      %3097 = vmatpush1.msra.mxu0 %v3020
      %3098 = vmatprep.subr.mxu0 0.0
      %3099 = vmatpush1.msra.mxu0 0.0
      %3100 = vmatprep.subr.mxu0 0.0
      %3101 = vmatpush1.msra.mxu0 0.0
      %3102 = vmatprep.subr.mxu0 0.0
      %3103 = vmatpush1.msra.mxu0 0.0
      %3104 = vmatprep.subr.mxu0 0.0
      %3105 = vmatpush1.msra.mxu0 0.0
      %3106 = vmatprep.subr.mxu0 0.0
      %3107 = vmatpush1.msra.mxu0 0.0
      %3108 = vmatprep.subr.mxu0 0.0
      %3109 = vmatpush1.msra.mxu0 0.0
      %3110 = vmatprep.subr.mxu0 0.0
      %3111 = vmatpush1.msra.mxu0 0.0
      %3112 = vmatprep.subr.mxu0 0.0
      %3113 = vmatpush1.msra.mxu0 0.0
      %3114 = vmatprep.subr.mxu0 0.0
      %3115 = vmatpush1.msra.mxu0 0.0
      %3116 = vmatprep.subr.mxu0 0.0
      %3117 = vmatpush1.msra.mxu0 0.0
      %3118 = vmatprep.subr.mxu0 0.0
      %3119 = vmatpush1.msra.mxu0 0.0
      %3120 = vmatprep.subr.mxu0 0.0
      %3121 = vmatpush1.msra.mxu0 0.0
      %3122 = vmatprep.subr.mxu0 0.0
      %3123 = vmatpush1.msra.mxu0 0.0
      %3124 = vmatprep.subr.mxu0 0.0
      %3125 = vmatpush1.msra.mxu0 0.0
      %3126 = vmatprep.subr.mxu0 0.0
      %3127 = vmatpush1.msra.mxu0 0.0
      %3128 = vmatprep.subr.mxu0 0.0
      %3129 = vmatpush1.msra.mxu0 0.0
      %3130 = vmatprep.subr.mxu0 0.0
      %3131 = vmatpush1.msra.mxu0 0.0
      %3132 = vmatprep.subr.mxu0 0.0
      %3133 = vmatpush1.msra.mxu0 0.0
      %3134 = vmatprep.subr.mxu0 0.0
      %3135 = vmatpush1.msra.mxu0 0.0
      %3136 = vmatprep.subr.mxu0 0.0
      %3137 = vmatpush1.msra.mxu0 0.0
      %3138 = vmatprep.subr.mxu0 0.0
      %3139 = vmatpush1.msra.mxu0 0.0
      %3140 = vmatprep.subr.mxu0 0.0
      %3141 = vmatpush1.msra.mxu0 0.0
      %3142 = vmatprep.subr.mxu0 0.0
      %3143 = vmatpush1.msra.mxu0 0.0
      %3144 = vmatprep.subr.mxu0 0.0
      %3145 = vmatpush1.msra.mxu0 0.0
      %3146 = vmatprep.mubr.f32.mxu0 0.0
      %3147 = vmatmul.mubr.f32.gmra.mrb[0].mxu0 %v3026
      %v3148 = vpop.f32.mrb[0].mxu0
      %v3149 = vadd.f32 %v3024, %v3148
      %v3150 = vpop.f32.mrb[0].mxu0
      %3151 = vmatprep.mubr.f32.mxu0 0.0
      %3152 = vmatmul.mubr.f32.gmra.mrb[0].mxu0 %v3029
      %v3153 = vpop.f32.mrb[0].mxu0
      %v3154 = vadd.f32 %v3024, %v3153
      %v3155 = vpop.f32.mrb[0].mxu0
      %3156 = vmatprep.mubr.f32.mxu0 0.0
      %3157 = vmatmul.mubr.f32.gmra.mrb[0].mxu0 %v3032
      %v3158 = vpop.f32.mrb[0].mxu0
      %v3159 = vadd.f32 %v3024, %v3158
      %v3160 = vpop.f32.mrb[0].mxu0
      %3161 = vmatprep.mubr.f32.mxu0 0.0
      %3162 = vmatmul.mubr.f32.gmra.mrb[0].mxu0 %v3035
      %v3163 = vpop.f32.mrb[0].mxu0
      %v3164 = vadd.f32 %v3024, %v3163
      %v3165 = vpop.f32.mrb[0].mxu0
      %3166 = vmatprep.mubr.f32.mxu0 0.0
      %3167 = vmatmul.mubr.f32.gmra.mrb[0].mxu0 %v3038
      %v3168 = vpop.f32.mrb[0].mxu0
      %v3169 = vadd.f32 %v3024, %v3168
      %v3170 = vpop.f32.mrb[0].mxu0
      %3171 = vmatprep.mubr.f32.mxu0 0.0
      %3172 = vmatmul.mubr.f32.gmra.mrb[0].mxu0 %v3041
      %v3173 = vpop.f32.mrb[0].mxu0
      %v3174 = vadd.f32 %v3024, %v3173
      %v3175 = vpop.f32.mrb[0].mxu0
      %3176 = vmatprep.mubr.f32.mxu0 0.0
      %3177 = vmatmul.mubr.f32.gmra.mrb[0].mxu0 %v3044
      %v3178 = vpop.f32.mrb[0].mxu0
      %v3179 = vadd.f32 %v3024, %v3178
      %v3180 = vpop.f32.mrb[0].mxu0
      %3181 = vmatprep.mubr.f32.mxu0 0.0
      %3182 = vmatmul.mubr.f32.gmra.mrb[0].mxu0 %v3047
      %v3183 = vpop.f32.mrb[0].mxu0
      %v3184 = vadd.f32 %v3024, %v3183
      %v3185 = vpop.f32.mrb[0].mxu0
      %3186 = vmatprep.mubr.f32.mxu0 0.0
      %3187 = vmatmul.mubr.f32.gmra.mrb[0].mxu0 %v3050
      %v3188 = vpop.f32.mrb[0].mxu0
      %v3189 = vadd.f32 %v3024, %v3188
      %v3190 = vpop.f32.mrb[0].mxu0
      %3191 = vmatprep.mubr.f32.mxu0 0.0
      %3192 = vmatmul.mubr.f32.gmra.mrb[0].mxu0 %v3053
      %v3193 = vpop.f32.mrb[0].mxu0
      %v3194 = vadd.f32 %v3024, %v3193
      %v3195 = vpop.f32.mrb[0].mxu0
      %3196 = vmatprep.mubr.f32.mxu0 0.0
      %3197 = vmatmul.mubr.f32.gmra.mrb[0].mxu0 %v3056
      %v3198 = vpop.f32.mrb[0].mxu0
      %v3199 = vadd.f32 %v3024, %v3198
      %v3200 = vpop.f32.mrb[0].mxu0
      %3201 = vmatprep.mubr.f32.mxu0 0.0
      %3202 = vmatmul.mubr.f32.gmra.mrb[0].mxu0 %v3059
      %v3203 = vpop.f32.mrb[0].mxu0
      %v3204 = vadd.f32 %v3024, %v3203
      %v3205 = vpop.f32.mrb[0].mxu0
      %3206 = vmatprep.mubr.f32.mxu0 0.0
      %3207 = vmatmul.mubr.f32.gmra.mrb[0].mxu0 %v3062
      %v3208 = vpop.f32.mrb[0].mxu0
      %v3209 = vadd.f32 %v3024, %v3208
      %v3210 = vpop.f32.mrb[0].mxu0
      %3211 = vmatprep.mubr.f32.mxu0 0.0
      %3212 = vmatmul.mubr.f32.gmra.mrb[0].mxu0 %v3065
      %v3213 = vpop.f32.mrb[0].mxu0
      %v3214 = vadd.f32 %v3024, %v3213
      %v3215 = vpop.f32.mrb[0].mxu0
      %3216 = vmatprep.mubr.f32.mxu0 0.0
      %3217 = vmatmul.mubr.f32.gmra.mrb[0].mxu0 %v3068
      %v3218 = vpop.f32.mrb[0].mxu0
      %v3219 = vadd.f32 %v3024, %v3218
      %v3220 = vpop.f32.mrb[0].mxu0
      %3221 = vmatprep.mubr.f32.mxu0 0.0
      %3222 = vmatmul.mubr.f32.gmra.mrb[0].mxu0 %v3071
      %v3223 = vpop.f32.mrb[0].mxu0
      %v3224 = vadd.f32 %v3024, %v3223
      %v3225 = vpop.f32.mrb[0].mxu0
      %3226 = vmatprep.mubr.f32.mxu0 0.0
      %3227 = vmatmul.mubr.f32.gmra.mrb[0].mxu0 %v3074
      %v3228 = vpop.f32.mrb[0].mxu0
      %v3229 = vadd.f32 %v3024, %v3228
      %v3230 = vpop.f32.mrb[0].mxu0
      %3231 = vmatprep.mubr.f32.mxu0 0.0
      %3232 = vmatmul.mubr.f32.gmra.mrb[0].mxu0 %v3077
      %v3233 = vpop.f32.mrb[0].mxu0
      %v3234 = vadd.f32 %v3024, %v3233
      %v3235 = vpop.f32.mrb[0].mxu0
      %3236 = vmatprep.mubr.f32.mxu0 0.0
      %3237 = vmatmul.mubr.f32.gmra.mrb[0].mxu0 %v3080
      %v3238 = vpop.f32.mrb[0].mxu0
      %v3239 = vadd.f32 %v3024, %v3238
      %v3240 = vpop.f32.mrb[0].mxu0
      %3241 = vdwg.mxu0
      %v3242 = vsub.f32 0.0, %v3149
      %v3243 = vsub.f32 0.0, %v3154
      %v3244 = vsub.f32 0.0, %v3159
      %v3245 = vsub.f32 0.0, %v3164
      %v3246 = vsub.f32 0.0, %v3169
      %v3247 = vsub.f32 0.0, %v3174
      %v3248 = vsub.f32 0.0, %v3179
      %v3249 = vsub.f32 0.0, %v3184
      %v3250 = vsub.f32 0.0, %v3189
      %v3251 = vsub.f32 0.0, %v3194
      %v3252 = vsub.f32 0.0, %v3199
      %v3253 = vsub.f32 0.0, %v3204
      %v3254 = vsub.f32 0.0, %v3209
      %v3255 = vsub.f32 0.0, %v3214
      %v3256 = vsub.f32 0.0, %v3219
      %v3257 = vsub.f32 0.0, %v3224
      %v3258 = vsub.f32 0.0, %v3229
      %v3259 = vsub.f32 0.0, %v3234
      %v3260 = vsub.f32 0.0, %v3239
      %v3261 = vmul.f32 %v3242, 1.442695
      %v3262 = vpow.pop %v3261
      %v3263 = vmul.f32 %v3243, 1.442695
      %v3264 = vpow.pop %v3263
      %v3265 = vmul.f32 %v3244, 1.442695
      %v3266 = vpow.pop %v3265
      %v3267 = vmul.f32 %v3245, 1.442695
      %v3268 = vpow.pop %v3267
      %v3269 = vmul.f32 %v3246, 1.442695
      %v3270 = vpow.pop %v3269
      %v3271 = vmul.f32 %v3247, 1.442695
      %v3272 = vpow.pop %v3271
      %v3273 = vmul.f32 %v3248, 1.442695
      %v3274 = vpow.pop %v3273
      %v3275 = vmul.f32 %v3249, 1.442695
      %v3276 = vpow.pop %v3275
      %v3277 = vmul.f32 %v3250, 1.442695
      %v3278 = vpow.pop %v3277
      %v3279 = vmul.f32 %v3251, 1.442695
      %v3280 = vpow.pop %v3279
      %v3281 = vmul.f32 %v3252, 1.442695
      %v3282 = vpow.pop %v3281
      %v3283 = vmul.f32 %v3253, 1.442695
      %v3284 = vpow.pop %v3283
      %v3285 = vmul.f32 %v3254, 1.442695
      %v3286 = vpow.pop %v3285
      %v3287 = vmul.f32 %v3255, 1.442695
      %v3288 = vpow.pop %v3287
      %v3289 = vmul.f32 %v3256, 1.442695
      %v3290 = vpow.pop %v3289
      %v3291 = vmul.f32 %v3257, 1.442695
      %v3292 = vpow.pop %v3291
      %v3293 = vmul.f32 %v3258, 1.442695
      %v3294 = vpow.pop %v3293
      %v3295 = vmul.f32 %v3259, 1.442695
      %v3296 = vpow.pop %v3295
      %v3297 = vmul.f32 %v3260, 1.442695
      %v3298 = vpow.pop %v3297
      %v3299 = vadd.f32 %v3262, 1.0
      %v3300 = vadd.f32 %v3264, 1.0
      %v3301 = vadd.f32 %v3266, 1.0
      %v3302 = vadd.f32 %v3268, 1.0
      %v3303 = vadd.f32 %v3270, 1.0
      %v3304 = vadd.f32 %v3272, 1.0
      %v3305 = vadd.f32 %v3274, 1.0
      %v3306 = vadd.f32 %v3276, 1.0
      %v3307 = vadd.f32 %v3278, 1.0
      %v3308 = vadd.f32 %v3280, 1.0
      %v3309 = vadd.f32 %v3282, 1.0
      %v3310 = vadd.f32 %v3284, 1.0
      %v3311 = vadd.f32 %v3286, 1.0
      %v3312 = vadd.f32 %v3288, 1.0
      %v3313 = vadd.f32 %v3290, 1.0
      %v3314 = vadd.f32 %v3292, 1.0
      %v3315 = vadd.f32 %v3294, 1.0
      %v3316 = vadd.f32 %v3296, 1.0
      %v3317 = vadd.f32 %v3298, 1.0
      %v3318 = vrcp.pop %v3299
      %v3319 = vmul.f32 1.0, %v3318
      %v3320 = vrcp.pop %v3300
      %v3321 = vmul.f32 1.0, %v3320
      %v3322 = vrcp.pop %v3301
      %v3323 = vmul.f32 1.0, %v3322
      %v3324 = vrcp.pop %v3302
      %v3325 = vmul.f32 1.0, %v3324
      %v3326 = vrcp.pop %v3303
      %v3327 = vmul.f32 1.0, %v3326
      %v3328 = vrcp.pop %v3304
      %v3329 = vmul.f32 1.0, %v3328
      %v3330 = vrcp.pop %v3305
      %v3331 = vmul.f32 1.0, %v3330
      %v3332 = vrcp.pop %v3306
      %v3333 = vmul.f32 1.0, %v3332
      %v3334 = vrcp.pop %v3307
      %v3335 = vmul.f32 1.0, %v3334
      %v3336 = vrcp.pop %v3308
      %v3337 = vmul.f32 1.0, %v3336
      %v3338 = vrcp.pop %v3309
      %v3339 = vmul.f32 1.0, %v3338
      %v3340 = vrcp.pop %v3310
      %v3341 = vmul.f32 1.0, %v3340
      %v3342 = vrcp.pop %v3311
      %v3343 = vmul.f32 1.0, %v3342
      %v3344 = vrcp.pop %v3312
      %v3345 = vmul.f32 1.0, %v3344
      %v3346 = vrcp.pop %v3313
      %v3347 = vmul.f32 1.0, %v3346
      %v3348 = vrcp.pop %v3314
      %v3349 = vmul.f32 1.0, %v3348
      %v3350 = vrcp.pop %v3315
      %v3351 = vmul.f32 1.0, %v3350
      %v3352 = vrcp.pop %v3316
      %v3353 = vmul.f32 1.0, %v3352
      %v3354 = vrcp.pop %v3317
      %v3355 = vmul.f32 1.0, %v3354
      %v3356 = vmax.f32 %v3319, 1e-08
      %v3357 = vmax.f32 %v3321, 1e-08
      %v3358 = vmax.f32 %v3323, 1e-08
      %v3359 = vmax.f32 %v3325, 1e-08
      %v3360 = vmax.f32 %v3327, 1e-08
      %v3361 = vmax.f32 %v3329, 1e-08
      %v3362 = vmax.f32 %v3331, 1e-08
      %v3363 = vmax.f32 %v3333, 1e-08
      %v3364 = vmax.f32 %v3335, 1e-08
      %v3365 = vmax.f32 %v3337, 1e-08
      %v3366 = vmax.f32 %v3339, 1e-08
      %v3367 = vmax.f32 %v3341, 1e-08
      %v3368 = vmax.f32 %v3343, 1e-08
      %v3369 = vmax.f32 %v3345, 1e-08
      %v3370 = vmax.f32 %v3347, 1e-08
      %v3371 = vmax.f32 %v3349, 1e-08
      %v3372 = vmax.f32 %v3351, 1e-08
      %v3373 = vmax.f32 %v3353, 1e-08
      %v3374 = vmax.f32 %v3355, 1e-08
      %v3375 = vmin.f32 %v3356, 1.0
      %v3376 = vmin.f32 %v3357, 1.0
      %v3377 = vmin.f32 %v3358, 1.0
      %v3378 = vmin.f32 %v3359, 1.0
      %v3379 = vmin.f32 %v3360, 1.0
      %v3380 = vmin.f32 %v3361, 1.0
      %v3381 = vmin.f32 %v3362, 1.0
      %v3382 = vmin.f32 %v3363, 1.0
      %v3383 = vmin.f32 %v3364, 1.0
      %v3384 = vmin.f32 %v3365, 1.0
      %v3385 = vmin.f32 %v3366, 1.0
      %v3386 = vmin.f32 %v3367, 1.0
      %v3387 = vmin.f32 %v3368, 1.0
      %v3388 = vmin.f32 %v3369, 1.0
      %v3389 = vmin.f32 %v3370, 1.0
      %v3390 = vmin.f32 %v3371, 1.0
      %v3391 = vmin.f32 %v3372, 1.0
      %v3392 = vmin.f32 %v3373, 1.0
      %v3393 = vmin.f32 %v3374, 1.0
      %vm3394 = vcmp.ge.s32.totalorder %v308, 1
      %vm3395 = vcmp.le.s32.totalorder %v308, 4
      %vm3396 = vmand %vm3394, %vm3395
      %v3397 = vsel %vm3396, %v3149, -inf
      %v3398 = vsel %vm3396, %v3154, -inf
      %v3399 = vsel %vm3396, %v3159, -inf
      %v3400 = vsel %vm3396, %v3164, -inf
      %v3401 = vsel %vm3396, %v3169, -inf
      %v3402 = vsel %vm3396, %v3174, -inf
      %v3403 = vsel %vm3396, %v3179, -inf
      %v3404 = vsel %vm3396, %v3184, -inf
      %v3405 = vsel %vm3396, %v3189, -inf
      %v3406 = vsel %vm3396, %v3194, -inf
      %v3407 = vsel %vm3396, %v3199, -inf
      %v3408 = vsel %vm3396, %v3204, -inf
      %v3409 = vsel %vm3396, %v3209, -inf
      %v3410 = vsel %vm3396, %v3214, -inf
      %v3411 = vsel %vm3396, %v3219, -inf
      %v3412 = vsel %vm3396, %v3224, -inf
      %v3413 = vsel %vm3396, %v3229, -inf
      %v3414 = vsel %vm3396, %v3234, -inf
      %v3415 = vsel %vm3396, %v3239, -inf
      %vm3416 = vcmask 64512
      %v3417 = vsel %vm3416, %v3397, -inf
      %3418 = vmax.xlane.f32.xlu0 %v3417
      %v3419 = vpop.xlane.xlu0 %3418
      %v3420 = vsel %vm3416, %v3398, -inf
      %3421 = vmax.xlane.f32.xlu0 %v3420
      %v3422 = vpop.xlane.xlu0 %3421
      %v3423 = vsel %vm3416, %v3399, -inf
      %3424 = vmax.xlane.f32.xlu0 %v3423
      %v3425 = vpop.xlane.xlu0 %3424
      %v3426 = vsel %vm3416, %v3400, -inf
      %3427 = vmax.xlane.f32.xlu0 %v3426
      %v3428 = vpop.xlane.xlu0 %3427
      %v3429 = vsel %vm3416, %v3401, -inf
      %3430 = vmax.xlane.f32.xlu0 %v3429
      %v3431 = vpop.xlane.xlu0 %3430
      %v3432 = vsel %vm3416, %v3402, -inf
      %3433 = vmax.xlane.f32.xlu0 %v3432
      %v3434 = vpop.xlane.xlu0 %3433
      %v3435 = vsel %vm3416, %v3403, -inf
      %3436 = vmax.xlane.f32.xlu0 %v3435
      %v3437 = vpop.xlane.xlu0 %3436
      %v3438 = vsel %vm3416, %v3404, -inf
      %3439 = vmax.xlane.f32.xlu0 %v3438
      %v3440 = vpop.xlane.xlu0 %3439
      %v3441 = vsel %vm3416, %v3405, -inf
      %3442 = vmax.xlane.f32.xlu0 %v3441
      %v3443 = vpop.xlane.xlu0 %3442
      %v3444 = vsel %vm3416, %v3406, -inf
      %3445 = vmax.xlane.f32.xlu0 %v3444
      %v3446 = vpop.xlane.xlu0 %3445
      %v3447 = vsel %vm3416, %v3407, -inf
      %3448 = vmax.xlane.f32.xlu0 %v3447
      %v3449 = vpop.xlane.xlu0 %3448
      %v3450 = vsel %vm3416, %v3408, -inf
      %3451 = vmax.xlane.f32.xlu0 %v3450
      %v3452 = vpop.xlane.xlu0 %3451
      %v3453 = vsel %vm3416, %v3409, -inf
      %3454 = vmax.xlane.f32.xlu0 %v3453
      %v3455 = vpop.xlane.xlu0 %3454
      %v3456 = vsel %vm3416, %v3410, -inf
      %3457 = vmax.xlane.f32.xlu0 %v3456
      %v3458 = vpop.xlane.xlu0 %3457
      %v3459 = vsel %vm3416, %v3411, -inf
      %3460 = vmax.xlane.f32.xlu0 %v3459
      %v3461 = vpop.xlane.xlu0 %3460
      %v3462 = vsel %vm3416, %v3412, -inf
      %3463 = vmax.xlane.f32.xlu0 %v3462
      %v3464 = vpop.xlane.xlu0 %3463
      %v3465 = vsel %vm3416, %v3413, -inf
      %3466 = vmax.xlane.f32.xlu0 %v3465
      %v3467 = vpop.xlane.xlu0 %3466
      %v3468 = vsel %vm3416, %v3414, -inf
      %3469 = vmax.xlane.f32.xlu0 %v3468
      %v3470 = vpop.xlane.xlu0 %3469
      %v3471 = vsel %vm3416, %v3415, -inf
      %3472 = vmax.xlane.f32.xlu0 %v3471
      %v3473 = vpop.xlane.xlu0 %3472
      %v3474 = vsub.f32 %v3397, %v3419
      %v3475 = vsub.f32 %v3398, %v3422
      %v3476 = vsub.f32 %v3399, %v3425
      %v3477 = vsub.f32 %v3400, %v3428
      %v3478 = vsub.f32 %v3401, %v3431
      %v3479 = vsub.f32 %v3402, %v3434
      %v3480 = vsub.f32 %v3403, %v3437
      %v3481 = vsub.f32 %v3404, %v3440
      %v3482 = vsub.f32 %v3405, %v3443
      %v3483 = vsub.f32 %v3406, %v3446
      %v3484 = vsub.f32 %v3407, %v3449
      %v3485 = vsub.f32 %v3408, %v3452
      %v3486 = vsub.f32 %v3409, %v3455
      %v3487 = vsub.f32 %v3410, %v3458
      %v3488 = vsub.f32 %v3411, %v3461
      %v3489 = vsub.f32 %v3412, %v3464
      %v3490 = vsub.f32 %v3413, %v3467
      %v3491 = vsub.f32 %v3414, %v3470
      %v3492 = vsub.f32 %v3415, %v3473
      %v3493 = vmul.f32 %v3474, 1.442695
      %v3494 = vpow.pop %v3493
      %v3495 = vmul.f32 %v3475, 1.442695
      %v3496 = vpow.pop %v3495
      %v3497 = vmul.f32 %v3476, 1.442695
      %v3498 = vpow.pop %v3497
      %v3499 = vmul.f32 %v3477, 1.442695
      %v3500 = vpow.pop %v3499
      %v3501 = vmul.f32 %v3478, 1.442695
      %v3502 = vpow.pop %v3501
      %v3503 = vmul.f32 %v3479, 1.442695
      %v3504 = vpow.pop %v3503
      %v3505 = vmul.f32 %v3480, 1.442695
      %v3506 = vpow.pop %v3505
      %v3507 = vmul.f32 %v3481, 1.442695
      %v3508 = vpow.pop %v3507
      %v3509 = vmul.f32 %v3482, 1.442695
      %v3510 = vpow.pop %v3509
      %v3511 = vmul.f32 %v3483, 1.442695
      %v3512 = vpow.pop %v3511
      %v3513 = vmul.f32 %v3484, 1.442695
      %v3514 = vpow.pop %v3513
      %v3515 = vmul.f32 %v3485, 1.442695
      %v3516 = vpow.pop %v3515
      %v3517 = vmul.f32 %v3486, 1.442695
      %v3518 = vpow.pop %v3517
      %v3519 = vmul.f32 %v3487, 1.442695
      %v3520 = vpow.pop %v3519
      %v3521 = vmul.f32 %v3488, 1.442695
      %v3522 = vpow.pop %v3521
      %v3523 = vmul.f32 %v3489, 1.442695
      %v3524 = vpow.pop %v3523
      %v3525 = vmul.f32 %v3490, 1.442695
      %v3526 = vpow.pop %v3525
      %v3527 = vmul.f32 %v3491, 1.442695
      %v3528 = vpow.pop %v3527
      %v3529 = vmul.f32 %v3492, 1.442695
      %v3530 = vpow.pop %v3529
      %v3531 = vsel %vm3416, %v3494, 0.0
      %3532 = vadd.xlane.f32.xlu0 %v3531
      %v3533 = vpop.xlane.xlu0 %3532
      %v3534 = vsel %vm3416, %v3496, 0.0
      %3535 = vadd.xlane.f32.xlu0 %v3534
      %v3536 = vpop.xlane.xlu0 %3535
      %v3537 = vsel %vm3416, %v3498, 0.0
      %3538 = vadd.xlane.f32.xlu0 %v3537
      %v3539 = vpop.xlane.xlu0 %3538
      %v3540 = vsel %vm3416, %v3500, 0.0
      %3541 = vadd.xlane.f32.xlu0 %v3540
      %v3542 = vpop.xlane.xlu0 %3541
      %v3543 = vsel %vm3416, %v3502, 0.0
      %3544 = vadd.xlane.f32.xlu0 %v3543
      %v3545 = vpop.xlane.xlu0 %3544
      %v3546 = vsel %vm3416, %v3504, 0.0
      %3547 = vadd.xlane.f32.xlu0 %v3546
      %v3548 = vpop.xlane.xlu0 %3547
      %v3549 = vsel %vm3416, %v3506, 0.0
      %3550 = vadd.xlane.f32.xlu0 %v3549
      %v3551 = vpop.xlane.xlu0 %3550
      %v3552 = vsel %vm3416, %v3508, 0.0
      %3553 = vadd.xlane.f32.xlu0 %v3552
      %v3554 = vpop.xlane.xlu0 %3553
      %v3555 = vsel %vm3416, %v3510, 0.0
      %3556 = vadd.xlane.f32.xlu0 %v3555
      %v3557 = vpop.xlane.xlu0 %3556
      %v3558 = vsel %vm3416, %v3512, 0.0
      %3559 = vadd.xlane.f32.xlu0 %v3558
      %v3560 = vpop.xlane.xlu0 %3559
      %v3561 = vsel %vm3416, %v3514, 0.0
      %3562 = vadd.xlane.f32.xlu0 %v3561
      %v3563 = vpop.xlane.xlu0 %3562
      %v3564 = vsel %vm3416, %v3516, 0.0
      %3565 = vadd.xlane.f32.xlu0 %v3564
      %v3566 = vpop.xlane.xlu0 %3565
      %v3567 = vsel %vm3416, %v3518, 0.0
      %3568 = vadd.xlane.f32.xlu0 %v3567
      %v3569 = vpop.xlane.xlu0 %3568
      %v3570 = vsel %vm3416, %v3520, 0.0
      %3571 = vadd.xlane.f32.xlu0 %v3570
      %v3572 = vpop.xlane.xlu0 %3571
      %v3573 = vsel %vm3416, %v3522, 0.0
      %3574 = vadd.xlane.f32.xlu0 %v3573
      %v3575 = vpop.xlane.xlu0 %3574
      %v3576 = vsel %vm3416, %v3524, 0.0
      %3577 = vadd.xlane.f32.xlu0 %v3576
      %v3578 = vpop.xlane.xlu0 %3577
      %v3579 = vsel %vm3416, %v3526, 0.0
      %3580 = vadd.xlane.f32.xlu0 %v3579
      %v3581 = vpop.xlane.xlu0 %3580
      %v3582 = vsel %vm3416, %v3528, 0.0
      %3583 = vadd.xlane.f32.xlu0 %v3582
      %v3584 = vpop.xlane.xlu0 %3583
      %v3585 = vsel %vm3416, %v3530, 0.0
      %3586 = vadd.xlane.f32.xlu0 %v3585
      %v3587 = vpop.xlane.xlu0 %3586
      %v3588 = vrcp.pop %v3533
      %v3589 = vmul.f32 %v3494, %v3588
      %v3590 = vrcp.pop %v3536
      %v3591 = vmul.f32 %v3496, %v3590
      %v3592 = vrcp.pop %v3539
      %v3593 = vmul.f32 %v3498, %v3592
      %v3594 = vrcp.pop %v3542
      %v3595 = vmul.f32 %v3500, %v3594
      %v3596 = vrcp.pop %v3545
      %v3597 = vmul.f32 %v3502, %v3596
      %v3598 = vrcp.pop %v3548
      %v3599 = vmul.f32 %v3504, %v3598
      %v3600 = vrcp.pop %v3551
      %v3601 = vmul.f32 %v3506, %v3600
      %v3602 = vrcp.pop %v3554
      %v3603 = vmul.f32 %v3508, %v3602
      %v3604 = vrcp.pop %v3557
      %v3605 = vmul.f32 %v3510, %v3604
      %v3606 = vrcp.pop %v3560
      %v3607 = vmul.f32 %v3512, %v3606
      %v3608 = vrcp.pop %v3563
      %v3609 = vmul.f32 %v3514, %v3608
      %v3610 = vrcp.pop %v3566
      %v3611 = vmul.f32 %v3516, %v3610
      %v3612 = vrcp.pop %v3569
      %v3613 = vmul.f32 %v3518, %v3612
      %v3614 = vrcp.pop %v3572
      %v3615 = vmul.f32 %v3520, %v3614
      %v3616 = vrcp.pop %v3575
      %v3617 = vmul.f32 %v3522, %v3616
      %v3618 = vrcp.pop %v3578
      %v3619 = vmul.f32 %v3524, %v3618
      %v3620 = vrcp.pop %v3581
      %v3621 = vmul.f32 %v3526, %v3620
      %v3622 = vrcp.pop %v3584
      %v3623 = vmul.f32 %v3528, %v3622
      %v3624 = vrcp.pop %v3587
      %v3625 = vmul.f32 %v3530, %v3624
      %vm3626 = vcmp.eq.s32.totalorder %v308, 0
      %v3627 = vsel %vm3626, %v3375, %v3589
      %v3628 = vsel %vm3626, %v3376, %v3591
      %v3629 = vsel %vm3626, %v3377, %v3593
      %v3630 = vsel %vm3626, %v3378, %v3595
      %v3631 = vsel %vm3626, %v3379, %v3597
      %v3632 = vsel %vm3626, %v3380, %v3599
      %v3633 = vsel %vm3626, %v3381, %v3601
      %v3634 = vsel %vm3626, %v3382, %v3603
      %v3635 = vsel %vm3626, %v3383, %v3605
      %v3636 = vsel %vm3626, %v3384, %v3607
      %v3637 = vsel %vm3626, %v3385, %v3609
      %v3638 = vsel %vm3626, %v3386, %v3611
      %v3639 = vsel %vm3626, %v3387, %v3613
      %v3640 = vsel %vm3626, %v3388, %v3615
      %v3641 = vsel %vm3626, %v3389, %v3617
      %v3642 = vsel %vm3626, %v3390, %v3619
      %v3643 = vsel %vm3626, %v3391, %v3621
      %v3644 = vsel %vm3626, %v3392, %v3623
      %v3645 = vsel %vm3626, %v3393, %v3625
      %3646 = vst.msk [vmem:[%s280] sm:$0xff] %vm3416, %v3627
      %3647 = vst.msk [vmem:[%s280 + $0x8] sm:$0xff] %vm3416, %v3628
      %3648 = vst.msk [vmem:[%s280 + $0x10] sm:$0xff] %vm3416, %v3629
      %3649 = vst.msk [vmem:[%s280 + $0x18] sm:$0xff] %vm3416, %v3630
      %3650 = vst.msk [vmem:[%s280 + $0x20] sm:$0xff] %vm3416, %v3631
      %3651 = vst.msk [vmem:[%s280 + $0x28] sm:$0xff] %vm3416, %v3632
      %3652 = vst.msk [vmem:[%s280 + $0x30] sm:$0xff] %vm3416, %v3633
      %3653 = vst.msk [vmem:[%s280 + $0x38] sm:$0xff] %vm3416, %v3634
      %3654 = vst.msk [vmem:[%s280 + $0x40] sm:$0xff] %vm3416, %v3635
      %3655 = vst.msk [vmem:[%s280 + $0x48] sm:$0xff] %vm3416, %v3636
      %3656 = vst.msk [vmem:[%s280 + $0x50] sm:$0xff] %vm3416, %v3637
      %3657 = vst.msk [vmem:[%s280 + $0x58] sm:$0xff] %vm3416, %v3638
      %3658 = vst.msk [vmem:[%s280 + $0x60] sm:$0xff] %vm3416, %v3639
      %3659 = vst.msk [vmem:[%s280 + $0x68] sm:$0xff] %vm3416, %v3640
      %3660 = vst.msk [vmem:[%s280 + $0x70] sm:$0xff] %vm3416, %v3641
      %3661 = vst.msk [vmem:[%s280 + $0x78] sm:$0xff] %vm3416, %v3642
      %3662 = vst.msk [vmem:[%s280 + $0x80] sm:$0xff] %vm3416, %v3643
      %3663 = vst.msk [vmem:[%s280 + $0x88] sm:$0xff] %vm3416, %v3644
      %3664 = vst.msk [vmem:[%s280 + $0x90] sm:$0xff] %vm3416, %v3645
      %s3665 = smul.u32 19, %s18
      %p3666 = scmp.lt.s32.totalorder %s3665, 37
      %s3667 = scalar_select %p3666, %s3665, 37
      %s3668 = smul.addr %s3667, 8
      %s3669 = scalar_lea.vmem %s7, %s3668
      // Predicated region
      $region49: #{multitask_forward_pallas.1} parent=47 // pred_check
        %p3670 = pneg %p188
      $region50: #{multitask_forward_pallas.1} parent=47 // pred_check_branch
        %3672 = sbr.rel (%p3670) target = $region52
      $region51: #{multitask_forward_pallas.1} parent=47 // pred_region
        %s3673 = smul.u32 19, %s18
      $region52: #{multitask_forward_pallas.1} parent=47 // pred_fallthru
        _
    $region48: #{multitask_forward_pallas.1} parent=5 // pred_fallthru
      _
    %p3674 = scmp.le.s32.totalorder 2, %s13
    // Predicated region
    $region53: #{multitask_forward_pallas.1} parent=5 // pred_check
      %p3675 = pneg %p3674
    $region54: #{multitask_forward_pallas.1} parent=5 // pred_check_branch
      %3677 = sbr.rel (%p3675) target = $region56
    $region55: #{multitask_forward_pallas.1} parent=5 // pred_region
      %s3678 = ssub.s32 %s13, 2
      // Predicated region
      $region57: #{multitask_forward_pallas.1} parent=55 // pred_check
        %p3679 = pneg %p194
      $region58: #{multitask_forward_pallas.1} parent=55 // pred_check_branch
        %3681 = sbr.rel (%p3679) target = $region60
      $region59: #{multitask_forward_pallas.1} parent=55 // pred_region
        %s3682 = smul.u32 19, %s19
        %p3683 = scmp.lt.s32.totalorder %s3682, 37
        %s3684 = scalar_select %p3683, %s3682, 37
        %s3685 = smul.addr %s3684, 8
        %s3686 = scalar_lea.vmem %s7, %s3685
      $region60: #{multitask_forward_pallas.1} parent=55 // pred_fallthru
        _
    $region56: #{multitask_forward_pallas.1} parent=5 // pred_fallthru
      _
  $region6: #{multitask_forward_pallas.1} parent=0 // loop_footer
    %s17 = sadd.s32 1, %s13
  $region7: #{multitask_forward_pallas.1} parent=0 // loop_footer_branch
    %12 = sbr.rel target = $region3
  $region8: #{multitask_forward_pallas.1} parent=0 // loop_exit
    _

</llo_original>
